<compile_context>
chip_gen: v6e
topology: v6e:2x2x1
jax: 0.10.0
libtpu: 0.0.40
codegen_flags: <defaults>
</compile_context>

<pallas_src>
import functools

import jax
import jax.numpy as jnp
from jax.experimental import pallas as pl
from jax.experimental.pallas import tpu as pltpu

HIDDEN = 256
LANE = 128


# ----------------------------------------------------------------------------
# Fused kernel: batched input projection + unrolled LSTM recurrence + MLP head
# ----------------------------------------------------------------------------
def _fused_kernel(x_ref, w_ih_ref, b_ref, b1_ref, b2_ref, b3_ref,
                  w_hh_hbm, w1_hbm, w2_hbm, w3_hbm,
                  out_ref,
                  gates_ref, w_hh_buf, w1_buf, w2_buf, w3_buf, dma_sem,
                  *, T, B):
    H = HIDDEN

    # ---- start weight DMAs so they overlap the batched input projection ----
    cp_whh = pltpu.make_async_copy(w_hh_hbm, w_hh_buf, dma_sem.at[0])
    cp_w1 = pltpu.make_async_copy(w1_hbm, w1_buf, dma_sem.at[1])
    cp_w2 = pltpu.make_async_copy(w2_hbm, w2_buf, dma_sem.at[2])
    cp_w3 = pltpu.make_async_copy(w3_hbm, w3_buf, dma_sem.at[3])
    cp_whh.start()
    cp_w1.start()
    cp_w2.start()
    cp_w3.start()

    # ---- batched input projection (hoisted off the serial critical path) ----
    # (T*B, D)bf16 @ (D, 4H)bf16 -> f32, rows t*B:(t+1)*B hold timestep t.
    # Written to explicit VMEM scratch so its live range is bounded (not spilled
    # across the unrolled recurrence).
    gates_ref[...] = (
        jnp.dot(x_ref[...], w_ih_ref[...], preferred_element_type=jnp.float32)
        + b_ref[...])

    # ---- LSTM recurrence, fully unrolled (T is small & static) ----
    cp_whh.wait()
    w_hh = w_hh_buf[...]                      # (H, 4H) bf16, loaded once

    h = jnp.zeros((B, H), jnp.float32)
    c = jnp.zeros((B, H), jnp.float32)
    for t in range(T):
        g_x = gates_ref[pl.ds(t * B, B), :]   # static slice of the scratch
        gates = g_x + jnp.dot(h.astype(jnp.bfloat16), w_hh,
                              preferred_element_type=jnp.float32)
        # gate layout (pre-reordered in prepare_params): [i, f, o, g]
        sig = jax.nn.sigmoid(gates[:, :3 * H])      # one EUP slab for i, f, o
        g_g = jnp.tanh(gates[:, 3 * H:])
        i_g = sig[:, 0 * H:1 * H]
        f_g = sig[:, 1 * H:2 * H]
        o_g = sig[:, 2 * H:3 * H]
        c = f_g * c + i_g * g_g                     # f32 cell state
        h = o_g * jnp.tanh(c)

    # ---- fused MLP head (dropout = identity in eval mode) ----
    cp_w1.wait()
    cp_w2.wait()
    cp_w3.wait()
    a1 = jnp.maximum(
        jnp.dot(h.astype(jnp.bfloat16), w1_buf[...],
                preferred_element_type=jnp.float32) + b1_ref[...], 0.0)
    a2 = jnp.maximum(
        jnp.dot(a1.astype(jnp.bfloat16), w2_buf[...],
                preferred_element_type=jnp.float32) + b2_ref[...], 0.0)
    out_ref[...] = (
        jnp.dot(a2.astype(jnp.bfloat16), w3_buf[...],
                preferred_element_type=jnp.float32) + b3_ref[...])


def _fused_forward(x2d, T, B, prepared):
    H = HIDDEN
    c_pad = prepared["w3"].shape[1]
    vmem = pl.BlockSpec(memory_space=pltpu.MemorySpace.VMEM)
    anyspec = pl.BlockSpec(memory_space=pl.ANY)
    return pl.pallas_call(
        functools.partial(_fused_kernel, T=T, B=B),
        out_shape=jax.ShapeDtypeStruct((B, c_pad), jnp.float32),
        in_specs=[vmem] * 6 + [anyspec] * 4,
        out_specs=vmem,
        scratch_shapes=[
            pltpu.VMEM((T * B, 4 * H), jnp.float32),      # gates_x scratch
            pltpu.VMEM((H, 4 * H), jnp.bfloat16),         # w_hh buffer
            pltpu.VMEM((H, 128), jnp.bfloat16),           # fc1 weight buffer
            pltpu.VMEM((128, LANE), jnp.bfloat16),        # fc2 weight buffer
            pltpu.VMEM((LANE, c_pad), jnp.bfloat16),      # fc3 weight buffer
            pltpu.SemaphoreType.DMA((4,)),
        ],
    )(x2d, prepared["w_ih_t"], prepared["bias"],
      prepared["b1"], prepared["b2"], prepared["b3"],
      prepared["w_hh_t"], prepared["w1"], prepared["w2"], prepared["w3"])


# ----------------------------------------------------------------------------
# Parameter init (PyTorch layouts) + one-time preparation for the kernel
# ----------------------------------------------------------------------------
def init_params(key, input_size, num_classes):
    H = HIDDEN
    ks = jax.random.split(key, 10)
    s = 0.05
    return {
        # PyTorch LSTM params: weight_ih (4H, D), weight_hh (4H, H), biases (4H,)
        "w_ih": jax.random.normal(ks[0], (4 * H, input_size), jnp.float32) * s,
        "w_hh": jax.random.normal(ks[1], (4 * H, H), jnp.float32) * s,
        "b_ih": jax.random.normal(ks[2], (4 * H,), jnp.float32) * s,
        "b_hh": jax.random.normal(ks[3], (4 * H,), jnp.float32) * s,
        # fc layers (PyTorch Linear stores (out, in))
        "w1": jax.random.normal(ks[4], (128, H), jnp.float32) * s,
        "b1": jax.random.normal(ks[5], (128,), jnp.float32) * s,
        "w2": jax.random.normal(ks[6], (64, 128), jnp.float32) * s,
        "b2": jax.random.normal(ks[7], (64,), jnp.float32) * s,
        "w3": jax.random.normal(ks[8], (num_classes, 64), jnp.float32) * s,
        "b3": jax.random.normal(ks[9], (num_classes,), jnp.float32) * s,
    }


def _reorder_gates_cols(w, H):
    """Columns in PyTorch gate order [i, f, g, o] -> kernel order [i, f, o, g]."""
    i, f, g, o = (w[:, 0 * H:1 * H], w[:, 1 * H:2 * H],
                  w[:, 2 * H:3 * H], w[:, 3 * H:4 * H])
    return jnp.concatenate([i, f, o, g], axis=1)


def prepare_params(params, num_classes):
    """One-time weight massage: transpose, fold biases, gate-reorder, lane-pad,
    cast matmul weights to bf16 (biases / elementwise path stay f32)."""
    H = HIDDEN
    c_pad = ((max(num_classes, 1) + LANE - 1) // LANE) * LANE
    w_ih_t = _reorder_gates_cols(params["w_ih"].T, H)                 # (D, 4H)
    w_hh_t = _reorder_gates_cols(params["w_hh"].T, H)                 # (H, 4H)
    bias = _reorder_gates_cols(
        (params["b_ih"] + params["b_hh"]).reshape(1, -1), H)          # (1, 4H)
    w1 = params["w1"].T                                               # (H, 128)
    b1 = params["b1"].reshape(1, -1)                                  # (1, 128)
    # Pad fc2 output / fc3 input+output to 128 lanes. Exact: padded a2 columns
    # are ReLU(0 + 0) = 0 and the matching w3 rows are 0.
    w2 = jnp.zeros((128, LANE), jnp.float32).at[:, :64].set(params["w2"].T)
    b2 = jnp.zeros((1, LANE), jnp.float32).at[:, :64].set(params["b2"])
    w3 = jnp.zeros((LANE, c_pad), jnp.float32).at[:64, :num_classes].set(
        params["w3"].T)
    b3 = jnp.zeros((1, c_pad), jnp.float32).at[:, :num_classes].set(
        params["b3"])
    return {
        "w_ih_t": w_ih_t.astype(jnp.bfloat16),
        "w_hh_t": w_hh_t.astype(jnp.bfloat16),
        "bias": bias,
        "w1": w1.astype(jnp.bfloat16), "b1": b1,
        "w2": w2.astype(jnp.bfloat16), "b2": b2,
        "w3": w3.astype(jnp.bfloat16), "b3": b3,
    }


@functools.partial(jax.jit, static_argnames=("num_classes",))
def lstm_model_forward(x, prepared, *, num_classes):
    """x: (B, T, D) batch_first, like the PyTorch module. Returns (B, C)."""
    B, T, D = x.shape
    # time-major, flattened: rows t*B:(t+1)*B hold timestep t; bf16 operand.
    x2d = jnp.transpose(x, (1, 0, 2)).reshape(T * B, D).astype(jnp.bfloat16)
    out_pad = _fused_forward(x2d, T, B, prepared)
    return out_pad[:, :num_classes]


# ----------------------------------------------------------------------------
# Pure-JAX reference (PyTorch f32 semantics) for a correctness sanity check
# ----------------------------------------------------------------------------
def _reference_forward(x, params):
    H = HIDDEN
    B, T, D = x.shape
    w_ih_t = params["w_ih"].T
    w_hh_t = params["w_hh"].T
    b = params["b_ih"] + params["b_hh"]

    def step(carry, x_t):
        h, c = carry
        gates = x_t @ w_ih_t + h @ w_hh_t + b
        i = jax.nn.sigmoid(gates[:, 0 * H:1 * H])
        f = jax.nn.sigmoid(gates[:, 1 * H:2 * H])
        g = jnp.tanh(gates[:, 2 * H:3 * H])
        o = jax.nn.sigmoid(gates[:, 3 * H:4 * H])
        c = f * c + i * g
        h = o * jnp.tanh(c)
        return (h, c), None

    (h, _), _ = jax.lax.scan(
        step, (jnp.zeros((B, H), jnp.float32), jnp.zeros((B, H), jnp.float32)),
        jnp.transpose(x, (1, 0, 2)))
    a1 = jnp.maximum(h @ params["w1"].T + params["b1"], 0.0)
    a2 = jnp.maximum(a1 @ params["w2"].T + params["b2"], 0.0)
    return a2 @ params["w3"].T + params["b3"]


if __name__ == "__main__":
    key = jax.random.PRNGKey(0)
    k_x, k_p = jax.random.split(key)

    B, T, D = 8, 8, 32          # batch, seq, input_size
    NUM_CLASSES = 16

    x = jax.random.normal(k_x, (B, T, D), jnp.float32)
    params = init_params(k_p, D, NUM_CLASSES)
    prepared = prepare_params(params, NUM_CLASSES)

    out = lstm_model_forward(x, prepared, num_classes=NUM_CLASSES)
    out = jax.block_until_ready(out)
    assert out.shape == (B, NUM_CLASSES), out.shape

    # Kernel uses bf16 MXU operands (f32 accumulate + f32 cell math), so allow
    # a bf16-level tolerance against the pure-f32 reference.
    ref = _reference_forward(x, params)
    assert jnp.allclose(out, ref, rtol=2e-2, atol=2e-2), (
        "max abs diff = %g" % float(jnp.max(jnp.abs(out - ref))))

    print("KERNEL_OK")
</pallas_src>

<mosaic_0001>
module attributes {stable_mosaic.version = 11 : i64} {
  func.func @_fused_kernel(%arg0: memref<64x32xbf16, #tpu.memory_space<vmem>>, %arg1: memref<32x1024xbf16, #tpu.memory_space<vmem>>, %arg2: memref<1x1024xf32, #tpu.memory_space<vmem>>, %arg3: memref<1x128xf32, #tpu.memory_space<vmem>>, %arg4: memref<1x128xf32, #tpu.memory_space<vmem>>, %arg5: memref<1x128xf32, #tpu.memory_space<vmem>>, %arg6: memref<256x1024xbf16, #tpu.memory_space<any>>, %arg7: memref<256x128xbf16, #tpu.memory_space<any>>, %arg8: memref<128x128xbf16, #tpu.memory_space<any>>, %arg9: memref<128x128xbf16, #tpu.memory_space<any>>, %arg10: memref<8x128xf32, #tpu.memory_space<vmem>>, %arg11: memref<64x1024xf32, #tpu.memory_space<vmem>>, %arg12: memref<256x1024xbf16, #tpu.memory_space<vmem>>, %arg13: memref<256x128xbf16, #tpu.memory_space<vmem>>, %arg14: memref<128x128xbf16, #tpu.memory_space<vmem>>, %arg15: memref<128x128xbf16, #tpu.memory_space<vmem>>, %arg16: memref<4x!tpu.dma_semaphore, #tpu.memory_space<semaphore_mem>>) attributes {dimension_semantics = [], scalar_prefetch = 0 : i64, scratch_operands = 6 : i64, tpu.core_type = #tpu.core_type<tc>} {
    %c0_i32 = arith.constant 0 : i32
    %0 = tpu.memref_slice %arg16[%c0_i32] : memref<4x!tpu.dma_semaphore, #tpu.memory_space<semaphore_mem>> -> memref<1x!tpu.dma_semaphore, #tpu.memory_space<semaphore_mem>>
    %1 = tpu.memref_squeeze %0 : memref<1x!tpu.dma_semaphore, #tpu.memory_space<semaphore_mem>> -> memref<!tpu.dma_semaphore, #tpu.memory_space<semaphore_mem>>
    tpu.enqueue_dma source(%arg6 : memref<256x1024xbf16, #tpu.memory_space<any>>) target(%arg12 : memref<256x1024xbf16, #tpu.memory_space<vmem>>) target_semaphore(%1 : memref<!tpu.dma_semaphore, #tpu.memory_space<semaphore_mem>>)
    %c1_i32 = arith.constant 1 : i32
    %2 = tpu.memref_slice %arg16[%c1_i32] : memref<4x!tpu.dma_semaphore, #tpu.memory_space<semaphore_mem>> -> memref<1x!tpu.dma_semaphore, #tpu.memory_space<semaphore_mem>>
    %3 = tpu.memref_squeeze %2 : memref<1x!tpu.dma_semaphore, #tpu.memory_space<semaphore_mem>> -> memref<!tpu.dma_semaphore, #tpu.memory_space<semaphore_mem>>
    tpu.enqueue_dma source(%arg7 : memref<256x128xbf16, #tpu.memory_space<any>>) target(%arg13 : memref<256x128xbf16, #tpu.memory_space<vmem>>) target_semaphore(%3 : memref<!tpu.dma_semaphore, #tpu.memory_space<semaphore_mem>>)
    %c2_i32 = arith.constant 2 : i32
    %4 = tpu.memref_slice %arg16[%c2_i32] : memref<4x!tpu.dma_semaphore, #tpu.memory_space<semaphore_mem>> -> memref<1x!tpu.dma_semaphore, #tpu.memory_space<semaphore_mem>>
    %5 = tpu.memref_squeeze %4 : memref<1x!tpu.dma_semaphore, #tpu.memory_space<semaphore_mem>> -> memref<!tpu.dma_semaphore, #tpu.memory_space<semaphore_mem>>
    tpu.enqueue_dma source(%arg8 : memref<128x128xbf16, #tpu.memory_space<any>>) target(%arg14 : memref<128x128xbf16, #tpu.memory_space<vmem>>) target_semaphore(%5 : memref<!tpu.dma_semaphore, #tpu.memory_space<semaphore_mem>>)
    %c3_i32 = arith.constant 3 : i32
    %6 = tpu.memref_slice %arg16[%c3_i32] : memref<4x!tpu.dma_semaphore, #tpu.memory_space<semaphore_mem>> -> memref<1x!tpu.dma_semaphore, #tpu.memory_space<semaphore_mem>>
    %7 = tpu.memref_squeeze %6 : memref<1x!tpu.dma_semaphore, #tpu.memory_space<semaphore_mem>> -> memref<!tpu.dma_semaphore, #tpu.memory_space<semaphore_mem>>
    tpu.enqueue_dma source(%arg9 : memref<128x128xbf16, #tpu.memory_space<any>>) target(%arg15 : memref<128x128xbf16, #tpu.memory_space<vmem>>) target_semaphore(%7 : memref<!tpu.dma_semaphore, #tpu.memory_space<semaphore_mem>>)
    %c0 = arith.constant 0 : index
    %c0_0 = arith.constant 0 : index
    %8 = vector.load %arg0[%c0, %c0_0] : memref<64x32xbf16, #tpu.memory_space<vmem>>, vector<64x32xbf16>
    %c0_1 = arith.constant 0 : index
    %c0_2 = arith.constant 0 : index
    %9 = vector.load %arg1[%c0_1, %c0_2] : memref<32x1024xbf16, #tpu.memory_space<vmem>>, vector<32x1024xbf16>
    %cst = arith.constant dense<0.000000e+00> : vector<64x1024xf32>
    %10 = tpu.matmul %8, %9, %cst {dimension_numbers = #tpu.dot_dimension_numbers<[1], [0], [0], [1], [0, 0, 1, 1], [], []>} : vector<64x32xbf16>, vector<32x1024xbf16>, vector<64x1024xf32> -> vector<64x1024xf32>
    %c0_3 = arith.constant 0 : index
    %c0_4 = arith.constant 0 : index
    %11 = vector.load %arg2[%c0_3, %c0_4] : memref<1x1024xf32, #tpu.memory_space<vmem>>, vector<1x1024xf32>
    %12 = vector.broadcast %11 : vector<1x1024xf32> to vector<64x1024xf32>
    %13 = arith.addf %10, %12 : vector<64x1024xf32>
    %c0_5 = arith.constant 0 : index
    %c0_6 = arith.constant 0 : index
    %14 = vector.load %arg11[%c0_5, %c0_6] : memref<64x1024xf32, #tpu.memory_space<vmem>>, vector<64x1024xf32>
    tpu.vector_store %arg11[%c0_5, %c0_6], %13 {strides = array<i32>} : memref<64x1024xf32, #tpu.memory_space<vmem>>, vector<64x1024xf32>,
    %c0_i32_7 = arith.constant 0 : i32
    %15 = tpu.memref_slice %arg16[%c0_i32_7] : memref<4x!tpu.dma_semaphore, #tpu.memory_space<semaphore_mem>> -> memref<1x!tpu.dma_semaphore, #tpu.memory_space<semaphore_mem>>
    %16 = tpu.memref_squeeze %15 : memref<1x!tpu.dma_semaphore, #tpu.memory_space<semaphore_mem>> -> memref<!tpu.dma_semaphore, #tpu.memory_space<semaphore_mem>>
    tpu.wait_dma2 semaphore(%16 : memref<!tpu.dma_semaphore, #tpu.memory_space<semaphore_mem>>) src(%arg6 : memref<256x1024xbf16, #tpu.memory_space<any>>) dst(%arg12 : memref<256x1024xbf16, #tpu.memory_space<vmem>>)
    %c0_8 = arith.constant 0 : index
    %c0_9 = arith.constant 0 : index
    %17 = vector.load %arg12[%c0_8, %c0_9] : memref<256x1024xbf16, #tpu.memory_space<vmem>>, vector<256x1024xbf16>
    %cst_10 = arith.constant 0.000000e+00 : f32
    %18 = vector.broadcast %cst_10 : f32 to vector<8x256xf32>
    %cst_11 = arith.constant 0.000000e+00 : f32
    %19 = vector.broadcast %cst_11 : f32 to vector<8x256xf32>
    %c0_12 = arith.constant 0 : index
    %c0_13 = arith.constant 0 : index
    %20 = vector.load %arg11[%c0_12, %c0_13] : memref<64x1024xf32, #tpu.memory_space<vmem>>, vector<8x1024xf32>
    %21 = arith.truncf %18 : vector<8x256xf32> to vector<8x256xbf16>
    %cst_14 = arith.constant dense<0.000000e+00> : vector<8x1024xf32>
    %22 = tpu.matmul %21, %17, %cst_14 {dimension_numbers = #tpu.dot_dimension_numbers<[1], [0], [0], [1], [0, 0, 1, 1], [], []>} : vector<8x256xbf16>, vector<256x1024xbf16>, vector<8x1024xf32> -> vector<8x1024xf32>
    %23 = arith.addf %20, %22 : vector<8x1024xf32>
    %24 = vector.extract_strided_slice %23 {offsets = [0, 0], sizes = [8, 768], strides = [1, 1]} : vector<8x1024xf32> to vector<8x768xf32>
    %25 = arith.negf %24 : vector<8x768xf32>
    %26 = math.exp %25 : vector<8x768xf32>
    %cst_15 = arith.constant 1.000000e+00 : f32
    %27 = vector.broadcast %cst_15 : f32 to vector<8x768xf32>
    %28 = arith.addf %27, %26 : vector<8x768xf32>
    %29 = arith.divf %27, %28 : vector<8x768xf32>
    %30 = vector.extract_strided_slice %23 {offsets = [0, 768], sizes = [8, 256], strides = [1, 1]} : vector<8x1024xf32> to vector<8x256xf32>
    %31 = math.tanh %30 : vector<8x256xf32>
    %32 = vector.extract_strided_slice %29 {offsets = [0, 0], sizes = [8, 256], strides = [1, 1]} : vector<8x768xf32> to vector<8x256xf32>
    %33 = vector.extract_strided_slice %29 {offsets = [0, 256], sizes = [8, 256], strides = [1, 1]} : vector<8x768xf32> to vector<8x256xf32>
    %34 = vector.extract_strided_slice %29 {offsets = [0, 512], sizes = [8, 256], strides = [1, 1]} : vector<8x768xf32> to vector<8x256xf32>
    %35 = arith.mulf %33, %19 : vector<8x256xf32>
    %36 = arith.mulf %32, %31 : vector<8x256xf32>
    %37 = arith.addf %35, %36 : vector<8x256xf32>
    %38 = math.tanh %37 : vector<8x256xf32>
    %39 = arith.mulf %34, %38 : vector<8x256xf32>
    %c8 = arith.constant 8 : index
    %c0_16 = arith.constant 0 : index
    %40 = vector.load %arg11[%c8, %c0_16] : memref<64x1024xf32, #tpu.memory_space<vmem>>, vector<8x1024xf32>
    %41 = arith.truncf %39 : vector<8x256xf32> to vector<8x256xbf16>
    %cst_17 = arith.constant dense<0.000000e+00> : vector<8x1024xf32>
    %42 = tpu.matmul %41, %17, %cst_17 {dimension_numbers = #tpu.dot_dimension_numbers<[1], [0], [0], [1], [0, 0, 1, 1], [], []>} : vector<8x256xbf16>, vector<256x1024xbf16>, vector<8x1024xf32> -> vector<8x1024xf32>
    %43 = arith.addf %40, %42 : vector<8x1024xf32>
    %44 = vector.extract_strided_slice %43 {offsets = [0, 0], sizes = [8, 768], strides = [1, 1]} : vector<8x1024xf32> to vector<8x768xf32>
    %45 = arith.negf %44 : vector<8x768xf32>
    %46 = math.exp %45 : vector<8x768xf32>
    %cst_18 = arith.constant 1.000000e+00 : f32
    %47 = vector.broadcast %cst_18 : f32 to vector<8x768xf32>
    %48 = arith.addf %47, %46 : vector<8x768xf32>
    %49 = arith.divf %47, %48 : vector<8x768xf32>
    %50 = vector.extract_strided_slice %43 {offsets = [0, 768], sizes = [8, 256], strides = [1, 1]} : vector<8x1024xf32> to vector<8x256xf32>
    %51 = math.tanh %50 : vector<8x256xf32>
    %52 = vector.extract_strided_slice %49 {offsets = [0, 0], sizes = [8, 256], strides = [1, 1]} : vector<8x768xf32> to vector<8x256xf32>
    %53 = vector.extract_strided_slice %49 {offsets = [0, 256], sizes = [8, 256], strides = [1, 1]} : vector<8x768xf32> to vector<8x256xf32>
    %54 = vector.extract_strided_slice %49 {offsets = [0, 512], sizes = [8, 256], strides = [1, 1]} : vector<8x768xf32> to vector<8x256xf32>
    %55 = arith.mulf %53, %37 : vector<8x256xf32>
    %56 = arith.mulf %52, %51 : vector<8x256xf32>
    %57 = arith.addf %55, %56 : vector<8x256xf32>
    %58 = math.tanh %57 : vector<8x256xf32>
    %59 = arith.mulf %54, %58 : vector<8x256xf32>
    %c16 = arith.constant 16 : index
    %c0_19 = arith.constant 0 : index
    %60 = vector.load %arg11[%c16, %c0_19] : memref<64x1024xf32, #tpu.memory_space<vmem>>, vector<8x1024xf32>
    %61 = arith.truncf %59 : vector<8x256xf32> to vector<8x256xbf16>
    %cst_20 = arith.constant dense<0.000000e+00> : vector<8x1024xf32>
    %62 = tpu.matmul %61, %17, %cst_20 {dimension_numbers = #tpu.dot_dimension_numbers<[1], [0], [0], [1], [0, 0, 1, 1], [], []>} : vector<8x256xbf16>, vector<256x1024xbf16>, vector<8x1024xf32> -> vector<8x1024xf32>
    %63 = arith.addf %60, %62 : vector<8x1024xf32>
    %64 = vector.extract_strided_slice %63 {offsets = [0, 0], sizes = [8, 768], strides = [1, 1]} : vector<8x1024xf32> to vector<8x768xf32>
    %65 = arith.negf %64 : vector<8x768xf32>
    %66 = math.exp %65 : vector<8x768xf32>
    %cst_21 = arith.constant 1.000000e+00 : f32
    %67 = vector.broadcast %cst_21 : f32 to vector<8x768xf32>
    %68 = arith.addf %67, %66 : vector<8x768xf32>
    %69 = arith.divf %67, %68 : vector<8x768xf32>
    %70 = vector.extract_strided_slice %63 {offsets = [0, 768], sizes = [8, 256], strides = [1, 1]} : vector<8x1024xf32> to vector<8x256xf32>
    %71 = math.tanh %70 : vector<8x256xf32>
    %72 = vector.extract_strided_slice %69 {offsets = [0, 0], sizes = [8, 256], strides = [1, 1]} : vector<8x768xf32> to vector<8x256xf32>
    %73 = vector.extract_strided_slice %69 {offsets = [0, 256], sizes = [8, 256], strides = [1, 1]} : vector<8x768xf32> to vector<8x256xf32>
    %74 = vector.extract_strided_slice %69 {offsets = [0, 512], sizes = [8, 256], strides = [1, 1]} : vector<8x768xf32> to vector<8x256xf32>
    %75 = arith.mulf %73, %57 : vector<8x256xf32>
    %76 = arith.mulf %72, %71 : vector<8x256xf32>
    %77 = arith.addf %75, %76 : vector<8x256xf32>
    %78 = math.tanh %77 : vector<8x256xf32>
    %79 = arith.mulf %74, %78 : vector<8x256xf32>
    %c24 = arith.constant 24 : index
    %c0_22 = arith.constant 0 : index
    %80 = vector.load %arg11[%c24, %c0_22] : memref<64x1024xf32, #tpu.memory_space<vmem>>, vector<8x1024xf32>
    %81 = arith.truncf %79 : vector<8x256xf32> to vector<8x256xbf16>
    %cst_23 = arith.constant dense<0.000000e+00> : vector<8x1024xf32>
    %82 = tpu.matmul %81, %17, %cst_23 {dimension_numbers = #tpu.dot_dimension_numbers<[1], [0], [0], [1], [0, 0, 1, 1], [], []>} : vector<8x256xbf16>, vector<256x1024xbf16>, vector<8x1024xf32> -> vector<8x1024xf32>
    %83 = arith.addf %80, %82 : vector<8x1024xf32>
    %84 = vector.extract_strided_slice %83 {offsets = [0, 0], sizes = [8, 768], strides = [1, 1]} : vector<8x1024xf32> to vector<8x768xf32>
    %85 = arith.negf %84 : vector<8x768xf32>
    %86 = math.exp %85 : vector<8x768xf32>
    %cst_24 = arith.constant 1.000000e+00 : f32
    %87 = vector.broadcast %cst_24 : f32 to vector<8x768xf32>
    %88 = arith.addf %87, %86 : vector<8x768xf32>
    %89 = arith.divf %87, %88 : vector<8x768xf32>
    %90 = vector.extract_strided_slice %83 {offsets = [0, 768], sizes = [8, 256], strides = [1, 1]} : vector<8x1024xf32> to vector<8x256xf32>
    %91 = math.tanh %90 : vector<8x256xf32>
    %92 = vector.extract_strided_slice %89 {offsets = [0, 0], sizes = [8, 256], strides = [1, 1]} : vector<8x768xf32> to vector<8x256xf32>
    %93 = vector.extract_strided_slice %89 {offsets = [0, 256], sizes = [8, 256], strides = [1, 1]} : vector<8x768xf32> to vector<8x256xf32>
    %94 = vector.extract_strided_slice %89 {offsets = [0, 512], sizes = [8, 256], strides = [1, 1]} : vector<8x768xf32> to vector<8x256xf32>
    %95 = arith.mulf %93, %77 : vector<8x256xf32>
    %96 = arith.mulf %92, %91 : vector<8x256xf32>
    %97 = arith.addf %95, %96 : vector<8x256xf32>
    %98 = math.tanh %97 : vector<8x256xf32>
    %99 = arith.mulf %94, %98 : vector<8x256xf32>
    %c32 = arith.constant 32 : index
    %c0_25 = arith.constant 0 : index
    %100 = vector.load %arg11[%c32, %c0_25] : memref<64x1024xf32, #tpu.memory_space<vmem>>, vector<8x1024xf32>
    %101 = arith.truncf %99 : vector<8x256xf32> to vector<8x256xbf16>
    %cst_26 = arith.constant dense<0.000000e+00> : vector<8x1024xf32>
    %102 = tpu.matmul %101, %17, %cst_26 {dimension_numbers = #tpu.dot_dimension_numbers<[1], [0], [0], [1], [0, 0, 1, 1], [], []>} : vector<8x256xbf16>, vector<256x1024xbf16>, vector<8x1024xf32> -> vector<8x1024xf32>
    %103 = arith.addf %100, %102 : vector<8x1024xf32>
    %104 = vector.extract_strided_slice %103 {offsets = [0, 0], sizes = [8, 768], strides = [1, 1]} : vector<8x1024xf32> to vector<8x768xf32>
    %105 = arith.negf %104 : vector<8x768xf32>
    %106 = math.exp %105 : vector<8x768xf32>
    %cst_27 = arith.constant 1.000000e+00 : f32
    %107 = vector.broadcast %cst_27 : f32 to vector<8x768xf32>
    %108 = arith.addf %107, %106 : vector<8x768xf32>
    %109 = arith.divf %107, %108 : vector<8x768xf32>
    %110 = vector.extract_strided_slice %103 {offsets = [0, 768], sizes = [8, 256], strides = [1, 1]} : vector<8x1024xf32> to vector<8x256xf32>
    %111 = math.tanh %110 : vector<8x256xf32>
    %112 = vector.extract_strided_slice %109 {offsets = [0, 0], sizes = [8, 256], strides = [1, 1]} : vector<8x768xf32> to vector<8x256xf32>
    %113 = vector.extract_strided_slice %109 {offsets = [0, 256], sizes = [8, 256], strides = [1, 1]} : vector<8x768xf32> to vector<8x256xf32>
    %114 = vector.extract_strided_slice %109 {offsets = [0, 512], sizes = [8, 256], strides = [1, 1]} : vector<8x768xf32> to vector<8x256xf32>
    %115 = arith.mulf %113, %97 : vector<8x256xf32>
    %116 = arith.mulf %112, %111 : vector<8x256xf32>
    %117 = arith.addf %115, %116 : vector<8x256xf32>
    %118 = math.tanh %117 : vector<8x256xf32>
    %119 = arith.mulf %114, %118 : vector<8x256xf32>
    %c40 = arith.constant 40 : index
    %c0_28 = arith.constant 0 : index
    %120 = vector.load %arg11[%c40, %c0_28] : memref<64x1024xf32, #tpu.memory_space<vmem>>, vector<8x1024xf32>
    %121 = arith.truncf %119 : vector<8x256xf32> to vector<8x256xbf16>
    %cst_29 = arith.constant dense<0.000000e+00> : vector<8x1024xf32>
    %122 = tpu.matmul %121, %17, %cst_29 {dimension_numbers = #tpu.dot_dimension_numbers<[1], [0], [0], [1], [0, 0, 1, 1], [], []>} : vector<8x256xbf16>, vector<256x1024xbf16>, vector<8x1024xf32> -> vector<8x1024xf32>
    %123 = arith.addf %120, %122 : vector<8x1024xf32>
    %124 = vector.extract_strided_slice %123 {offsets = [0, 0], sizes = [8, 768], strides = [1, 1]} : vector<8x1024xf32> to vector<8x768xf32>
    %125 = arith.negf %124 : vector<8x768xf32>
    %126 = math.exp %125 : vector<8x768xf32>
    %cst_30 = arith.constant 1.000000e+00 : f32
    %127 = vector.broadcast %cst_30 : f32 to vector<8x768xf32>
    %128 = arith.addf %127, %126 : vector<8x768xf32>
    %129 = arith.divf %127, %128 : vector<8x768xf32>
    %130 = vector.extract_strided_slice %123 {offsets = [0, 768], sizes = [8, 256], strides = [1, 1]} : vector<8x1024xf32> to vector<8x256xf32>
    %131 = math.tanh %130 : vector<8x256xf32>
    %132 = vector.extract_strided_slice %129 {offsets = [0, 0], sizes = [8, 256], strides = [1, 1]} : vector<8x768xf32> to vector<8x256xf32>
    %133 = vector.extract_strided_slice %129 {offsets = [0, 256], sizes = [8, 256], strides = [1, 1]} : vector<8x768xf32> to vector<8x256xf32>
    %134 = vector.extract_strided_slice %129 {offsets = [0, 512], sizes = [8, 256], strides = [1, 1]} : vector<8x768xf32> to vector<8x256xf32>
    %135 = arith.mulf %133, %117 : vector<8x256xf32>
    %136 = arith.mulf %132, %131 : vector<8x256xf32>
    %137 = arith.addf %135, %136 : vector<8x256xf32>
    %138 = math.tanh %137 : vector<8x256xf32>
    %139 = arith.mulf %134, %138 : vector<8x256xf32>
    %c48 = arith.constant 48 : index
    %c0_31 = arith.constant 0 : index
    %140 = vector.load %arg11[%c48, %c0_31] : memref<64x1024xf32, #tpu.memory_space<vmem>>, vector<8x1024xf32>
    %141 = arith.truncf %139 : vector<8x256xf32> to vector<8x256xbf16>
    %cst_32 = arith.constant dense<0.000000e+00> : vector<8x1024xf32>
    %142 = tpu.matmul %141, %17, %cst_32 {dimension_numbers = #tpu.dot_dimension_numbers<[1], [0], [0], [1], [0, 0, 1, 1], [], []>} : vector<8x256xbf16>, vector<256x1024xbf16>, vector<8x1024xf32> -> vector<8x1024xf32>
    %143 = arith.addf %140, %142 : vector<8x1024xf32>
    %144 = vector.extract_strided_slice %143 {offsets = [0, 0], sizes = [8, 768], strides = [1, 1]} : vector<8x1024xf32> to vector<8x768xf32>
    %145 = arith.negf %144 : vector<8x768xf32>
    %146 = math.exp %145 : vector<8x768xf32>
    %cst_33 = arith.constant 1.000000e+00 : f32
    %147 = vector.broadcast %cst_33 : f32 to vector<8x768xf32>
    %148 = arith.addf %147, %146 : vector<8x768xf32>
    %149 = arith.divf %147, %148 : vector<8x768xf32>
    %150 = vector.extract_strided_slice %143 {offsets = [0, 768], sizes = [8, 256], strides = [1, 1]} : vector<8x1024xf32> to vector<8x256xf32>
    %151 = math.tanh %150 : vector<8x256xf32>
    %152 = vector.extract_strided_slice %149 {offsets = [0, 0], sizes = [8, 256], strides = [1, 1]} : vector<8x768xf32> to vector<8x256xf32>
    %153 = vector.extract_strided_slice %149 {offsets = [0, 256], sizes = [8, 256], strides = [1, 1]} : vector<8x768xf32> to vector<8x256xf32>
    %154 = vector.extract_strided_slice %149 {offsets = [0, 512], sizes = [8, 256], strides = [1, 1]} : vector<8x768xf32> to vector<8x256xf32>
    %155 = arith.mulf %153, %137 : vector<8x256xf32>
    %156 = arith.mulf %152, %151 : vector<8x256xf32>
    %157 = arith.addf %155, %156 : vector<8x256xf32>
    %158 = math.tanh %157 : vector<8x256xf32>
    %159 = arith.mulf %154, %158 : vector<8x256xf32>
    %c56 = arith.constant 56 : index
    %c0_34 = arith.constant 0 : index
    %160 = vector.load %arg11[%c56, %c0_34] : memref<64x1024xf32, #tpu.memory_space<vmem>>, vector<8x1024xf32>
    %161 = arith.truncf %159 : vector<8x256xf32> to vector<8x256xbf16>
    %cst_35 = arith.constant dense<0.000000e+00> : vector<8x1024xf32>
    %162 = tpu.matmul %161, %17, %cst_35 {dimension_numbers = #tpu.dot_dimension_numbers<[1], [0], [0], [1], [0, 0, 1, 1], [], []>} : vector<8x256xbf16>, vector<256x1024xbf16>, vector<8x1024xf32> -> vector<8x1024xf32>
    %163 = arith.addf %160, %162 : vector<8x1024xf32>
    %164 = vector.extract_strided_slice %163 {offsets = [0, 0], sizes = [8, 768], strides = [1, 1]} : vector<8x1024xf32> to vector<8x768xf32>
    %165 = arith.negf %164 : vector<8x768xf32>
    %166 = math.exp %165 : vector<8x768xf32>
    %cst_36 = arith.constant 1.000000e+00 : f32
    %167 = vector.broadcast %cst_36 : f32 to vector<8x768xf32>
    %168 = arith.addf %167, %166 : vector<8x768xf32>
    %169 = arith.divf %167, %168 : vector<8x768xf32>
    %170 = vector.extract_strided_slice %163 {offsets = [0, 768], sizes = [8, 256], strides = [1, 1]} : vector<8x1024xf32> to vector<8x256xf32>
    %171 = math.tanh %170 : vector<8x256xf32>
    %172 = vector.extract_strided_slice %169 {offsets = [0, 0], sizes = [8, 256], strides = [1, 1]} : vector<8x768xf32> to vector<8x256xf32>
    %173 = vector.extract_strided_slice %169 {offsets = [0, 256], sizes = [8, 256], strides = [1, 1]} : vector<8x768xf32> to vector<8x256xf32>
    %174 = vector.extract_strided_slice %169 {offsets = [0, 512], sizes = [8, 256], strides = [1, 1]} : vector<8x768xf32> to vector<8x256xf32>
    %175 = arith.mulf %173, %157 : vector<8x256xf32>
    %176 = arith.mulf %172, %171 : vector<8x256xf32>
    %177 = arith.addf %175, %176 : vector<8x256xf32>
    %178 = math.tanh %177 : vector<8x256xf32>
    %179 = arith.mulf %174, %178 : vector<8x256xf32>
    %c1_i32_37 = arith.constant 1 : i32
    %180 = tpu.memref_slice %arg16[%c1_i32_37] : memref<4x!tpu.dma_semaphore, #tpu.memory_space<semaphore_mem>> -> memref<1x!tpu.dma_semaphore, #tpu.memory_space<semaphore_mem>>
    %181 = tpu.memref_squeeze %180 : memref<1x!tpu.dma_semaphore, #tpu.memory_space<semaphore_mem>> -> memref<!tpu.dma_semaphore, #tpu.memory_space<semaphore_mem>>
    tpu.wait_dma2 semaphore(%181 : memref<!tpu.dma_semaphore, #tpu.memory_space<semaphore_mem>>) src(%arg7 : memref<256x128xbf16, #tpu.memory_space<any>>) dst(%arg13 : memref<256x128xbf16, #tpu.memory_space<vmem>>)
    %c2_i32_38 = arith.constant 2 : i32
    %182 = tpu.memref_slice %arg16[%c2_i32_38] : memref<4x!tpu.dma_semaphore, #tpu.memory_space<semaphore_mem>> -> memref<1x!tpu.dma_semaphore, #tpu.memory_space<semaphore_mem>>
    %183 = tpu.memref_squeeze %182 : memref<1x!tpu.dma_semaphore, #tpu.memory_space<semaphore_mem>> -> memref<!tpu.dma_semaphore, #tpu.memory_space<semaphore_mem>>
    tpu.wait_dma2 semaphore(%183 : memref<!tpu.dma_semaphore, #tpu.memory_space<semaphore_mem>>) src(%arg8 : memref<128x128xbf16, #tpu.memory_space<any>>) dst(%arg14 : memref<128x128xbf16, #tpu.memory_space<vmem>>)
    %c3_i32_39 = arith.constant 3 : i32
    %184 = tpu.memref_slice %arg16[%c3_i32_39] : memref<4x!tpu.dma_semaphore, #tpu.memory_space<semaphore_mem>> -> memref<1x!tpu.dma_semaphore, #tpu.memory_space<semaphore_mem>>
    %185 = tpu.memref_squeeze %184 : memref<1x!tpu.dma_semaphore, #tpu.memory_space<semaphore_mem>> -> memref<!tpu.dma_semaphore, #tpu.memory_space<semaphore_mem>>
    tpu.wait_dma2 semaphore(%185 : memref<!tpu.dma_semaphore, #tpu.memory_space<semaphore_mem>>) src(%arg9 : memref<128x128xbf16, #tpu.memory_space<any>>) dst(%arg15 : memref<128x128xbf16, #tpu.memory_space<vmem>>)
    %186 = arith.truncf %179 : vector<8x256xf32> to vector<8x256xbf16>
    %c0_40 = arith.constant 0 : index
    %c0_41 = arith.constant 0 : index
    %187 = vector.load %arg13[%c0_40, %c0_41] : memref<256x128xbf16, #tpu.memory_space<vmem>>, vector<256x128xbf16>
    %cst_42 = arith.constant dense<0.000000e+00> : vector<8x128xf32>
    %188 = tpu.matmul %186, %187, %cst_42 {dimension_numbers = #tpu.dot_dimension_numbers<[1], [0], [0], [1], [0, 0, 1, 1], [], []>} : vector<8x256xbf16>, vector<256x128xbf16>, vector<8x128xf32> -> vector<8x128xf32>
    %c0_43 = arith.constant 0 : index
    %c0_44 = arith.constant 0 : index
    %189 = vector.load %arg3[%c0_43, %c0_44] : memref<1x128xf32, #tpu.memory_space<vmem>>, vector<1x128xf32>
    %190 = vector.broadcast %189 : vector<1x128xf32> to vector<8x128xf32>
    %191 = arith.addf %188, %190 : vector<8x128xf32>
    %cst_45 = arith.constant 0.000000e+00 : f32
    %192 = vector.broadcast %cst_45 : f32 to vector<8x128xf32>
    %193 = arith.maximumf %191, %192 : vector<8x128xf32>
    %194 = arith.truncf %193 : vector<8x128xf32> to vector<8x128xbf16>
    %c0_46 = arith.constant 0 : index
    %c0_47 = arith.constant 0 : index
    %195 = vector.load %arg14[%c0_46, %c0_47] : memref<128x128xbf16, #tpu.memory_space<vmem>>, vector<128x128xbf16>
    %cst_48 = arith.constant dense<0.000000e+00> : vector<8x128xf32>
    %196 = tpu.matmul %194, %195, %cst_48 {dimension_numbers = #tpu.dot_dimension_numbers<[1], [0], [0], [1], [0, 0, 1, 1], [], []>} : vector<8x128xbf16>, vector<128x128xbf16>, vector<8x128xf32> -> vector<8x128xf32>
    %c0_49 = arith.constant 0 : index
    %c0_50 = arith.constant 0 : index
    %197 = vector.load %arg4[%c0_49, %c0_50] : memref<1x128xf32, #tpu.memory_space<vmem>>, vector<1x128xf32>
    %198 = vector.broadcast %197 : vector<1x128xf32> to vector<8x128xf32>
    %199 = arith.addf %196, %198 : vector<8x128xf32>
    %cst_51 = arith.constant 0.000000e+00 : f32
    %200 = vector.broadcast %cst_51 : f32 to vector<8x128xf32>
    %201 = arith.maximumf %199, %200 : vector<8x128xf32>
    %202 = arith.truncf %201 : vector<8x128xf32> to vector<8x128xbf16>
    %c0_52 = arith.constant 0 : index
    %c0_53 = arith.constant 0 : index
    %203 = vector.load %arg15[%c0_52, %c0_53] : memref<128x128xbf16, #tpu.memory_space<vmem>>, vector<128x128xbf16>
    %cst_54 = arith.constant dense<0.000000e+00> : vector<8x128xf32>
    %204 = tpu.matmul %202, %203, %cst_54 {dimension_numbers = #tpu.dot_dimension_numbers<[1], [0], [0], [1], [0, 0, 1, 1], [], []>} : vector<8x128xbf16>, vector<128x128xbf16>, vector<8x128xf32> -> vector<8x128xf32>
    %c0_55 = arith.constant 0 : index
    %c0_56 = arith.constant 0 : index
    %205 = vector.load %arg5[%c0_55, %c0_56] : memref<1x128xf32, #tpu.memory_space<vmem>>, vector<1x128xf32>
    %206 = vector.broadcast %205 : vector<1x128xf32> to vector<8x128xf32>
    %207 = arith.addf %204, %206 : vector<8x128xf32>
    %c0_57 = arith.constant 0 : index
    %c0_58 = arith.constant 0 : index
    %208 = vector.load %arg10[%c0_57, %c0_58] : memref<8x128xf32, #tpu.memory_space<vmem>>, vector<8x128xf32>
    tpu.vector_store %arg10[%c0_57, %c0_58], %207 {strides = array<i32>} : memref<8x128xf32, #tpu.memory_space<vmem>>, vector<8x128xf32>,
    return
  }
}

</mosaic_0001>

<llo_original>
// kernel: lstm_model_forward.1
$region0: #{lstm_model_forward.1}
  #allocation0 [shape = 'u32[]', space=smem, size = 0x4, offset = 0x4, fixed_abs, tag = 'smem constant byte address 0x4 - core index']
  #allocation1 [shape = 'u32[144,128]{1,0:T(1,128)}', space=vmem, size = 0x12000, scoped, tag = 'internal scratch']
  #allocation2 [shape = 'f32[64,1024]{1,0:T(8,128)}', space=vmem, size = 0x40000, scoped, tag = 'scratch operand']
  #allocation3 [shape = 'bf16[256,1024]{1,0:T(8,128)(2,1)}', space=vmem, size = 0x80000, scoped, tag = 'scratch operand']
  #allocation4 [shape = 'bf16[256,128]{1,0:T(8,128)(2,1)}', space=vmem, size = 0x10000, scoped, tag = 'scratch operand']
  #allocation5 [shape = 'bf16[128,128]{1,0:T(8,128)(2,1)}', space=vmem, size = 0x8000, scoped, tag = 'scratch operand']
  #allocation6 [shape = 'bf16[128,128]{1,0:T(8,128)(2,1)}', space=vmem, size = 0x8000, scoped, tag = 'scratch operand']
  #allocation7 [shape = 's32[4]{0}', space=sflag, size = 0x10, scoped, tag = 'scratch operand']
  #allocation10 [shape = 's32[]', space=sflag, size = 0x4, offset = 0, fixed_abs, tag = 'sflag constant byte address 0x0 - dummy sync flag']
  #allocation11 [shape = 's32[]', space=sflag, size = 0x4, offset = 0, fixed_abs, tag = 'sflag constant byte address 0x0 - dummy sync flag']
  #allocation12 [shape = 'u32[]', space=smem, size = 0x4, offset = 0x44, fixed_abs, tag = 'smem constant byte address 0x44 - assertion arg 0']
  #allocation13 [shape = 'u32[]', space=smem, size = 0x4, offset = 0x48, fixed_abs, tag = 'smem constant byte address 0x48 - assertion arg 1']
  #allocation14 [shape = 's32[]', space=sflag, size = 0x4, offset = 0, fixed_abs, tag = 'sflag constant byte address 0x0 - dummy sync flag']
  #allocation15 [shape = 's32[]', space=sflag, size = 0x4, offset = 0, fixed_abs, tag = 'sflag constant byte address 0x0 - dummy sync flag']
  #allocation16 [shape = 's32[]', space=sflag, size = 0x4, offset = 0, fixed_abs, tag = 'sflag constant byte address 0x0 - dummy sync flag']
  #allocation17 [shape = 's32[]', space=sflag, size = 0x4, offset = 0, fixed_abs, tag = 'sflag constant byte address 0x0 - dummy sync flag']
  #allocation18 [shape = 's32[]', space=sflag, size = 0x4, offset = 0, fixed_abs, tag = 'sflag constant byte address 0x0 - dummy sync flag']
  #allocation19 [shape = 's32[]', space=sflag, size = 0x4, offset = 0, fixed_abs, tag = 'sflag constant byte address 0x0 - dummy sync flag']
  %s0 = inlined_call_operand.vmem [shape: bf16[64,32], index: 0, kind: input, shape index: {}]
  %s1 = inlined_call_operand.vmem [shape: bf16[32,1024], index: 1, kind: input, shape index: {}]
  %s2 = inlined_call_operand.vmem [shape: f32[1,1024], index: 2, kind: input, shape index: {}]
  %s3 = inlined_call_operand.vmem [shape: f32[1,128], index: 3, kind: input, shape index: {}]
  %s4 = inlined_call_operand.vmem [shape: f32[1,128], index: 4, kind: input, shape index: {}]
  %s5 = inlined_call_operand.vmem [shape: f32[1,128], index: 5, kind: input, shape index: {}]
  %s6 = inlined_call_operand.hbm [shape: bf16[256,1024], index: 6, kind: input, shape index: {}]
  %s7 = inlined_call_operand.hbm [shape: bf16[256,128], index: 7, kind: input, shape index: {}]
  %s8 = inlined_call_operand.hbm [shape: bf16[128,128], index: 8, kind: input, shape index: {}]
  %s9 = inlined_call_operand.hbm [shape: bf16[128,128], index: 9, kind: input, shape index: {}]
  %s10 = inlined_call_operand.hbm [shape: f32[8,128], index: 10, kind: output, shape index: {}]
  %s11 = sld [smem:[#allocation0]]
  $region50: #{lstm_model_forward.1} parent=0
    _
  %s13 = ssub.s32 1, %s11
  %s14 = scalar_select 0, %s13, %s11
  $region1: #{lstm_model_forward.1} parent=0
    #allocation8 [shape = 'u8[4096]{0}', space=vmem, size = 0x1000, scoped, tag = 'output window, operand 0, single buffered']
    #allocation9 [shape = 's32[1]{0}', space=sflag, size = 0x4, scoped, tag = 'scoped memory for lstm_model_forward.1']
    %15 = vsyncpa [#allocation9], 0
    // Predicated region
    $region2: #{lstm_model_forward.1} parent=1 // pred_check
      _
    $region3: #{lstm_model_forward.1} parent=1 // pred_check_branch
      %17 = sbr.rel (0) target = $region5
    $region4: #{lstm_model_forward.1} parent=1 // pred_region
      _
    $region5: #{lstm_model_forward.1} parent=1 // pred_fallthru
      _
    // Predicated region
    $region6: #{lstm_model_forward.1} parent=1 // pred_check
      _
    $region7: #{lstm_model_forward.1} parent=1 // pred_check_branch
      %19 = sbr.rel (0) target = $region9
    $region8: #{lstm_model_forward.1} parent=1 // pred_region
      _
    $region9: #{lstm_model_forward.1} parent=1 // pred_fallthru
      _
    // Predicated region
    $region10: #{lstm_model_forward.1} parent=1 // pred_check
      _
    $region11: #{lstm_model_forward.1} parent=1 // pred_check_branch
      %21 = sbr.rel (0) target = $region13
    $region12: #{lstm_model_forward.1} parent=1 // pred_region
      _
    $region13: #{lstm_model_forward.1} parent=1 // pred_fallthru
      _
    // Predicated region
    $region14: #{lstm_model_forward.1} parent=1 // pred_check
      _
    $region15: #{lstm_model_forward.1} parent=1 // pred_check_branch
      %23 = sbr.rel (0) target = $region17
    $region16: #{lstm_model_forward.1} parent=1 // pred_region
      _
    $region17: #{lstm_model_forward.1} parent=1 // pred_fallthru
      _
    // Predicated region
    $region18: #{lstm_model_forward.1} parent=1 // pred_check
      _
    $region19: #{lstm_model_forward.1} parent=1 // pred_check_branch
      %25 = sbr.rel (0) target = $region21
    $region20: #{lstm_model_forward.1} parent=1 // pred_region
      _
    $region21: #{lstm_model_forward.1} parent=1 // pred_fallthru
      _
    // Predicated region
    $region22: #{lstm_model_forward.1} parent=1 // pred_check
      _
    $region23: #{lstm_model_forward.1} parent=1 // pred_check_branch
      %27 = sbr.rel (0) target = $region25
    $region24: #{lstm_model_forward.1} parent=1 // pred_region
      _
    $region25: #{lstm_model_forward.1} parent=1 // pred_fallthru
      _
    // Predicated region
    $region26: #{lstm_model_forward.1} parent=1 // pred_check
      _
    $region27: #{lstm_model_forward.1} parent=1 // pred_check_branch
      %30 = sbr.rel target = $region29
    $region28: #{lstm_model_forward.1} parent=1 // pred_region
      %31 = sst [smem:[#allocation12]] [#allocation11]
      %32 = sst [smem:[#allocation13]] [#allocation10]
    $region29: #{lstm_model_forward.1} parent=1 // pred_fallthru
      _
    %34 = shalt.err (0)
    %s36 = sshll.u32 [#allocation3], 4
    %s37 = int_to_ptr.vmem [resolvable:$true] %s36
    %39 = dma.hbm_to_vmem [thread:$0]  %s6, 16384, %s37, [#allocation7]
    %s40 = scalar_lea.sflag [#allocation7], 1
    // Predicated region
    $region30: #{lstm_model_forward.1} parent=1 // pred_check
      _
    $region31: #{lstm_model_forward.1} parent=1 // pred_check_branch
      %42 = sbr.rel target = $region33
    $region32: #{lstm_model_forward.1} parent=1 // pred_region
      %43 = sst [smem:[#allocation12]] [#allocation15]
      %44 = sst [smem:[#allocation13]] [#allocation14]
    $region33: #{lstm_model_forward.1} parent=1 // pred_fallthru
      _
    %46 = shalt.err (0)
    %s48 = sshll.u32 [#allocation4], 4
    %s49 = int_to_ptr.vmem [resolvable:$true] %s48
    %51 = dma.hbm_to_vmem [thread:$0]  %s7, 2048, %s49, %s40
    %s52 = scalar_lea.sflag [#allocation7], 2
    // Predicated region
    $region34: #{lstm_model_forward.1} parent=1 // pred_check
      _
    $region35: #{lstm_model_forward.1} parent=1 // pred_check_branch
      %54 = sbr.rel target = $region37
    $region36: #{lstm_model_forward.1} parent=1 // pred_region
      %55 = sst [smem:[#allocation12]] [#allocation17]
      %56 = sst [smem:[#allocation13]] [#allocation16]
    $region37: #{lstm_model_forward.1} parent=1 // pred_fallthru
      _
    %58 = shalt.err (0)
    %s60 = sshll.u32 [#allocation5], 4
    %s61 = int_to_ptr.vmem [resolvable:$true] %s60
    %63 = dma.hbm_to_vmem [thread:$0]  %s8, 1024, %s61, %s52
    %s64 = scalar_lea.sflag [#allocation7], 3
    // Predicated region
    $region38: #{lstm_model_forward.1} parent=1 // pred_check
      _
    $region39: #{lstm_model_forward.1} parent=1 // pred_check_branch
      %66 = sbr.rel target = $region41
    $region40: #{lstm_model_forward.1} parent=1 // pred_region
      %67 = sst [smem:[#allocation12]] [#allocation19]
      %68 = sst [smem:[#allocation13]] [#allocation18]
    $region41: #{lstm_model_forward.1} parent=1 // pred_fallthru
      _
    %70 = shalt.err (0)
    %s72 = sshll.u32 [#allocation6], 4
    %s73 = int_to_ptr.vmem [resolvable:$true] %s72
    %75 = dma.hbm_to_vmem [thread:$0]  %s9, 1024, %s73, %s64
    %v76 = vld [vmem:[%s0] sm:$0xf]
    %v77 = vld [vmem:[%s0 + $0x4] sm:$0xf]
    %v78 = vld [vmem:[%s0 + $0x8] sm:$0xf]
    %v79 = vld [vmem:[%s0 + $0xc] sm:$0xf]
    %v80 = vld [vmem:[%s0 + $0x10] sm:$0xf]
    %v81 = vld [vmem:[%s0 + $0x14] sm:$0xf]
    %v82 = vld [vmem:[%s0 + $0x18] sm:$0xf]
    %v83 = vld [vmem:[%s0 + $0x1c] sm:$0xf]
    %v84 = vld [vmem:[%s1] sm:$0xff]
    %v85 = vld [vmem:[%s1 + $0x8] sm:$0xff]
    %v86 = vld [vmem:[%s1 + $0x10] sm:$0xff]
    %v87 = vld [vmem:[%s1 + $0x18] sm:$0xff]
    %v88 = vld [vmem:[%s1 + $0x20] sm:$0xff]
    %v89 = vld [vmem:[%s1 + $0x28] sm:$0xff]
    %v90 = vld [vmem:[%s1 + $0x30] sm:$0xff]
    %v91 = vld [vmem:[%s1 + $0x38] sm:$0xff]
    %v92 = vld [vmem:[%s1 + $0x40] sm:$0xff]
    %v93 = vld [vmem:[%s1 + $0x48] sm:$0xff]
    %v94 = vld [vmem:[%s1 + $0x50] sm:$0xff]
    %v95 = vld [vmem:[%s1 + $0x58] sm:$0xff]
    %v96 = vld [vmem:[%s1 + $0x60] sm:$0xff]
    %v97 = vld [vmem:[%s1 + $0x68] sm:$0xff]
    %v98 = vld [vmem:[%s1 + $0x70] sm:$0xff]
    %v99 = vld [vmem:[%s1 + $0x78] sm:$0xff]
    %v100 = vld [vmem:[%s2] sm:$0xff]
    %v102 = vlaneseq
    %v103 = vshrl.u32 %v102, 7
    %v104 = vsub.s32 0, %v103
    %v105 = vrot.slane %v100, %v104
    %v106 = vlaneseq
    %v107 = vshrl.u32 %v106, 7
    %v108 = vsub.s32 1, %v107
    %v109 = vrot.slane %v100, %v108
    %v110 = vlaneseq
    %v111 = vshrl.u32 %v110, 7
    %v112 = vsub.s32 2, %v111
    %v113 = vrot.slane %v100, %v112
    %v114 = vlaneseq
    %v115 = vshrl.u32 %v114, 7
    %v116 = vsub.s32 3, %v115
    %v117 = vrot.slane %v100, %v116
    %v118 = vlaneseq
    %v119 = vshrl.u32 %v118, 7
    %v120 = vsub.s32 4, %v119
    %v121 = vrot.slane %v100, %v120
    %v122 = vlaneseq
    %v123 = vshrl.u32 %v122, 7
    %v124 = vsub.s32 5, %v123
    %v125 = vrot.slane %v100, %v124
    %v126 = vlaneseq
    %v127 = vshrl.u32 %v126, 7
    %v128 = vsub.s32 6, %v127
    %v129 = vrot.slane %v100, %v128
    %v130 = vlaneseq
    %v131 = vshrl.u32 %v130, 7
    %v132 = vsub.s32 7, %v131
    %v133 = vrot.slane %v100, %v132
    %v150 = vunpack.c.l.b16 %v76
    %v151 = vunpack.c.l.b16 %v77
    %v152 = vunpack.c.l.b16 %v78
    %v153 = vunpack.c.l.b16 %v79
    %v154 = vunpack.c.l.b16 %v80
    %v155 = vunpack.c.l.b16 %v81
    %v156 = vunpack.c.l.b16 %v82
    %v157 = vunpack.c.l.b16 %v83
    %v158 = vpack.c.b16 %v151, %v150
    %v159 = vpack.c.b16 %v153, %v152
    %v160 = vpack.c.b16 %v155, %v154
    %v161 = vpack.c.b16 %v157, %v156
    %v178 = vunpack.c.l.b16 %v84
    %v179 = vunpack.c.h.b16 %v84
    %v180 = vunpack.c.l.b16 %v85
    %v181 = vunpack.c.h.b16 %v85
    %v182 = vunpack.c.l.b16 %v86
    %v183 = vunpack.c.h.b16 %v86
    %v184 = vunpack.c.l.b16 %v87
    %v185 = vunpack.c.h.b16 %v87
    %v186 = vunpack.c.l.b16 %v88
    %v187 = vunpack.c.h.b16 %v88
    %v188 = vunpack.c.l.b16 %v89
    %v189 = vunpack.c.h.b16 %v89
    %v190 = vunpack.c.l.b16 %v90
    %v191 = vunpack.c.h.b16 %v90
    %v192 = vunpack.c.l.b16 %v91
    %v193 = vunpack.c.h.b16 %v91
    %v194 = vunpack.c.l.b16 %v92
    %v195 = vunpack.c.h.b16 %v92
    %v196 = vunpack.c.l.b16 %v93
    %v197 = vunpack.c.h.b16 %v93
    %v198 = vunpack.c.l.b16 %v94
    %v199 = vunpack.c.h.b16 %v94
    %v200 = vunpack.c.l.b16 %v95
    %v201 = vunpack.c.h.b16 %v95
    %v202 = vunpack.c.l.b16 %v96
    %v203 = vunpack.c.h.b16 %v96
    %v204 = vunpack.c.l.b16 %v97
    %v205 = vunpack.c.h.b16 %v97
    %v206 = vunpack.c.l.b16 %v98
    %v207 = vunpack.c.h.b16 %v98
    %v208 = vunpack.c.l.b16 %v99
    %v209 = vunpack.c.h.b16 %v99
    %v210 = vpack.c.b16 %v186, %v178
    %v211 = vpack.c.b16 %v187, %v179
    %v212 = vpack.c.b16 %v188, %v180
    %v213 = vpack.c.b16 %v189, %v181
    %v214 = vpack.c.b16 %v190, %v182
    %v215 = vpack.c.b16 %v191, %v183
    %v216 = vpack.c.b16 %v192, %v184
    %v217 = vpack.c.b16 %v193, %v185
    %v218 = vpack.c.b16 %v202, %v194
    %v219 = vpack.c.b16 %v203, %v195
    %v220 = vpack.c.b16 %v204, %v196
    %v221 = vpack.c.b16 %v205, %v197
    %v222 = vpack.c.b16 %v206, %v198
    %v223 = vpack.c.b16 %v207, %v199
    %v224 = vpack.c.b16 %v208, %v200
    %v225 = vpack.c.b16 %v209, %v201
    %vm242 = vcmask 261120
    %v244 = vsel %vm242, %v158, 0
    %v247 = vsel %vm242, %v159, 0
    %v250 = vsel %vm242, %v160, 0
    %v253 = vsel %vm242, %v161, 0
    %255 = vmatprep.subr.bf16.mxu0 0
    %256 = vmatpush1.bf16.msra.mxu0 0
    %257 = vmatprep.subr.bf16.mxu0 0
    %258 = vmatpush1.bf16.msra.mxu0 0
    %259 = vmatprep.subr.bf16.mxu0 0
    %260 = vmatpush1.bf16.msra.mxu0 0
    %261 = vmatprep.subr.bf16.mxu0 0
    %262 = vmatpush1.bf16.msra.mxu0 0
    %263 = vmatprep.subr.bf16.mxu0 0
    %264 = vmatpush1.bf16.msra.mxu0 0
    %265 = vmatprep.subr.bf16.mxu0 0
    %266 = vmatpush1.bf16.msra.mxu0 0
    %267 = vmatprep.subr.bf16.mxu0 %v219
    %268 = vmatpush1.bf16.msra.mxu0 %v218
    %269 = vmatprep.subr.bf16.mxu0 %v211
    %270 = vmatpush1.bf16.msra.mxu0 %v210
    %271 = vmatprep.subr.bf16.mxu0 0
    %272 = vmatpush2.bf16.msra.mxu0 0
    %273 = vmatprep.subr.bf16.mxu0 0
    %274 = vmatpush2.bf16.msra.mxu0 0
    %275 = vmatprep.subr.bf16.mxu0 0
    %276 = vmatpush2.bf16.msra.mxu0 0
    %277 = vmatprep.subr.bf16.mxu0 0
    %278 = vmatpush2.bf16.msra.mxu0 0
    %279 = vmatprep.subr.bf16.mxu0 0
    %280 = vmatpush2.bf16.msra.mxu0 0
    %281 = vmatprep.subr.bf16.mxu0 0
    %282 = vmatpush2.bf16.msra.mxu0 0
    %283 = vmatprep.subr.bf16.mxu0 0
    %284 = vmatpush2.bf16.msra.mxu0 0
    %285 = vmatprep.subr.bf16.mxu0 0
    %286 = vmatpush2.bf16.msra.mxu0 0
    %287 = vmatprep.mubr.bf16.mxu0 0
    %288 = vmatmul.mubr.bf16.gmra.mxu0 %v244
    %v289 = vpop.f32.mrf.mxu0
    %v290 = vadd.f32 %v105, %v289
    %v291 = vpop.f32.mrf.mxu0
    %v292 = vadd.f32 %v109, %v291
    %v293 = vpop.f32.mrf.mxu0
    %v294 = vadd.f32 %v105, %v293
    %v295 = vpop.f32.mrf.mxu0
    %v296 = vadd.f32 %v109, %v295
    %297 = vmatprep.mubr.bf16.mxu0 0
    %298 = vmatmul.mubr.bf16.gmra.mxu0 %v247
    %v299 = vpop.f32.mrf.mxu0
    %v300 = vadd.f32 %v105, %v299
    %v301 = vpop.f32.mrf.mxu0
    %v302 = vadd.f32 %v109, %v301
    %v303 = vpop.f32.mrf.mxu0
    %v304 = vadd.f32 %v105, %v303
    %v305 = vpop.f32.mrf.mxu0
    %v306 = vadd.f32 %v109, %v305
    %307 = vmatprep.mubr.bf16.mxu0 0
    %308 = vmatmul.mubr.bf16.gmra.mxu0 %v250
    %v309 = vpop.f32.mrf.mxu0
    %v310 = vadd.f32 %v105, %v309
    %v311 = vpop.f32.mrf.mxu0
    %v312 = vadd.f32 %v109, %v311
    %v313 = vpop.f32.mrf.mxu0
    %v314 = vadd.f32 %v105, %v313
    %v315 = vpop.f32.mrf.mxu0
    %v316 = vadd.f32 %v109, %v315
    %317 = vmatprep.mubr.bf16.mxu0 0
    %318 = vmatmul.mubr.bf16.gmra.mxu0 %v253
    %v319 = vpop.f32.mrf.mxu0
    %v320 = vadd.f32 %v105, %v319
    %v321 = vpop.f32.mrf.mxu0
    %v322 = vadd.f32 %v109, %v321
    %v323 = vpop.f32.mrf.mxu0
    %v324 = vadd.f32 %v105, %v323
    %v325 = vpop.f32.mrf.mxu0
    %v326 = vadd.f32 %v109, %v325
    %327 = vdwg.mxu0
    %328 = vmatprep.subr.bf16.mxu0 0
    %329 = vmatpush1.bf16.msra.mxu0 0
    %330 = vmatprep.subr.bf16.mxu0 0
    %331 = vmatpush1.bf16.msra.mxu0 0
    %332 = vmatprep.subr.bf16.mxu0 0
    %333 = vmatpush1.bf16.msra.mxu0 0
    %334 = vmatprep.subr.bf16.mxu0 0
    %335 = vmatpush1.bf16.msra.mxu0 0
    %336 = vmatprep.subr.bf16.mxu0 0
    %337 = vmatpush1.bf16.msra.mxu0 0
    %338 = vmatprep.subr.bf16.mxu0 0
    %339 = vmatpush1.bf16.msra.mxu0 0
    %340 = vmatprep.subr.bf16.mxu0 %v221
    %341 = vmatpush1.bf16.msra.mxu0 %v220
    %342 = vmatprep.subr.bf16.mxu0 %v213
    %343 = vmatpush1.bf16.msra.mxu0 %v212
    %344 = vmatprep.subr.bf16.mxu0 0
    %345 = vmatpush2.bf16.msra.mxu0 0
    %346 = vmatprep.subr.bf16.mxu0 0
    %347 = vmatpush2.bf16.msra.mxu0 0
    %348 = vmatprep.subr.bf16.mxu0 0
    %349 = vmatpush2.bf16.msra.mxu0 0
    %350 = vmatprep.subr.bf16.mxu0 0
    %351 = vmatpush2.bf16.msra.mxu0 0
    %352 = vmatprep.subr.bf16.mxu0 0
    %353 = vmatpush2.bf16.msra.mxu0 0
    %354 = vmatprep.subr.bf16.mxu0 0
    %355 = vmatpush2.bf16.msra.mxu0 0
    %356 = vmatprep.subr.bf16.mxu0 0
    %357 = vmatpush2.bf16.msra.mxu0 0
    %358 = vmatprep.subr.bf16.mxu0 0
    %359 = vmatpush2.bf16.msra.mxu0 0
    %360 = vmatprep.mubr.bf16.mxu0 0
    %361 = vmatmul.mubr.bf16.gmra.mxu0 %v244
    %v362 = vpop.f32.mrf.mxu0
    %v363 = vadd.f32 %v113, %v362
    %v364 = vpop.f32.mrf.mxu0
    %v365 = vadd.f32 %v117, %v364
    %v366 = vpop.f32.mrf.mxu0
    %v367 = vadd.f32 %v113, %v366
    %v368 = vpop.f32.mrf.mxu0
    %v369 = vadd.f32 %v117, %v368
    %370 = vmatprep.mubr.bf16.mxu0 0
    %371 = vmatmul.mubr.bf16.gmra.mxu0 %v247
    %v372 = vpop.f32.mrf.mxu0
    %v373 = vadd.f32 %v113, %v372
    %v374 = vpop.f32.mrf.mxu0
    %v375 = vadd.f32 %v117, %v374
    %v376 = vpop.f32.mrf.mxu0
    %v377 = vadd.f32 %v113, %v376
    %v378 = vpop.f32.mrf.mxu0
    %v379 = vadd.f32 %v117, %v378
    %380 = vmatprep.mubr.bf16.mxu0 0
    %381 = vmatmul.mubr.bf16.gmra.mxu0 %v250
    %v382 = vpop.f32.mrf.mxu0
    %v383 = vadd.f32 %v113, %v382
    %v384 = vpop.f32.mrf.mxu0
    %v385 = vadd.f32 %v117, %v384
    %v386 = vpop.f32.mrf.mxu0
    %v387 = vadd.f32 %v113, %v386
    %v388 = vpop.f32.mrf.mxu0
    %v389 = vadd.f32 %v117, %v388
    %390 = vmatprep.mubr.bf16.mxu0 0
    %391 = vmatmul.mubr.bf16.gmra.mxu0 %v253
    %v392 = vpop.f32.mrf.mxu0
    %v393 = vadd.f32 %v113, %v392
    %v394 = vpop.f32.mrf.mxu0
    %v395 = vadd.f32 %v117, %v394
    %v396 = vpop.f32.mrf.mxu0
    %v397 = vadd.f32 %v113, %v396
    %v398 = vpop.f32.mrf.mxu0
    %v399 = vadd.f32 %v117, %v398
    %400 = vdwg.mxu0
    %401 = vmatprep.subr.bf16.mxu0 0
    %402 = vmatpush1.bf16.msra.mxu0 0
    %403 = vmatprep.subr.bf16.mxu0 0
    %404 = vmatpush1.bf16.msra.mxu0 0
    %405 = vmatprep.subr.bf16.mxu0 0
    %406 = vmatpush1.bf16.msra.mxu0 0
    %407 = vmatprep.subr.bf16.mxu0 0
    %408 = vmatpush1.bf16.msra.mxu0 0
    %409 = vmatprep.subr.bf16.mxu0 0
    %410 = vmatpush1.bf16.msra.mxu0 0
    %411 = vmatprep.subr.bf16.mxu0 0
    %412 = vmatpush1.bf16.msra.mxu0 0
    %413 = vmatprep.subr.bf16.mxu0 %v223
    %414 = vmatpush1.bf16.msra.mxu0 %v222
    %415 = vmatprep.subr.bf16.mxu0 %v215
    %416 = vmatpush1.bf16.msra.mxu0 %v214
    %417 = vmatprep.subr.bf16.mxu0 0
    %418 = vmatpush2.bf16.msra.mxu0 0
    %419 = vmatprep.subr.bf16.mxu0 0
    %420 = vmatpush2.bf16.msra.mxu0 0
    %421 = vmatprep.subr.bf16.mxu0 0
    %422 = vmatpush2.bf16.msra.mxu0 0
    %423 = vmatprep.subr.bf16.mxu0 0
    %424 = vmatpush2.bf16.msra.mxu0 0
    %425 = vmatprep.subr.bf16.mxu0 0
    %426 = vmatpush2.bf16.msra.mxu0 0
    %427 = vmatprep.subr.bf16.mxu0 0
    %428 = vmatpush2.bf16.msra.mxu0 0
    %429 = vmatprep.subr.bf16.mxu0 0
    %430 = vmatpush2.bf16.msra.mxu0 0
    %431 = vmatprep.subr.bf16.mxu0 0
    %432 = vmatpush2.bf16.msra.mxu0 0
    %433 = vmatprep.mubr.bf16.mxu0 0
    %434 = vmatmul.mubr.bf16.gmra.mxu0 %v244
    %v435 = vpop.f32.mrf.mxu0
    %v436 = vadd.f32 %v121, %v435
    %v437 = vpop.f32.mrf.mxu0
    %v438 = vadd.f32 %v125, %v437
    %v439 = vpop.f32.mrf.mxu0
    %v440 = vadd.f32 %v121, %v439
    %v441 = vpop.f32.mrf.mxu0
    %v442 = vadd.f32 %v125, %v441
    %443 = vmatprep.mubr.bf16.mxu0 0
    %444 = vmatmul.mubr.bf16.gmra.mxu0 %v247
    %v445 = vpop.f32.mrf.mxu0
    %v446 = vadd.f32 %v121, %v445
    %v447 = vpop.f32.mrf.mxu0
    %v448 = vadd.f32 %v125, %v447
    %v449 = vpop.f32.mrf.mxu0
    %v450 = vadd.f32 %v121, %v449
    %v451 = vpop.f32.mrf.mxu0
    %v452 = vadd.f32 %v125, %v451
    %453 = vmatprep.mubr.bf16.mxu0 0
    %454 = vmatmul.mubr.bf16.gmra.mxu0 %v250
    %v455 = vpop.f32.mrf.mxu0
    %v456 = vadd.f32 %v121, %v455
    %v457 = vpop.f32.mrf.mxu0
    %v458 = vadd.f32 %v125, %v457
    %v459 = vpop.f32.mrf.mxu0
    %v460 = vadd.f32 %v121, %v459
    %v461 = vpop.f32.mrf.mxu0
    %v462 = vadd.f32 %v125, %v461
    %463 = vmatprep.mubr.bf16.mxu0 0
    %464 = vmatmul.mubr.bf16.gmra.mxu0 %v253
    %v465 = vpop.f32.mrf.mxu0
    %v466 = vadd.f32 %v121, %v465
    %v467 = vpop.f32.mrf.mxu0
    %v468 = vadd.f32 %v125, %v467
    %v469 = vpop.f32.mrf.mxu0
    %v470 = vadd.f32 %v121, %v469
    %v471 = vpop.f32.mrf.mxu0
    %v472 = vadd.f32 %v125, %v471
    %473 = vdwg.mxu0
    %474 = vmatprep.subr.bf16.mxu0 0
    %475 = vmatpush1.bf16.msra.mxu0 0
    %476 = vmatprep.subr.bf16.mxu0 0
    %477 = vmatpush1.bf16.msra.mxu0 0
    %478 = vmatprep.subr.bf16.mxu0 0
    %479 = vmatpush1.bf16.msra.mxu0 0
    %480 = vmatprep.subr.bf16.mxu0 0
    %481 = vmatpush1.bf16.msra.mxu0 0
    %482 = vmatprep.subr.bf16.mxu0 0
    %483 = vmatpush1.bf16.msra.mxu0 0
    %484 = vmatprep.subr.bf16.mxu0 0
    %485 = vmatpush1.bf16.msra.mxu0 0
    %486 = vmatprep.subr.bf16.mxu0 %v225
    %487 = vmatpush1.bf16.msra.mxu0 %v224
    %488 = vmatprep.subr.bf16.mxu0 %v217
    %489 = vmatpush1.bf16.msra.mxu0 %v216
    %490 = vmatprep.subr.bf16.mxu0 0
    %491 = vmatpush2.bf16.msra.mxu0 0
    %492 = vmatprep.subr.bf16.mxu0 0
    %493 = vmatpush2.bf16.msra.mxu0 0
    %494 = vmatprep.subr.bf16.mxu0 0
    %495 = vmatpush2.bf16.msra.mxu0 0
    %496 = vmatprep.subr.bf16.mxu0 0
    %497 = vmatpush2.bf16.msra.mxu0 0
    %498 = vmatprep.subr.bf16.mxu0 0
    %499 = vmatpush2.bf16.msra.mxu0 0
    %500 = vmatprep.subr.bf16.mxu0 0
    %501 = vmatpush2.bf16.msra.mxu0 0
    %502 = vmatprep.subr.bf16.mxu0 0
    %503 = vmatpush2.bf16.msra.mxu0 0
    %504 = vmatprep.subr.bf16.mxu0 0
    %505 = vmatpush2.bf16.msra.mxu0 0
    %506 = vmatprep.mubr.bf16.mxu0 0
    %507 = vmatmul.mubr.bf16.gmra.mxu0 %v244
    %v508 = vpop.f32.mrf.mxu0
    %v509 = vadd.f32 %v129, %v508
    %v510 = vpop.f32.mrf.mxu0
    %v511 = vadd.f32 %v133, %v510
    %v512 = vpop.f32.mrf.mxu0
    %v513 = vadd.f32 %v129, %v512
    %v514 = vpop.f32.mrf.mxu0
    %v515 = vadd.f32 %v133, %v514
    %516 = vmatprep.mubr.bf16.mxu0 0
    %517 = vmatmul.mubr.bf16.gmra.mxu0 %v247
    %v518 = vpop.f32.mrf.mxu0
    %v519 = vadd.f32 %v129, %v518
    %v520 = vpop.f32.mrf.mxu0
    %v521 = vadd.f32 %v133, %v520
    %v522 = vpop.f32.mrf.mxu0
    %v523 = vadd.f32 %v129, %v522
    %v524 = vpop.f32.mrf.mxu0
    %v525 = vadd.f32 %v133, %v524
    %526 = vmatprep.mubr.bf16.mxu0 0
    %527 = vmatmul.mubr.bf16.gmra.mxu0 %v250
    %v528 = vpop.f32.mrf.mxu0
    %v529 = vadd.f32 %v129, %v528
    %v530 = vpop.f32.mrf.mxu0
    %v531 = vadd.f32 %v133, %v530
    %v532 = vpop.f32.mrf.mxu0
    %v533 = vadd.f32 %v129, %v532
    %v534 = vpop.f32.mrf.mxu0
    %v535 = vadd.f32 %v133, %v534
    %536 = vmatprep.mubr.bf16.mxu0 0
    %537 = vmatmul.mubr.bf16.gmra.mxu0 %v253
    %v538 = vpop.f32.mrf.mxu0
    %v539 = vadd.f32 %v129, %v538
    %v540 = vpop.f32.mrf.mxu0
    %v541 = vadd.f32 %v133, %v540
    %v542 = vpop.f32.mrf.mxu0
    %v543 = vadd.f32 %v129, %v542
    %v544 = vpop.f32.mrf.mxu0
    %v545 = vadd.f32 %v133, %v544
    %546 = vdwg.mxu0
    %547 = vst [vmem:[#allocation2] sm:$0xff] %v290
    %548 = vst [vmem:[#allocation2 + $0x8] sm:$0xff] %v292
    %549 = vst [vmem:[#allocation2 + $0x10] sm:$0xff] %v363
    %550 = vst [vmem:[#allocation2 + $0x18] sm:$0xff] %v365
    %551 = vst [vmem:[#allocation2 + $0x20] sm:$0xff] %v436
    %552 = vst [vmem:[#allocation2 + $0x28] sm:$0xff] %v438
    %553 = vst [vmem:[#allocation2 + $0x30] sm:$0xff] %v509
    %554 = vst [vmem:[#allocation2 + $0x38] sm:$0xff] %v511
    %555 = vst [vmem:[#allocation2 + $0x40] sm:$0xff] %v294
    %556 = vst [vmem:[#allocation2 + $0x48] sm:$0xff] %v296
    %557 = vst [vmem:[#allocation2 + $0x50] sm:$0xff] %v367
    %558 = vst [vmem:[#allocation2 + $0x58] sm:$0xff] %v369
    %559 = vst [vmem:[#allocation2 + $0x60] sm:$0xff] %v440
    %560 = vst [vmem:[#allocation2 + $0x68] sm:$0xff] %v442
    %561 = vst [vmem:[#allocation2 + $0x70] sm:$0xff] %v513
    %562 = vst [vmem:[#allocation2 + $0x78] sm:$0xff] %v515
    %563 = vst [vmem:[#allocation2 + $0x80] sm:$0xff] %v300
    %564 = vst [vmem:[#allocation2 + $0x88] sm:$0xff] %v302
    %565 = vst [vmem:[#allocation2 + $0x90] sm:$0xff] %v373
    %566 = vst [vmem:[#allocation2 + $0x98] sm:$0xff] %v375
    %567 = vst [vmem:[#allocation2 + $0xa0] sm:$0xff] %v446
    %568 = vst [vmem:[#allocation2 + $0xa8] sm:$0xff] %v448
    %569 = vst [vmem:[#allocation2 + $0xb0] sm:$0xff] %v519
    %570 = vst [vmem:[#allocation2 + $0xb8] sm:$0xff] %v521
    %571 = vst [vmem:[#allocation2 + $0xc0] sm:$0xff] %v304
    %572 = vst [vmem:[#allocation2 + $0xc8] sm:$0xff] %v306
    %573 = vst [vmem:[#allocation2 + $0xd0] sm:$0xff] %v377
    %574 = vst [vmem:[#allocation2 + $0xd8] sm:$0xff] %v379
    %575 = vst [vmem:[#allocation2 + $0xe0] sm:$0xff] %v450
    %576 = vst [vmem:[#allocation2 + $0xe8] sm:$0xff] %v452
    %577 = vst [vmem:[#allocation2 + $0xf0] sm:$0xff] %v523
    %578 = vst [vmem:[#allocation2 + $0xf8] sm:$0xff] %v525
    %579 = vst [vmem:[#allocation2 + $0x100] sm:$0xff] %v310
    %580 = vst [vmem:[#allocation2 + $0x108] sm:$0xff] %v312
    %581 = vst [vmem:[#allocation2 + $0x110] sm:$0xff] %v383
    %582 = vst [vmem:[#allocation2 + $0x118] sm:$0xff] %v385
    %583 = vst [vmem:[#allocation2 + $0x120] sm:$0xff] %v456
    %584 = vst [vmem:[#allocation2 + $0x128] sm:$0xff] %v458
    %585 = vst [vmem:[#allocation2 + $0x130] sm:$0xff] %v529
    %586 = vst [vmem:[#allocation2 + $0x138] sm:$0xff] %v531
    %587 = vst [vmem:[#allocation2 + $0x140] sm:$0xff] %v314
    %588 = vst [vmem:[#allocation2 + $0x148] sm:$0xff] %v316
    %589 = vst [vmem:[#allocation2 + $0x150] sm:$0xff] %v387
    %590 = vst [vmem:[#allocation2 + $0x158] sm:$0xff] %v389
    %591 = vst [vmem:[#allocation2 + $0x160] sm:$0xff] %v460
    %592 = vst [vmem:[#allocation2 + $0x168] sm:$0xff] %v462
    %593 = vst [vmem:[#allocation2 + $0x170] sm:$0xff] %v533
    %594 = vst [vmem:[#allocation2 + $0x178] sm:$0xff] %v535
    %595 = vst [vmem:[#allocation2 + $0x180] sm:$0xff] %v320
    %596 = vst [vmem:[#allocation2 + $0x188] sm:$0xff] %v322
    %597 = vst [vmem:[#allocation2 + $0x190] sm:$0xff] %v393
    %598 = vst [vmem:[#allocation2 + $0x198] sm:$0xff] %v395
    %599 = vst [vmem:[#allocation2 + $0x1a0] sm:$0xff] %v466
    %600 = vst [vmem:[#allocation2 + $0x1a8] sm:$0xff] %v468
    %601 = vst [vmem:[#allocation2 + $0x1b0] sm:$0xff] %v539
    %602 = vst [vmem:[#allocation2 + $0x1b8] sm:$0xff] %v541
    %603 = vst [vmem:[#allocation2 + $0x1c0] sm:$0xff] %v324
    %604 = vst [vmem:[#allocation2 + $0x1c8] sm:$0xff] %v326
    %605 = vst [vmem:[#allocation2 + $0x1d0] sm:$0xff] %v397
    %606 = vst [vmem:[#allocation2 + $0x1d8] sm:$0xff] %v399
    %607 = vst [vmem:[#allocation2 + $0x1e0] sm:$0xff] %v470
    %608 = vst [vmem:[#allocation2 + $0x1e8] sm:$0xff] %v472
    %609 = vst [vmem:[#allocation2 + $0x1f0] sm:$0xff] %v543
    %610 = vst [vmem:[#allocation2 + $0x1f8] sm:$0xff] %v545
    %s611 = smul.u32 4, 32
    %s612 = smul.u32 %s611, 8
    %s613 = sshll.u32 %s612, 4
    %614 = dma.done [#allocation7], %s613
    %v615 = vld [vmem:[#allocation3] sm:$0xff]
    %v616 = vld [vmem:[#allocation3 + $0x8] sm:$0xff]
    %v617 = vld [vmem:[#allocation3 + $0x10] sm:$0xff]
    %v618 = vld [vmem:[#allocation3 + $0x18] sm:$0xff]
    %v619 = vld [vmem:[#allocation3 + $0x20] sm:$0xff]
    %v620 = vld [vmem:[#allocation3 + $0x28] sm:$0xff]
    %v621 = vld [vmem:[#allocation3 + $0x30] sm:$0xff]
    %v622 = vld [vmem:[#allocation3 + $0x38] sm:$0xff]
    %v623 = vld [vmem:[#allocation3 + $0x40] sm:$0xff]
    %v624 = vld [vmem:[#allocation3 + $0x48] sm:$0xff]
    %v625 = vld [vmem:[#allocation3 + $0x50] sm:$0xff]
    %v626 = vld [vmem:[#allocation3 + $0x58] sm:$0xff]
    %v627 = vld [vmem:[#allocation3 + $0x60] sm:$0xff]
    %v628 = vld [vmem:[#allocation3 + $0x68] sm:$0xff]
    %v629 = vld [vmem:[#allocation3 + $0x70] sm:$0xff]
    %v630 = vld [vmem:[#allocation3 + $0x78] sm:$0xff]
    %v631 = vld [vmem:[#allocation3 + $0x80] sm:$0xff]
    %v632 = vld [vmem:[#allocation3 + $0x88] sm:$0xff]
    %v633 = vld [vmem:[#allocation3 + $0x90] sm:$0xff]
    %v634 = vld [vmem:[#allocation3 + $0x98] sm:$0xff]
    %v635 = vld [vmem:[#allocation3 + $0xa0] sm:$0xff]
    %v636 = vld [vmem:[#allocation3 + $0xa8] sm:$0xff]
    %v637 = vld [vmem:[#allocation3 + $0xb0] sm:$0xff]
    %v638 = vld [vmem:[#allocation3 + $0xb8] sm:$0xff]
    %v639 = vld [vmem:[#allocation3 + $0xc0] sm:$0xff]
    %v640 = vld [vmem:[#allocation3 + $0xc8] sm:$0xff]
    %v641 = vld [vmem:[#allocation3 + $0xd0] sm:$0xff]
    %v642 = vld [vmem:[#allocation3 + $0xd8] sm:$0xff]
    %v643 = vld [vmem:[#allocation3 + $0xe0] sm:$0xff]
    %v644 = vld [vmem:[#allocation3 + $0xe8] sm:$0xff]
    %v645 = vld [vmem:[#allocation3 + $0xf0] sm:$0xff]
    %v646 = vld [vmem:[#allocation3 + $0xf8] sm:$0xff]
    %v647 = vld [vmem:[#allocation3 + $0x100] sm:$0xff]
    %v648 = vld [vmem:[#allocation3 + $0x108] sm:$0xff]
    %v649 = vld [vmem:[#allocation3 + $0x110] sm:$0xff]
    %v650 = vld [vmem:[#allocation3 + $0x118] sm:$0xff]
    %v651 = vld [vmem:[#allocation3 + $0x120] sm:$0xff]
    %v652 = vld [vmem:[#allocation3 + $0x128] sm:$0xff]
    %v653 = vld [vmem:[#allocation3 + $0x130] sm:$0xff]
    %v654 = vld [vmem:[#allocation3 + $0x138] sm:$0xff]
    %v655 = vld [vmem:[#allocation3 + $0x140] sm:$0xff]
    %v656 = vld [vmem:[#allocation3 + $0x148] sm:$0xff]
    %v657 = vld [vmem:[#allocation3 + $0x150] sm:$0xff]
    %v658 = vld [vmem:[#allocation3 + $0x158] sm:$0xff]
    %v659 = vld [vmem:[#allocation3 + $0x160] sm:$0xff]
    %v660 = vld [vmem:[#allocation3 + $0x168] sm:$0xff]
    %v661 = vld [vmem:[#allocation3 + $0x170] sm:$0xff]
    %v662 = vld [vmem:[#allocation3 + $0x178] sm:$0xff]
    %v663 = vld [vmem:[#allocation3 + $0x180] sm:$0xff]
    %v664 = vld [vmem:[#allocation3 + $0x188] sm:$0xff]
    %v665 = vld [vmem:[#allocation3 + $0x190] sm:$0xff]
    %v666 = vld [vmem:[#allocation3 + $0x198] sm:$0xff]
    %v667 = vld [vmem:[#allocation3 + $0x1a0] sm:$0xff]
    %v668 = vld [vmem:[#allocation3 + $0x1a8] sm:$0xff]
    %v669 = vld [vmem:[#allocation3 + $0x1b0] sm:$0xff]
    %v670 = vld [vmem:[#allocation3 + $0x1b8] sm:$0xff]
    %v671 = vld [vmem:[#allocation3 + $0x1c0] sm:$0xff]
    %v672 = vld [vmem:[#allocation3 + $0x1c8] sm:$0xff]
    %v673 = vld [vmem:[#allocation3 + $0x1d0] sm:$0xff]
    %v674 = vld [vmem:[#allocation3 + $0x1d8] sm:$0xff]
    %v675 = vld [vmem:[#allocation3 + $0x1e0] sm:$0xff]
    %v676 = vld [vmem:[#allocation3 + $0x1e8] sm:$0xff]
    %v677 = vld [vmem:[#allocation3 + $0x1f0] sm:$0xff]
    %v678 = vld [vmem:[#allocation3 + $0x1f8] sm:$0xff]
    %v679 = vld [vmem:[#allocation3 + $0x200] sm:$0xff]
    %v680 = vld [vmem:[#allocation3 + $0x208] sm:$0xff]
    %v681 = vld [vmem:[#allocation3 + $0x210] sm:$0xff]
    %v682 = vld [vmem:[#allocation3 + $0x218] sm:$0xff]
    %v683 = vld [vmem:[#allocation3 + $0x220] sm:$0xff]
    %v684 = vld [vmem:[#allocation3 + $0x228] sm:$0xff]
    %v685 = vld [vmem:[#allocation3 + $0x230] sm:$0xff]
    %v686 = vld [vmem:[#allocation3 + $0x238] sm:$0xff]
    %v687 = vld [vmem:[#allocation3 + $0x240] sm:$0xff]
    %v688 = vld [vmem:[#allocation3 + $0x248] sm:$0xff]
    %v689 = vld [vmem:[#allocation3 + $0x250] sm:$0xff]
    %v690 = vld [vmem:[#allocation3 + $0x258] sm:$0xff]
    %v691 = vld [vmem:[#allocation3 + $0x260] sm:$0xff]
    %v692 = vld [vmem:[#allocation3 + $0x268] sm:$0xff]
    %v693 = vld [vmem:[#allocation3 + $0x270] sm:$0xff]
    %v694 = vld [vmem:[#allocation3 + $0x278] sm:$0xff]
    %v695 = vld [vmem:[#allocation3 + $0x280] sm:$0xff]
    %v696 = vld [vmem:[#allocation3 + $0x288] sm:$0xff]
    %v697 = vld [vmem:[#allocation3 + $0x290] sm:$0xff]
    %v698 = vld [vmem:[#allocation3 + $0x298] sm:$0xff]
    %v699 = vld [vmem:[#allocation3 + $0x2a0] sm:$0xff]
    %v700 = vld [vmem:[#allocation3 + $0x2a8] sm:$0xff]
    %v701 = vld [vmem:[#allocation3 + $0x2b0] sm:$0xff]
    %v702 = vld [vmem:[#allocation3 + $0x2b8] sm:$0xff]
    %v703 = vld [vmem:[#allocation3 + $0x2c0] sm:$0xff]
    %v704 = vld [vmem:[#allocation3 + $0x2c8] sm:$0xff]
    %v705 = vld [vmem:[#allocation3 + $0x2d0] sm:$0xff]
    %v706 = vld [vmem:[#allocation3 + $0x2d8] sm:$0xff]
    %v707 = vld [vmem:[#allocation3 + $0x2e0] sm:$0xff]
    %v708 = vld [vmem:[#allocation3 + $0x2e8] sm:$0xff]
    %v709 = vld [vmem:[#allocation3 + $0x2f0] sm:$0xff]
    %v710 = vld [vmem:[#allocation3 + $0x2f8] sm:$0xff]
    %v711 = vld [vmem:[#allocation3 + $0x300] sm:$0xff]
    %v712 = vld [vmem:[#allocation3 + $0x308] sm:$0xff]
    %v713 = vld [vmem:[#allocation3 + $0x310] sm:$0xff]
    %v714 = vld [vmem:[#allocation3 + $0x318] sm:$0xff]
    %v715 = vld [vmem:[#allocation3 + $0x320] sm:$0xff]
    %v716 = vld [vmem:[#allocation3 + $0x328] sm:$0xff]
    %v717 = vld [vmem:[#allocation3 + $0x330] sm:$0xff]
    %v718 = vld [vmem:[#allocation3 + $0x338] sm:$0xff]
    %v719 = vld [vmem:[#allocation3 + $0x340] sm:$0xff]
    %v720 = vld [vmem:[#allocation3 + $0x348] sm:$0xff]
    %v721 = vld [vmem:[#allocation3 + $0x350] sm:$0xff]
    %v722 = vld [vmem:[#allocation3 + $0x358] sm:$0xff]
    %v723 = vld [vmem:[#allocation3 + $0x360] sm:$0xff]
    %v724 = vld [vmem:[#allocation3 + $0x368] sm:$0xff]
    %v725 = vld [vmem:[#allocation3 + $0x370] sm:$0xff]
    %v726 = vld [vmem:[#allocation3 + $0x378] sm:$0xff]
    %v727 = vld [vmem:[#allocation3 + $0x380] sm:$0xff]
    %v728 = vld [vmem:[#allocation3 + $0x388] sm:$0xff]
    %v729 = vld [vmem:[#allocation3 + $0x390] sm:$0xff]
    %v730 = vld [vmem:[#allocation3 + $0x398] sm:$0xff]
    %v731 = vld [vmem:[#allocation3 + $0x3a0] sm:$0xff]
    %v732 = vld [vmem:[#allocation3 + $0x3a8] sm:$0xff]
    %v733 = vld [vmem:[#allocation3 + $0x3b0] sm:$0xff]
    %v734 = vld [vmem:[#allocation3 + $0x3b8] sm:$0xff]
    %v735 = vld [vmem:[#allocation3 + $0x3c0] sm:$0xff]
    %v736 = vld [vmem:[#allocation3 + $0x3c8] sm:$0xff]
    %v737 = vld [vmem:[#allocation3 + $0x3d0] sm:$0xff]
    %v738 = vld [vmem:[#allocation3 + $0x3d8] sm:$0xff]
    %v739 = vld [vmem:[#allocation3 + $0x3e0] sm:$0xff]
    %v740 = vld [vmem:[#allocation3 + $0x3e8] sm:$0xff]
    %v741 = vld [vmem:[#allocation3 + $0x3f0] sm:$0xff]
    %v742 = vld [vmem:[#allocation3 + $0x3f8] sm:$0xff]
    %v743 = vld [vmem:[#allocation2] sm:$0xff]
    %v744 = vld [vmem:[#allocation2 + $0x8] sm:$0xff]
    %v745 = vld [vmem:[#allocation2 + $0x10] sm:$0xff]
    %v746 = vld [vmem:[#allocation2 + $0x18] sm:$0xff]
    %v747 = vld [vmem:[#allocation2 + $0x20] sm:$0xff]
    %v748 = vld [vmem:[#allocation2 + $0x28] sm:$0xff]
    %v749 = vld [vmem:[#allocation2 + $0x30] sm:$0xff]
    %v750 = vld [vmem:[#allocation2 + $0x38] sm:$0xff]
    %v879 = vunpack.c.l.b16 %v615
    %v880 = vunpack.c.h.b16 %v615
    %v881 = vunpack.c.l.b16 %v616
    %v882 = vunpack.c.h.b16 %v616
    %v883 = vunpack.c.l.b16 %v617
    %v884 = vunpack.c.h.b16 %v617
    %v885 = vunpack.c.l.b16 %v618
    %v886 = vunpack.c.h.b16 %v618
    %v887 = vunpack.c.l.b16 %v619
    %v888 = vunpack.c.h.b16 %v619
    %v889 = vunpack.c.l.b16 %v620
    %v890 = vunpack.c.h.b16 %v620
    %v891 = vunpack.c.l.b16 %v621
    %v892 = vunpack.c.h.b16 %v621
    %v893 = vunpack.c.l.b16 %v622
    %v894 = vunpack.c.h.b16 %v622
    %v895 = vunpack.c.l.b16 %v623
    %v896 = vunpack.c.h.b16 %v623
    %v897 = vunpack.c.l.b16 %v624
    %v898 = vunpack.c.h.b16 %v624
    %v899 = vunpack.c.l.b16 %v625
    %v900 = vunpack.c.h.b16 %v625
    %v901 = vunpack.c.l.b16 %v626
    %v902 = vunpack.c.h.b16 %v626
    %v903 = vunpack.c.l.b16 %v627
    %v904 = vunpack.c.h.b16 %v627
    %v905 = vunpack.c.l.b16 %v628
    %v906 = vunpack.c.h.b16 %v628
    %v907 = vunpack.c.l.b16 %v629
    %v908 = vunpack.c.h.b16 %v629
    %v909 = vunpack.c.l.b16 %v630
    %v910 = vunpack.c.h.b16 %v630
    %v911 = vunpack.c.l.b16 %v631
    %v912 = vunpack.c.h.b16 %v631
    %v913 = vunpack.c.l.b16 %v632
    %v914 = vunpack.c.h.b16 %v632
    %v915 = vunpack.c.l.b16 %v633
    %v916 = vunpack.c.h.b16 %v633
    %v917 = vunpack.c.l.b16 %v634
    %v918 = vunpack.c.h.b16 %v634
    %v919 = vunpack.c.l.b16 %v635
    %v920 = vunpack.c.h.b16 %v635
    %v921 = vunpack.c.l.b16 %v636
    %v922 = vunpack.c.h.b16 %v636
    %v923 = vunpack.c.l.b16 %v637
    %v924 = vunpack.c.h.b16 %v637
    %v925 = vunpack.c.l.b16 %v638
    %v926 = vunpack.c.h.b16 %v638
    %v927 = vunpack.c.l.b16 %v639
    %v928 = vunpack.c.h.b16 %v639
    %v929 = vunpack.c.l.b16 %v640
    %v930 = vunpack.c.h.b16 %v640
    %v931 = vunpack.c.l.b16 %v641
    %v932 = vunpack.c.h.b16 %v641
    %v933 = vunpack.c.l.b16 %v642
    %v934 = vunpack.c.h.b16 %v642
    %v935 = vunpack.c.l.b16 %v643
    %v936 = vunpack.c.h.b16 %v643
    %v937 = vunpack.c.l.b16 %v644
    %v938 = vunpack.c.h.b16 %v644
    %v939 = vunpack.c.l.b16 %v645
    %v940 = vunpack.c.h.b16 %v645
    %v941 = vunpack.c.l.b16 %v646
    %v942 = vunpack.c.h.b16 %v646
    %v943 = vunpack.c.l.b16 %v647
    %v944 = vunpack.c.h.b16 %v647
    %v945 = vunpack.c.l.b16 %v648
    %v946 = vunpack.c.h.b16 %v648
    %v947 = vunpack.c.l.b16 %v649
    %v948 = vunpack.c.h.b16 %v649
    %v949 = vunpack.c.l.b16 %v650
    %v950 = vunpack.c.h.b16 %v650
    %v951 = vunpack.c.l.b16 %v651
    %v952 = vunpack.c.h.b16 %v651
    %v953 = vunpack.c.l.b16 %v652
    %v954 = vunpack.c.h.b16 %v652
    %v955 = vunpack.c.l.b16 %v653
    %v956 = vunpack.c.h.b16 %v653
    %v957 = vunpack.c.l.b16 %v654
    %v958 = vunpack.c.h.b16 %v654
    %v959 = vunpack.c.l.b16 %v655
    %v960 = vunpack.c.h.b16 %v655
    %v961 = vunpack.c.l.b16 %v656
    %v962 = vunpack.c.h.b16 %v656
    %v963 = vunpack.c.l.b16 %v657
    %v964 = vunpack.c.h.b16 %v657
    %v965 = vunpack.c.l.b16 %v658
    %v966 = vunpack.c.h.b16 %v658
    %v967 = vunpack.c.l.b16 %v659
    %v968 = vunpack.c.h.b16 %v659
    %v969 = vunpack.c.l.b16 %v660
    %v970 = vunpack.c.h.b16 %v660
    %v971 = vunpack.c.l.b16 %v661
    %v972 = vunpack.c.h.b16 %v661
    %v973 = vunpack.c.l.b16 %v662
    %v974 = vunpack.c.h.b16 %v662
    %v975 = vunpack.c.l.b16 %v663
    %v976 = vunpack.c.h.b16 %v663
    %v977 = vunpack.c.l.b16 %v664
    %v978 = vunpack.c.h.b16 %v664
    %v979 = vunpack.c.l.b16 %v665
    %v980 = vunpack.c.h.b16 %v665
    %v981 = vunpack.c.l.b16 %v666
    %v982 = vunpack.c.h.b16 %v666
    %v983 = vunpack.c.l.b16 %v667
    %v984 = vunpack.c.h.b16 %v667
    %v985 = vunpack.c.l.b16 %v668
    %v986 = vunpack.c.h.b16 %v668
    %v987 = vunpack.c.l.b16 %v669
    %v988 = vunpack.c.h.b16 %v669
    %v989 = vunpack.c.l.b16 %v670
    %v990 = vunpack.c.h.b16 %v670
    %v991 = vunpack.c.l.b16 %v671
    %v992 = vunpack.c.h.b16 %v671
    %v993 = vunpack.c.l.b16 %v672
    %v994 = vunpack.c.h.b16 %v672
    %v995 = vunpack.c.l.b16 %v673
    %v996 = vunpack.c.h.b16 %v673
    %v997 = vunpack.c.l.b16 %v674
    %v998 = vunpack.c.h.b16 %v674
    %v999 = vunpack.c.l.b16 %v675
    %v1000 = vunpack.c.h.b16 %v675
    %v1001 = vunpack.c.l.b16 %v676
    %v1002 = vunpack.c.h.b16 %v676
    %v1003 = vunpack.c.l.b16 %v677
    %v1004 = vunpack.c.h.b16 %v677
    %v1005 = vunpack.c.l.b16 %v678
    %v1006 = vunpack.c.h.b16 %v678
    %v1007 = vunpack.c.l.b16 %v679
    %v1008 = vunpack.c.h.b16 %v679
    %v1009 = vunpack.c.l.b16 %v680
    %v1010 = vunpack.c.h.b16 %v680
    %v1011 = vunpack.c.l.b16 %v681
    %v1012 = vunpack.c.h.b16 %v681
    %v1013 = vunpack.c.l.b16 %v682
    %v1014 = vunpack.c.h.b16 %v682
    %v1015 = vunpack.c.l.b16 %v683
    %v1016 = vunpack.c.h.b16 %v683
    %v1017 = vunpack.c.l.b16 %v684
    %v1018 = vunpack.c.h.b16 %v684
    %v1019 = vunpack.c.l.b16 %v685
    %v1020 = vunpack.c.h.b16 %v685
    %v1021 = vunpack.c.l.b16 %v686
    %v1022 = vunpack.c.h.b16 %v686
    %v1023 = vunpack.c.l.b16 %v687
    %v1024 = vunpack.c.h.b16 %v687
    %v1025 = vunpack.c.l.b16 %v688
    %v1026 = vunpack.c.h.b16 %v688
    %v1027 = vunpack.c.l.b16 %v689
    %v1028 = vunpack.c.h.b16 %v689
    %v1029 = vunpack.c.l.b16 %v690
    %v1030 = vunpack.c.h.b16 %v690
    %v1031 = vunpack.c.l.b16 %v691
    %v1032 = vunpack.c.h.b16 %v691
    %v1033 = vunpack.c.l.b16 %v692
    %v1034 = vunpack.c.h.b16 %v692
    %v1035 = vunpack.c.l.b16 %v693
    %v1036 = vunpack.c.h.b16 %v693
    %v1037 = vunpack.c.l.b16 %v694
    %v1038 = vunpack.c.h.b16 %v694
    %v1039 = vunpack.c.l.b16 %v695
    %v1040 = vunpack.c.h.b16 %v695
    %v1041 = vunpack.c.l.b16 %v696
    %v1042 = vunpack.c.h.b16 %v696
    %v1043 = vunpack.c.l.b16 %v697
    %v1044 = vunpack.c.h.b16 %v697
    %v1045 = vunpack.c.l.b16 %v698
    %v1046 = vunpack.c.h.b16 %v698
    %v1047 = vunpack.c.l.b16 %v699
    %v1048 = vunpack.c.h.b16 %v699
    %v1049 = vunpack.c.l.b16 %v700
    %v1050 = vunpack.c.h.b16 %v700
    %v1051 = vunpack.c.l.b16 %v701
    %v1052 = vunpack.c.h.b16 %v701
    %v1053 = vunpack.c.l.b16 %v702
    %v1054 = vunpack.c.h.b16 %v702
    %v1055 = vunpack.c.l.b16 %v703
    %v1056 = vunpack.c.h.b16 %v703
    %v1057 = vunpack.c.l.b16 %v704
    %v1058 = vunpack.c.h.b16 %v704
    %v1059 = vunpack.c.l.b16 %v705
    %v1060 = vunpack.c.h.b16 %v705
    %v1061 = vunpack.c.l.b16 %v706
    %v1062 = vunpack.c.h.b16 %v706
    %v1063 = vunpack.c.l.b16 %v707
    %v1064 = vunpack.c.h.b16 %v707
    %v1065 = vunpack.c.l.b16 %v708
    %v1066 = vunpack.c.h.b16 %v708
    %v1067 = vunpack.c.l.b16 %v709
    %v1068 = vunpack.c.h.b16 %v709
    %v1069 = vunpack.c.l.b16 %v710
    %v1070 = vunpack.c.h.b16 %v710
    %v1071 = vunpack.c.l.b16 %v711
    %v1072 = vunpack.c.h.b16 %v711
    %v1073 = vunpack.c.l.b16 %v712
    %v1074 = vunpack.c.h.b16 %v712
    %v1075 = vunpack.c.l.b16 %v713
    %v1076 = vunpack.c.h.b16 %v713
    %v1077 = vunpack.c.l.b16 %v714
    %v1078 = vunpack.c.h.b16 %v714
    %v1079 = vunpack.c.l.b16 %v715
    %v1080 = vunpack.c.h.b16 %v715
    %v1081 = vunpack.c.l.b16 %v716
    %v1082 = vunpack.c.h.b16 %v716
    %v1083 = vunpack.c.l.b16 %v717
    %v1084 = vunpack.c.h.b16 %v717
    %v1085 = vunpack.c.l.b16 %v718
    %v1086 = vunpack.c.h.b16 %v718
    %v1087 = vunpack.c.l.b16 %v719
    %v1088 = vunpack.c.h.b16 %v719
    %v1089 = vunpack.c.l.b16 %v720
    %v1090 = vunpack.c.h.b16 %v720
    %v1091 = vunpack.c.l.b16 %v721
    %v1092 = vunpack.c.h.b16 %v721
    %v1093 = vunpack.c.l.b16 %v722
    %v1094 = vunpack.c.h.b16 %v722
    %v1095 = vunpack.c.l.b16 %v723
    %v1096 = vunpack.c.h.b16 %v723
    %v1097 = vunpack.c.l.b16 %v724
    %v1098 = vunpack.c.h.b16 %v724
    %v1099 = vunpack.c.l.b16 %v725
    %v1100 = vunpack.c.h.b16 %v725
    %v1101 = vunpack.c.l.b16 %v726
    %v1102 = vunpack.c.h.b16 %v726
    %v1103 = vunpack.c.l.b16 %v727
    %v1104 = vunpack.c.h.b16 %v727
    %v1105 = vunpack.c.l.b16 %v728
    %v1106 = vunpack.c.h.b16 %v728
    %v1107 = vunpack.c.l.b16 %v729
    %v1108 = vunpack.c.h.b16 %v729
    %v1109 = vunpack.c.l.b16 %v730
    %v1110 = vunpack.c.h.b16 %v730
    %v1111 = vunpack.c.l.b16 %v731
    %v1112 = vunpack.c.h.b16 %v731
    %v1113 = vunpack.c.l.b16 %v732
    %v1114 = vunpack.c.h.b16 %v732
    %v1115 = vunpack.c.l.b16 %v733
    %v1116 = vunpack.c.h.b16 %v733
    %v1117 = vunpack.c.l.b16 %v734
    %v1118 = vunpack.c.h.b16 %v734
    %v1119 = vunpack.c.l.b16 %v735
    %v1120 = vunpack.c.h.b16 %v735
    %v1121 = vunpack.c.l.b16 %v736
    %v1122 = vunpack.c.h.b16 %v736
    %v1123 = vunpack.c.l.b16 %v737
    %v1124 = vunpack.c.h.b16 %v737
    %v1125 = vunpack.c.l.b16 %v738
    %v1126 = vunpack.c.h.b16 %v738
    %v1127 = vunpack.c.l.b16 %v739
    %v1128 = vunpack.c.h.b16 %v739
    %v1129 = vunpack.c.l.b16 %v740
    %v1130 = vunpack.c.h.b16 %v740
    %v1131 = vunpack.c.l.b16 %v741
    %v1132 = vunpack.c.h.b16 %v741
    %v1133 = vunpack.c.l.b16 %v742
    %v1134 = vunpack.c.h.b16 %v742
    %v1135 = vpack.c.b16 %v887, %v879
    %v1136 = vpack.c.b16 %v888, %v880
    %v1137 = vpack.c.b16 %v889, %v881
    %v1138 = vpack.c.b16 %v890, %v882
    %v1139 = vpack.c.b16 %v891, %v883
    %v1140 = vpack.c.b16 %v892, %v884
    %v1141 = vpack.c.b16 %v893, %v885
    %v1142 = vpack.c.b16 %v894, %v886
    %v1143 = vpack.c.b16 %v903, %v895
    %v1144 = vpack.c.b16 %v904, %v896
    %v1145 = vpack.c.b16 %v905, %v897
    %v1146 = vpack.c.b16 %v906, %v898
    %v1147 = vpack.c.b16 %v907, %v899
    %v1148 = vpack.c.b16 %v908, %v900
    %v1149 = vpack.c.b16 %v909, %v901
    %v1150 = vpack.c.b16 %v910, %v902
    %v1151 = vpack.c.b16 %v919, %v911
    %v1152 = vpack.c.b16 %v920, %v912
    %v1153 = vpack.c.b16 %v921, %v913
    %v1154 = vpack.c.b16 %v922, %v914
    %v1155 = vpack.c.b16 %v923, %v915
    %v1156 = vpack.c.b16 %v924, %v916
    %v1157 = vpack.c.b16 %v925, %v917
    %v1158 = vpack.c.b16 %v926, %v918
    %v1159 = vpack.c.b16 %v935, %v927
    %v1160 = vpack.c.b16 %v936, %v928
    %v1161 = vpack.c.b16 %v937, %v929
    %v1162 = vpack.c.b16 %v938, %v930
    %v1163 = vpack.c.b16 %v939, %v931
    %v1164 = vpack.c.b16 %v940, %v932
    %v1165 = vpack.c.b16 %v941, %v933
    %v1166 = vpack.c.b16 %v942, %v934
    %v1167 = vpack.c.b16 %v951, %v943
    %v1168 = vpack.c.b16 %v952, %v944
    %v1169 = vpack.c.b16 %v953, %v945
    %v1170 = vpack.c.b16 %v954, %v946
    %v1171 = vpack.c.b16 %v955, %v947
    %v1172 = vpack.c.b16 %v956, %v948
    %v1173 = vpack.c.b16 %v957, %v949
    %v1174 = vpack.c.b16 %v958, %v950
    %v1175 = vpack.c.b16 %v967, %v959
    %v1176 = vpack.c.b16 %v968, %v960
    %v1177 = vpack.c.b16 %v969, %v961
    %v1178 = vpack.c.b16 %v970, %v962
    %v1179 = vpack.c.b16 %v971, %v963
    %v1180 = vpack.c.b16 %v972, %v964
    %v1181 = vpack.c.b16 %v973, %v965
    %v1182 = vpack.c.b16 %v974, %v966
    %v1183 = vpack.c.b16 %v983, %v975
    %v1184 = vpack.c.b16 %v984, %v976
    %v1185 = vpack.c.b16 %v985, %v977
    %v1186 = vpack.c.b16 %v986, %v978
    %v1187 = vpack.c.b16 %v987, %v979
    %v1188 = vpack.c.b16 %v988, %v980
    %v1189 = vpack.c.b16 %v989, %v981
    %v1190 = vpack.c.b16 %v990, %v982
    %v1191 = vpack.c.b16 %v999, %v991
    %v1192 = vpack.c.b16 %v1000, %v992
    %v1193 = vpack.c.b16 %v1001, %v993
    %v1194 = vpack.c.b16 %v1002, %v994
    %v1195 = vpack.c.b16 %v1003, %v995
    %v1196 = vpack.c.b16 %v1004, %v996
    %v1197 = vpack.c.b16 %v1005, %v997
    %v1198 = vpack.c.b16 %v1006, %v998
    %v1199 = vpack.c.b16 %v1015, %v1007
    %v1200 = vpack.c.b16 %v1016, %v1008
    %v1201 = vpack.c.b16 %v1017, %v1009
    %v1202 = vpack.c.b16 %v1018, %v1010
    %v1203 = vpack.c.b16 %v1019, %v1011
    %v1204 = vpack.c.b16 %v1020, %v1012
    %v1205 = vpack.c.b16 %v1021, %v1013
    %v1206 = vpack.c.b16 %v1022, %v1014
    %v1207 = vpack.c.b16 %v1031, %v1023
    %v1208 = vpack.c.b16 %v1032, %v1024
    %v1209 = vpack.c.b16 %v1033, %v1025
    %v1210 = vpack.c.b16 %v1034, %v1026
    %v1211 = vpack.c.b16 %v1035, %v1027
    %v1212 = vpack.c.b16 %v1036, %v1028
    %v1213 = vpack.c.b16 %v1037, %v1029
    %v1214 = vpack.c.b16 %v1038, %v1030
    %v1215 = vpack.c.b16 %v1047, %v1039
    %v1216 = vpack.c.b16 %v1048, %v1040
    %v1217 = vpack.c.b16 %v1049, %v1041
    %v1218 = vpack.c.b16 %v1050, %v1042
    %v1219 = vpack.c.b16 %v1051, %v1043
    %v1220 = vpack.c.b16 %v1052, %v1044
    %v1221 = vpack.c.b16 %v1053, %v1045
    %v1222 = vpack.c.b16 %v1054, %v1046
    %v1223 = vpack.c.b16 %v1063, %v1055
    %v1224 = vpack.c.b16 %v1064, %v1056
    %v1225 = vpack.c.b16 %v1065, %v1057
    %v1226 = vpack.c.b16 %v1066, %v1058
    %v1227 = vpack.c.b16 %v1067, %v1059
    %v1228 = vpack.c.b16 %v1068, %v1060
    %v1229 = vpack.c.b16 %v1069, %v1061
    %v1230 = vpack.c.b16 %v1070, %v1062
    %v1231 = vpack.c.b16 %v1079, %v1071
    %v1232 = vpack.c.b16 %v1080, %v1072
    %v1233 = vpack.c.b16 %v1081, %v1073
    %v1234 = vpack.c.b16 %v1082, %v1074
    %v1235 = vpack.c.b16 %v1083, %v1075
    %v1236 = vpack.c.b16 %v1084, %v1076
    %v1237 = vpack.c.b16 %v1085, %v1077
    %v1238 = vpack.c.b16 %v1086, %v1078
    %v1239 = vpack.c.b16 %v1095, %v1087
    %v1240 = vpack.c.b16 %v1096, %v1088
    %v1241 = vpack.c.b16 %v1097, %v1089
    %v1242 = vpack.c.b16 %v1098, %v1090
    %v1243 = vpack.c.b16 %v1099, %v1091
    %v1244 = vpack.c.b16 %v1100, %v1092
    %v1245 = vpack.c.b16 %v1101, %v1093
    %v1246 = vpack.c.b16 %v1102, %v1094
    %v1247 = vpack.c.b16 %v1111, %v1103
    %v1248 = vpack.c.b16 %v1112, %v1104
    %v1249 = vpack.c.b16 %v1113, %v1105
    %v1250 = vpack.c.b16 %v1114, %v1106
    %v1251 = vpack.c.b16 %v1115, %v1107
    %v1252 = vpack.c.b16 %v1116, %v1108
    %v1253 = vpack.c.b16 %v1117, %v1109
    %v1254 = vpack.c.b16 %v1118, %v1110
    %v1255 = vpack.c.b16 %v1127, %v1119
    %v1256 = vpack.c.b16 %v1128, %v1120
    %v1257 = vpack.c.b16 %v1129, %v1121
    %v1258 = vpack.c.b16 %v1130, %v1122
    %v1259 = vpack.c.b16 %v1131, %v1123
    %v1260 = vpack.c.b16 %v1132, %v1124
    %v1261 = vpack.c.b16 %v1133, %v1125
    %v1262 = vpack.c.b16 %v1134, %v1126
    %1391 = vmatprep.subr.bf16.mxu0 %v1192
    %1392 = vmatpush1.bf16.msra.mxu0 %v1191
    %1393 = vmatprep.subr.bf16.mxu0 %v1184
    %1394 = vmatpush1.bf16.msra.mxu0 %v1183
    %1395 = vmatprep.subr.bf16.mxu0 %v1176
    %1396 = vmatpush1.bf16.msra.mxu0 %v1175
    %1397 = vmatprep.subr.bf16.mxu0 %v1168
    %1398 = vmatpush1.bf16.msra.mxu0 %v1167
    %1399 = vmatprep.subr.bf16.mxu0 %v1160
    %1400 = vmatpush1.bf16.msra.mxu0 %v1159
    %1401 = vmatprep.subr.bf16.mxu0 %v1152
    %1402 = vmatpush1.bf16.msra.mxu0 %v1151
    %1403 = vmatprep.subr.bf16.mxu0 %v1144
    %1404 = vmatpush1.bf16.msra.mxu0 %v1143
    %1405 = vmatprep.subr.bf16.mxu0 %v1136
    %1406 = vmatpush1.bf16.msra.mxu0 %v1135
    %1407 = vmatprep.subr.bf16.mxu0 %v1256
    %1408 = vmatpush2.bf16.msra.mxu0 %v1255
    %1409 = vmatprep.subr.bf16.mxu0 %v1248
    %1410 = vmatpush2.bf16.msra.mxu0 %v1247
    %1411 = vmatprep.subr.bf16.mxu0 %v1240
    %1412 = vmatpush2.bf16.msra.mxu0 %v1239
    %1413 = vmatprep.subr.bf16.mxu0 %v1232
    %1414 = vmatpush2.bf16.msra.mxu0 %v1231
    %1415 = vmatprep.subr.bf16.mxu0 %v1224
    %1416 = vmatpush2.bf16.msra.mxu0 %v1223
    %1417 = vmatprep.subr.bf16.mxu0 %v1216
    %1418 = vmatpush2.bf16.msra.mxu0 %v1215
    %1419 = vmatprep.subr.bf16.mxu0 %v1208
    %1420 = vmatpush2.bf16.msra.mxu0 %v1207
    %1421 = vmatprep.subr.bf16.mxu0 %v1200
    %1422 = vmatpush2.bf16.msra.mxu0 %v1199
    %1423 = vmatprep.mubr.bf16.mxu0 0
    %1424 = vmatmul.mubr.bf16.gmra.mxu0 0
    %v1425 = vpop.f32.mrf.mxu0
    %v1426 = vadd.f32 0.0, %v1425
    %v1427 = vpop.f32.mrf.mxu0
    %v1428 = vadd.f32 0.0, %v1427
    %v1429 = vpop.f32.mrf.mxu0
    %v1430 = vpop.f32.mrf.mxu0
    %1431 = vdwg.mxu0
    %1432 = vmatprep.subr.bf16.mxu0 %v1194
    %1433 = vmatpush1.bf16.msra.mxu0 %v1193
    %1434 = vmatprep.subr.bf16.mxu0 %v1186
    %1435 = vmatpush1.bf16.msra.mxu0 %v1185
    %1436 = vmatprep.subr.bf16.mxu0 %v1178
    %1437 = vmatpush1.bf16.msra.mxu0 %v1177
    %1438 = vmatprep.subr.bf16.mxu0 %v1170
    %1439 = vmatpush1.bf16.msra.mxu0 %v1169
    %1440 = vmatprep.subr.bf16.mxu0 %v1162
    %1441 = vmatpush1.bf16.msra.mxu0 %v1161
    %1442 = vmatprep.subr.bf16.mxu0 %v1154
    %1443 = vmatpush1.bf16.msra.mxu0 %v1153
    %1444 = vmatprep.subr.bf16.mxu0 %v1146
    %1445 = vmatpush1.bf16.msra.mxu0 %v1145
    %1446 = vmatprep.subr.bf16.mxu0 %v1138
    %1447 = vmatpush1.bf16.msra.mxu0 %v1137
    %1448 = vmatprep.subr.bf16.mxu0 %v1258
    %1449 = vmatpush2.bf16.msra.mxu0 %v1257
    %1450 = vmatprep.subr.bf16.mxu0 %v1250
    %1451 = vmatpush2.bf16.msra.mxu0 %v1249
    %1452 = vmatprep.subr.bf16.mxu0 %v1242
    %1453 = vmatpush2.bf16.msra.mxu0 %v1241
    %1454 = vmatprep.subr.bf16.mxu0 %v1234
    %1455 = vmatpush2.bf16.msra.mxu0 %v1233
    %1456 = vmatprep.subr.bf16.mxu0 %v1226
    %1457 = vmatpush2.bf16.msra.mxu0 %v1225
    %1458 = vmatprep.subr.bf16.mxu0 %v1218
    %1459 = vmatpush2.bf16.msra.mxu0 %v1217
    %1460 = vmatprep.subr.bf16.mxu0 %v1210
    %1461 = vmatpush2.bf16.msra.mxu0 %v1209
    %1462 = vmatprep.subr.bf16.mxu0 %v1202
    %1463 = vmatpush2.bf16.msra.mxu0 %v1201
    %1464 = vmatprep.mubr.bf16.mxu0 0
    %1465 = vmatmul.mubr.bf16.gmra.mxu0 0
    %v1466 = vpop.f32.mrf.mxu0
    %v1467 = vadd.f32 0.0, %v1466
    %v1468 = vpop.f32.mrf.mxu0
    %v1469 = vadd.f32 0.0, %v1468
    %v1470 = vpop.f32.mrf.mxu0
    %v1471 = vpop.f32.mrf.mxu0
    %1472 = vdwg.mxu0
    %1473 = vmatprep.subr.bf16.mxu0 %v1196
    %1474 = vmatpush1.bf16.msra.mxu0 %v1195
    %1475 = vmatprep.subr.bf16.mxu0 %v1188
    %1476 = vmatpush1.bf16.msra.mxu0 %v1187
    %1477 = vmatprep.subr.bf16.mxu0 %v1180
    %1478 = vmatpush1.bf16.msra.mxu0 %v1179
    %1479 = vmatprep.subr.bf16.mxu0 %v1172
    %1480 = vmatpush1.bf16.msra.mxu0 %v1171
    %1481 = vmatprep.subr.bf16.mxu0 %v1164
    %1482 = vmatpush1.bf16.msra.mxu0 %v1163
    %1483 = vmatprep.subr.bf16.mxu0 %v1156
    %1484 = vmatpush1.bf16.msra.mxu0 %v1155
    %1485 = vmatprep.subr.bf16.mxu0 %v1148
    %1486 = vmatpush1.bf16.msra.mxu0 %v1147
    %1487 = vmatprep.subr.bf16.mxu0 %v1140
    %1488 = vmatpush1.bf16.msra.mxu0 %v1139
    %1489 = vmatprep.subr.bf16.mxu0 %v1260
    %1490 = vmatpush2.bf16.msra.mxu0 %v1259
    %1491 = vmatprep.subr.bf16.mxu0 %v1252
    %1492 = vmatpush2.bf16.msra.mxu0 %v1251
    %1493 = vmatprep.subr.bf16.mxu0 %v1244
    %1494 = vmatpush2.bf16.msra.mxu0 %v1243
    %1495 = vmatprep.subr.bf16.mxu0 %v1236
    %1496 = vmatpush2.bf16.msra.mxu0 %v1235
    %1497 = vmatprep.subr.bf16.mxu0 %v1228
    %1498 = vmatpush2.bf16.msra.mxu0 %v1227
    %1499 = vmatprep.subr.bf16.mxu0 %v1220
    %1500 = vmatpush2.bf16.msra.mxu0 %v1219
    %1501 = vmatprep.subr.bf16.mxu0 %v1212
    %1502 = vmatpush2.bf16.msra.mxu0 %v1211
    %1503 = vmatprep.subr.bf16.mxu0 %v1204
    %1504 = vmatpush2.bf16.msra.mxu0 %v1203
    %1505 = vmatprep.mubr.bf16.mxu0 0
    %1506 = vmatmul.mubr.bf16.gmra.mxu0 0
    %v1507 = vpop.f32.mrf.mxu0
    %v1508 = vadd.f32 0.0, %v1507
    %v1509 = vpop.f32.mrf.mxu0
    %v1510 = vadd.f32 0.0, %v1509
    %v1511 = vpop.f32.mrf.mxu0
    %v1512 = vpop.f32.mrf.mxu0
    %1513 = vdwg.mxu0
    %1514 = vmatprep.subr.bf16.mxu0 %v1198
    %1515 = vmatpush1.bf16.msra.mxu0 %v1197
    %1516 = vmatprep.subr.bf16.mxu0 %v1190
    %1517 = vmatpush1.bf16.msra.mxu0 %v1189
    %1518 = vmatprep.subr.bf16.mxu0 %v1182
    %1519 = vmatpush1.bf16.msra.mxu0 %v1181
    %1520 = vmatprep.subr.bf16.mxu0 %v1174
    %1521 = vmatpush1.bf16.msra.mxu0 %v1173
    %1522 = vmatprep.subr.bf16.mxu0 %v1166
    %1523 = vmatpush1.bf16.msra.mxu0 %v1165
    %1524 = vmatprep.subr.bf16.mxu0 %v1158
    %1525 = vmatpush1.bf16.msra.mxu0 %v1157
    %1526 = vmatprep.subr.bf16.mxu0 %v1150
    %1527 = vmatpush1.bf16.msra.mxu0 %v1149
    %1528 = vmatprep.subr.bf16.mxu0 %v1142
    %1529 = vmatpush1.bf16.msra.mxu0 %v1141
    %1530 = vmatprep.subr.bf16.mxu0 %v1262
    %1531 = vmatpush2.bf16.msra.mxu0 %v1261
    %1532 = vmatprep.subr.bf16.mxu0 %v1254
    %1533 = vmatpush2.bf16.msra.mxu0 %v1253
    %1534 = vmatprep.subr.bf16.mxu0 %v1246
    %1535 = vmatpush2.bf16.msra.mxu0 %v1245
    %1536 = vmatprep.subr.bf16.mxu0 %v1238
    %1537 = vmatpush2.bf16.msra.mxu0 %v1237
    %1538 = vmatprep.subr.bf16.mxu0 %v1230
    %1539 = vmatpush2.bf16.msra.mxu0 %v1229
    %1540 = vmatprep.subr.bf16.mxu0 %v1222
    %1541 = vmatpush2.bf16.msra.mxu0 %v1221
    %1542 = vmatprep.subr.bf16.mxu0 %v1214
    %1543 = vmatpush2.bf16.msra.mxu0 %v1213
    %1544 = vmatprep.subr.bf16.mxu0 %v1206
    %1545 = vmatpush2.bf16.msra.mxu0 %v1205
    %1546 = vmatprep.mubr.bf16.mxu0 0
    %1547 = vmatmul.mubr.bf16.gmra.mxu0 0
    %v1548 = vpop.f32.mrf.mxu0
    %v1549 = vadd.f32 0.0, %v1548
    %v1550 = vpop.f32.mrf.mxu0
    %v1551 = vadd.f32 0.0, %v1550
    %v1552 = vpop.f32.mrf.mxu0
    %v1553 = vpop.f32.mrf.mxu0
    %1554 = vdwg.mxu0
    %v1555 = vadd.f32 %v743, %v1426
    %v1556 = vadd.f32 %v744, %v1428
    %v1557 = vadd.f32 %v745, %v1467
    %v1558 = vadd.f32 %v746, %v1469
    %v1559 = vadd.f32 %v747, %v1508
    %v1560 = vadd.f32 %v748, %v1510
    %v1561 = vadd.f32 %v749, %v1549
    %v1562 = vadd.f32 %v750, %v1551
    %v1563 = vxor.u32 %v1555, 2147483648
    %v1564 = vxor.u32 %v1556, 2147483648
    %v1565 = vxor.u32 %v1557, 2147483648
    %v1566 = vxor.u32 %v1558, 2147483648
    %v1567 = vxor.u32 %v1559, 2147483648
    %v1568 = vxor.u32 %v1560, 2147483648
    %v1569 = vmul.f32 %v1563, 1.442695
    %v1570 = vpow.pop %v1569
    %v1571 = vmul.f32 %v1564, 1.442695
    %v1572 = vpow.pop %v1571
    %v1573 = vmul.f32 %v1565, 1.442695
    %v1574 = vpow.pop %v1573
    %v1575 = vmul.f32 %v1566, 1.442695
    %v1576 = vpow.pop %v1575
    %v1577 = vmul.f32 %v1567, 1.442695
    %v1578 = vpow.pop %v1577
    %v1579 = vmul.f32 %v1568, 1.442695
    %v1580 = vpow.pop %v1579
    %v1581 = vadd.f32 %v1570, 1.0
    %v1582 = vadd.f32 %v1572, 1.0
    %v1583 = vadd.f32 %v1574, 1.0
    %v1584 = vadd.f32 %v1576, 1.0
    %v1585 = vadd.f32 %v1578, 1.0
    %v1586 = vadd.f32 %v1580, 1.0
    %v1587 = vrcp.pop %v1581
    %v1588 = vmul.f32 1.0, %v1587
    %v1589 = vrcp.pop %v1582
    %v1590 = vmul.f32 1.0, %v1589
    %v1591 = vrcp.pop %v1583
    %v1592 = vmul.f32 1.0, %v1591
    %v1593 = vrcp.pop %v1584
    %v1594 = vmul.f32 1.0, %v1593
    %v1595 = vrcp.pop %v1585
    %v1596 = vmul.f32 1.0, %v1595
    %v1597 = vrcp.pop %v1586
    %v1598 = vmul.f32 1.0, %v1597
    %v1599 = vtanh.pop %v1561
    %v1600 = vtanh.pop %v1562
    %v1601 = vmul.f32 %v1592, 0.0
    %v1602 = vmul.f32 %v1594, 0.0
    %v1603 = vmul.f32 %v1588, %v1599
    %v1604 = vmul.f32 %v1590, %v1600
    %v1605 = vadd.f32 %v1601, %v1603
    %v1606 = vadd.f32 %v1602, %v1604
    %v1607 = vtanh.pop %v1605
    %v1608 = vtanh.pop %v1606
    %v1609 = vmul.f32 %v1596, %v1607
    %v1610 = vmul.f32 %v1598, %v1608
    %v1611 = vld [vmem:[#allocation2 + $0x40] sm:$0xff]
    %v1612 = vld [vmem:[#allocation2 + $0x48] sm:$0xff]
    %v1613 = vld [vmem:[#allocation2 + $0x50] sm:$0xff]
    %v1614 = vld [vmem:[#allocation2 + $0x58] sm:$0xff]
    %v1615 = vld [vmem:[#allocation2 + $0x60] sm:$0xff]
    %v1616 = vld [vmem:[#allocation2 + $0x68] sm:$0xff]
    %v1617 = vld [vmem:[#allocation2 + $0x70] sm:$0xff]
    %v1618 = vld [vmem:[#allocation2 + $0x78] sm:$0xff]
    %v1619 = vpack.c.bf16 %v1609, %v1609
    %v1620 = vpack.c.bf16 %v1610, %v1610
    %1621 = vmatprep.subr.bf16.mxu0 %v1192
    %1622 = vmatpush1.bf16.msra.mxu0 %v1191
    %1623 = vmatprep.subr.bf16.mxu0 %v1184
    %1624 = vmatpush1.bf16.msra.mxu0 %v1183
    %1625 = vmatprep.subr.bf16.mxu0 %v1176
    %1626 = vmatpush1.bf16.msra.mxu0 %v1175
    %1627 = vmatprep.subr.bf16.mxu0 %v1168
    %1628 = vmatpush1.bf16.msra.mxu0 %v1167
    %1629 = vmatprep.subr.bf16.mxu0 %v1160
    %1630 = vmatpush1.bf16.msra.mxu0 %v1159
    %1631 = vmatprep.subr.bf16.mxu0 %v1152
    %1632 = vmatpush1.bf16.msra.mxu0 %v1151
    %1633 = vmatprep.subr.bf16.mxu0 %v1144
    %1634 = vmatpush1.bf16.msra.mxu0 %v1143
    %1635 = vmatprep.subr.bf16.mxu0 %v1136
    %1636 = vmatpush1.bf16.msra.mxu0 %v1135
    %1637 = vmatprep.subr.bf16.mxu0 %v1256
    %1638 = vmatpush2.bf16.msra.mxu0 %v1255
    %1639 = vmatprep.subr.bf16.mxu0 %v1248
    %1640 = vmatpush2.bf16.msra.mxu0 %v1247
    %1641 = vmatprep.subr.bf16.mxu0 %v1240
    %1642 = vmatpush2.bf16.msra.mxu0 %v1239
    %1643 = vmatprep.subr.bf16.mxu0 %v1232
    %1644 = vmatpush2.bf16.msra.mxu0 %v1231
    %1645 = vmatprep.subr.bf16.mxu0 %v1224
    %1646 = vmatpush2.bf16.msra.mxu0 %v1223
    %1647 = vmatprep.subr.bf16.mxu0 %v1216
    %1648 = vmatpush2.bf16.msra.mxu0 %v1215
    %1649 = vmatprep.subr.bf16.mxu0 %v1208
    %1650 = vmatpush2.bf16.msra.mxu0 %v1207
    %1651 = vmatprep.subr.bf16.mxu0 %v1200
    %1652 = vmatpush2.bf16.msra.mxu0 %v1199
    %1653 = vmatprep.mubr.bf16.mxu0 %v1620
    %1654 = vmatmul.mubr.bf16.gmra.mxu0 %v1619
    %v1655 = vpop.f32.mrf.mxu0
    %v1656 = vadd.f32 0.0, %v1655
    %v1657 = vpop.f32.mrf.mxu0
    %v1658 = vadd.f32 0.0, %v1657
    %v1659 = vpop.f32.mrf.mxu0
    %v1660 = vpop.f32.mrf.mxu0
    %1661 = vdwg.mxu0
    %1662 = vmatprep.subr.bf16.mxu0 %v1194
    %1663 = vmatpush1.bf16.msra.mxu0 %v1193
    %1664 = vmatprep.subr.bf16.mxu0 %v1186
    %1665 = vmatpush1.bf16.msra.mxu0 %v1185
    %1666 = vmatprep.subr.bf16.mxu0 %v1178
    %1667 = vmatpush1.bf16.msra.mxu0 %v1177
    %1668 = vmatprep.subr.bf16.mxu0 %v1170
    %1669 = vmatpush1.bf16.msra.mxu0 %v1169
    %1670 = vmatprep.subr.bf16.mxu0 %v1162
    %1671 = vmatpush1.bf16.msra.mxu0 %v1161
    %1672 = vmatprep.subr.bf16.mxu0 %v1154
    %1673 = vmatpush1.bf16.msra.mxu0 %v1153
    %1674 = vmatprep.subr.bf16.mxu0 %v1146
    %1675 = vmatpush1.bf16.msra.mxu0 %v1145
    %1676 = vmatprep.subr.bf16.mxu0 %v1138
    %1677 = vmatpush1.bf16.msra.mxu0 %v1137
    %1678 = vmatprep.subr.bf16.mxu0 %v1258
    %1679 = vmatpush2.bf16.msra.mxu0 %v1257
    %1680 = vmatprep.subr.bf16.mxu0 %v1250
    %1681 = vmatpush2.bf16.msra.mxu0 %v1249
    %1682 = vmatprep.subr.bf16.mxu0 %v1242
    %1683 = vmatpush2.bf16.msra.mxu0 %v1241
    %1684 = vmatprep.subr.bf16.mxu0 %v1234
    %1685 = vmatpush2.bf16.msra.mxu0 %v1233
    %1686 = vmatprep.subr.bf16.mxu0 %v1226
    %1687 = vmatpush2.bf16.msra.mxu0 %v1225
    %1688 = vmatprep.subr.bf16.mxu0 %v1218
    %1689 = vmatpush2.bf16.msra.mxu0 %v1217
    %1690 = vmatprep.subr.bf16.mxu0 %v1210
    %1691 = vmatpush2.bf16.msra.mxu0 %v1209
    %1692 = vmatprep.subr.bf16.mxu0 %v1202
    %1693 = vmatpush2.bf16.msra.mxu0 %v1201
    %1694 = vmatprep.mubr.bf16.mxu0 %v1620
    %1695 = vmatmul.mubr.bf16.gmra.mxu0 %v1619
    %v1696 = vpop.f32.mrf.mxu0
    %v1697 = vadd.f32 0.0, %v1696
    %v1698 = vpop.f32.mrf.mxu0
    %v1699 = vadd.f32 0.0, %v1698
    %v1700 = vpop.f32.mrf.mxu0
    %v1701 = vpop.f32.mrf.mxu0
    %1702 = vdwg.mxu0
    %1703 = vmatprep.subr.bf16.mxu0 %v1196
    %1704 = vmatpush1.bf16.msra.mxu0 %v1195
    %1705 = vmatprep.subr.bf16.mxu0 %v1188
    %1706 = vmatpush1.bf16.msra.mxu0 %v1187
    %1707 = vmatprep.subr.bf16.mxu0 %v1180
    %1708 = vmatpush1.bf16.msra.mxu0 %v1179
    %1709 = vmatprep.subr.bf16.mxu0 %v1172
    %1710 = vmatpush1.bf16.msra.mxu0 %v1171
    %1711 = vmatprep.subr.bf16.mxu0 %v1164
    %1712 = vmatpush1.bf16.msra.mxu0 %v1163
    %1713 = vmatprep.subr.bf16.mxu0 %v1156
    %1714 = vmatpush1.bf16.msra.mxu0 %v1155
    %1715 = vmatprep.subr.bf16.mxu0 %v1148
    %1716 = vmatpush1.bf16.msra.mxu0 %v1147
    %1717 = vmatprep.subr.bf16.mxu0 %v1140
    %1718 = vmatpush1.bf16.msra.mxu0 %v1139
    %1719 = vmatprep.subr.bf16.mxu0 %v1260
    %1720 = vmatpush2.bf16.msra.mxu0 %v1259
    %1721 = vmatprep.subr.bf16.mxu0 %v1252
    %1722 = vmatpush2.bf16.msra.mxu0 %v1251
    %1723 = vmatprep.subr.bf16.mxu0 %v1244
    %1724 = vmatpush2.bf16.msra.mxu0 %v1243
    %1725 = vmatprep.subr.bf16.mxu0 %v1236
    %1726 = vmatpush2.bf16.msra.mxu0 %v1235
    %1727 = vmatprep.subr.bf16.mxu0 %v1228
    %1728 = vmatpush2.bf16.msra.mxu0 %v1227
    %1729 = vmatprep.subr.bf16.mxu0 %v1220
    %1730 = vmatpush2.bf16.msra.mxu0 %v1219
    %1731 = vmatprep.subr.bf16.mxu0 %v1212
    %1732 = vmatpush2.bf16.msra.mxu0 %v1211
    %1733 = vmatprep.subr.bf16.mxu0 %v1204
    %1734 = vmatpush2.bf16.msra.mxu0 %v1203
    %1735 = vmatprep.mubr.bf16.mxu0 %v1620
    %1736 = vmatmul.mubr.bf16.gmra.mxu0 %v1619
    %v1737 = vpop.f32.mrf.mxu0
    %v1738 = vadd.f32 0.0, %v1737
    %v1739 = vpop.f32.mrf.mxu0
    %v1740 = vadd.f32 0.0, %v1739
    %v1741 = vpop.f32.mrf.mxu0
    %v1742 = vpop.f32.mrf.mxu0
    %1743 = vdwg.mxu0
    %1744 = vmatprep.subr.bf16.mxu0 %v1198
    %1745 = vmatpush1.bf16.msra.mxu0 %v1197
    %1746 = vmatprep.subr.bf16.mxu0 %v1190
    %1747 = vmatpush1.bf16.msra.mxu0 %v1189
    %1748 = vmatprep.subr.bf16.mxu0 %v1182
    %1749 = vmatpush1.bf16.msra.mxu0 %v1181
    %1750 = vmatprep.subr.bf16.mxu0 %v1174
    %1751 = vmatpush1.bf16.msra.mxu0 %v1173
    %1752 = vmatprep.subr.bf16.mxu0 %v1166
    %1753 = vmatpush1.bf16.msra.mxu0 %v1165
    %1754 = vmatprep.subr.bf16.mxu0 %v1158
    %1755 = vmatpush1.bf16.msra.mxu0 %v1157
    %1756 = vmatprep.subr.bf16.mxu0 %v1150
    %1757 = vmatpush1.bf16.msra.mxu0 %v1149
    %1758 = vmatprep.subr.bf16.mxu0 %v1142
    %1759 = vmatpush1.bf16.msra.mxu0 %v1141
    %1760 = vmatprep.subr.bf16.mxu0 %v1262
    %1761 = vmatpush2.bf16.msra.mxu0 %v1261
    %1762 = vmatprep.subr.bf16.mxu0 %v1254
    %1763 = vmatpush2.bf16.msra.mxu0 %v1253
    %1764 = vmatprep.subr.bf16.mxu0 %v1246
    %1765 = vmatpush2.bf16.msra.mxu0 %v1245
    %1766 = vmatprep.subr.bf16.mxu0 %v1238
    %1767 = vmatpush2.bf16.msra.mxu0 %v1237
    %1768 = vmatprep.subr.bf16.mxu0 %v1230
    %1769 = vmatpush2.bf16.msra.mxu0 %v1229
    %1770 = vmatprep.subr.bf16.mxu0 %v1222
    %1771 = vmatpush2.bf16.msra.mxu0 %v1221
    %1772 = vmatprep.subr.bf16.mxu0 %v1214
    %1773 = vmatpush2.bf16.msra.mxu0 %v1213
    %1774 = vmatprep.subr.bf16.mxu0 %v1206
    %1775 = vmatpush2.bf16.msra.mxu0 %v1205
    %1776 = vmatprep.mubr.bf16.mxu0 %v1620
    %1777 = vmatmul.mubr.bf16.gmra.mxu0 %v1619
    %v1778 = vpop.f32.mrf.mxu0
    %v1779 = vadd.f32 0.0, %v1778
    %v1780 = vpop.f32.mrf.mxu0
    %v1781 = vadd.f32 0.0, %v1780
    %v1782 = vpop.f32.mrf.mxu0
    %v1783 = vpop.f32.mrf.mxu0
    %1784 = vdwg.mxu0
    %v1785 = vadd.f32 %v1611, %v1656
    %v1786 = vadd.f32 %v1612, %v1658
    %v1787 = vadd.f32 %v1613, %v1697
    %v1788 = vadd.f32 %v1614, %v1699
    %v1789 = vadd.f32 %v1615, %v1738
    %v1790 = vadd.f32 %v1616, %v1740
    %v1791 = vadd.f32 %v1617, %v1779
    %v1792 = vadd.f32 %v1618, %v1781
    %v1793 = vxor.u32 %v1785, 2147483648
    %v1794 = vxor.u32 %v1786, 2147483648
    %v1795 = vxor.u32 %v1787, 2147483648
    %v1796 = vxor.u32 %v1788, 2147483648
    %v1797 = vxor.u32 %v1789, 2147483648
    %v1798 = vxor.u32 %v1790, 2147483648
    %v1799 = vmul.f32 %v1793, 1.442695
    %v1800 = vpow.pop %v1799
    %v1801 = vmul.f32 %v1794, 1.442695
    %v1802 = vpow.pop %v1801
    %v1803 = vmul.f32 %v1795, 1.442695
    %v1804 = vpow.pop %v1803
    %v1805 = vmul.f32 %v1796, 1.442695
    %v1806 = vpow.pop %v1805
    %v1807 = vmul.f32 %v1797, 1.442695
    %v1808 = vpow.pop %v1807
    %v1809 = vmul.f32 %v1798, 1.442695
    %v1810 = vpow.pop %v1809
    %v1811 = vadd.f32 %v1800, 1.0
    %v1812 = vadd.f32 %v1802, 1.0
    %v1813 = vadd.f32 %v1804, 1.0
    %v1814 = vadd.f32 %v1806, 1.0
    %v1815 = vadd.f32 %v1808, 1.0
    %v1816 = vadd.f32 %v1810, 1.0
    %v1817 = vrcp.pop %v1811
    %v1818 = vmul.f32 1.0, %v1817
    %v1819 = vrcp.pop %v1812
    %v1820 = vmul.f32 1.0, %v1819
    %v1821 = vrcp.pop %v1813
    %v1822 = vmul.f32 1.0, %v1821
    %v1823 = vrcp.pop %v1814
    %v1824 = vmul.f32 1.0, %v1823
    %v1825 = vrcp.pop %v1815
    %v1826 = vmul.f32 1.0, %v1825
    %v1827 = vrcp.pop %v1816
    %v1828 = vmul.f32 1.0, %v1827
    %v1829 = vtanh.pop %v1791
    %v1830 = vtanh.pop %v1792
    %v1831 = vmul.f32 %v1822, %v1605
    %v1832 = vmul.f32 %v1824, %v1606
    %v1833 = vmul.f32 %v1818, %v1829
    %v1834 = vmul.f32 %v1820, %v1830
    %v1835 = vadd.f32 %v1831, %v1833
    %v1836 = vadd.f32 %v1832, %v1834
    %v1837 = vtanh.pop %v1835
    %v1838 = vtanh.pop %v1836
    %v1839 = vmul.f32 %v1826, %v1837
    %v1840 = vmul.f32 %v1828, %v1838
    %v1841 = vld [vmem:[#allocation2 + $0x80] sm:$0xff]
    %v1842 = vld [vmem:[#allocation2 + $0x88] sm:$0xff]
    %v1843 = vld [vmem:[#allocation2 + $0x90] sm:$0xff]
    %v1844 = vld [vmem:[#allocation2 + $0x98] sm:$0xff]
    %v1845 = vld [vmem:[#allocation2 + $0xa0] sm:$0xff]
    %v1846 = vld [vmem:[#allocation2 + $0xa8] sm:$0xff]
    %v1847 = vld [vmem:[#allocation2 + $0xb0] sm:$0xff]
    %v1848 = vld [vmem:[#allocation2 + $0xb8] sm:$0xff]
    %v1849 = vpack.c.bf16 %v1839, %v1839
    %v1850 = vpack.c.bf16 %v1840, %v1840
    %1851 = vmatprep.subr.bf16.mxu0 %v1192
    %1852 = vmatpush1.bf16.msra.mxu0 %v1191
    %1853 = vmatprep.subr.bf16.mxu0 %v1184
    %1854 = vmatpush1.bf16.msra.mxu0 %v1183
    %1855 = vmatprep.subr.bf16.mxu0 %v1176
    %1856 = vmatpush1.bf16.msra.mxu0 %v1175
    %1857 = vmatprep.subr.bf16.mxu0 %v1168
    %1858 = vmatpush1.bf16.msra.mxu0 %v1167
    %1859 = vmatprep.subr.bf16.mxu0 %v1160
    %1860 = vmatpush1.bf16.msra.mxu0 %v1159
    %1861 = vmatprep.subr.bf16.mxu0 %v1152
    %1862 = vmatpush1.bf16.msra.mxu0 %v1151
    %1863 = vmatprep.subr.bf16.mxu0 %v1144
    %1864 = vmatpush1.bf16.msra.mxu0 %v1143
    %1865 = vmatprep.subr.bf16.mxu0 %v1136
    %1866 = vmatpush1.bf16.msra.mxu0 %v1135
    %1867 = vmatprep.subr.bf16.mxu0 %v1256
    %1868 = vmatpush2.bf16.msra.mxu0 %v1255
    %1869 = vmatprep.subr.bf16.mxu0 %v1248
    %1870 = vmatpush2.bf16.msra.mxu0 %v1247
    %1871 = vmatprep.subr.bf16.mxu0 %v1240
    %1872 = vmatpush2.bf16.msra.mxu0 %v1239
    %1873 = vmatprep.subr.bf16.mxu0 %v1232
    %1874 = vmatpush2.bf16.msra.mxu0 %v1231
    %1875 = vmatprep.subr.bf16.mxu0 %v1224
    %1876 = vmatpush2.bf16.msra.mxu0 %v1223
    %1877 = vmatprep.subr.bf16.mxu0 %v1216
    %1878 = vmatpush2.bf16.msra.mxu0 %v1215
    %1879 = vmatprep.subr.bf16.mxu0 %v1208
    %1880 = vmatpush2.bf16.msra.mxu0 %v1207
    %1881 = vmatprep.subr.bf16.mxu0 %v1200
    %1882 = vmatpush2.bf16.msra.mxu0 %v1199
    %1883 = vmatprep.mubr.bf16.mxu0 %v1850
    %1884 = vmatmul.mubr.bf16.gmra.mxu0 %v1849
    %v1885 = vpop.f32.mrf.mxu0
    %v1886 = vadd.f32 0.0, %v1885
    %v1887 = vpop.f32.mrf.mxu0
    %v1888 = vadd.f32 0.0, %v1887
    %v1889 = vpop.f32.mrf.mxu0
    %v1890 = vpop.f32.mrf.mxu0
    %1891 = vdwg.mxu0
    %1892 = vmatprep.subr.bf16.mxu0 %v1194
    %1893 = vmatpush1.bf16.msra.mxu0 %v1193
    %1894 = vmatprep.subr.bf16.mxu0 %v1186
    %1895 = vmatpush1.bf16.msra.mxu0 %v1185
    %1896 = vmatprep.subr.bf16.mxu0 %v1178
    %1897 = vmatpush1.bf16.msra.mxu0 %v1177
    %1898 = vmatprep.subr.bf16.mxu0 %v1170
    %1899 = vmatpush1.bf16.msra.mxu0 %v1169
    %1900 = vmatprep.subr.bf16.mxu0 %v1162
    %1901 = vmatpush1.bf16.msra.mxu0 %v1161
    %1902 = vmatprep.subr.bf16.mxu0 %v1154
    %1903 = vmatpush1.bf16.msra.mxu0 %v1153
    %1904 = vmatprep.subr.bf16.mxu0 %v1146
    %1905 = vmatpush1.bf16.msra.mxu0 %v1145
    %1906 = vmatprep.subr.bf16.mxu0 %v1138
    %1907 = vmatpush1.bf16.msra.mxu0 %v1137
    %1908 = vmatprep.subr.bf16.mxu0 %v1258
    %1909 = vmatpush2.bf16.msra.mxu0 %v1257
    %1910 = vmatprep.subr.bf16.mxu0 %v1250
    %1911 = vmatpush2.bf16.msra.mxu0 %v1249
    %1912 = vmatprep.subr.bf16.mxu0 %v1242
    %1913 = vmatpush2.bf16.msra.mxu0 %v1241
    %1914 = vmatprep.subr.bf16.mxu0 %v1234
    %1915 = vmatpush2.bf16.msra.mxu0 %v1233
    %1916 = vmatprep.subr.bf16.mxu0 %v1226
    %1917 = vmatpush2.bf16.msra.mxu0 %v1225
    %1918 = vmatprep.subr.bf16.mxu0 %v1218
    %1919 = vmatpush2.bf16.msra.mxu0 %v1217
    %1920 = vmatprep.subr.bf16.mxu0 %v1210
    %1921 = vmatpush2.bf16.msra.mxu0 %v1209
    %1922 = vmatprep.subr.bf16.mxu0 %v1202
    %1923 = vmatpush2.bf16.msra.mxu0 %v1201
    %1924 = vmatprep.mubr.bf16.mxu0 %v1850
    %1925 = vmatmul.mubr.bf16.gmra.mxu0 %v1849
    %v1926 = vpop.f32.mrf.mxu0
    %v1927 = vadd.f32 0.0, %v1926
    %v1928 = vpop.f32.mrf.mxu0
    %v1929 = vadd.f32 0.0, %v1928
    %v1930 = vpop.f32.mrf.mxu0
    %v1931 = vpop.f32.mrf.mxu0
    %1932 = vdwg.mxu0
    %1933 = vmatprep.subr.bf16.mxu0 %v1196
    %1934 = vmatpush1.bf16.msra.mxu0 %v1195
    %1935 = vmatprep.subr.bf16.mxu0 %v1188
    %1936 = vmatpush1.bf16.msra.mxu0 %v1187
    %1937 = vmatprep.subr.bf16.mxu0 %v1180
    %1938 = vmatpush1.bf16.msra.mxu0 %v1179
    %1939 = vmatprep.subr.bf16.mxu0 %v1172
    %1940 = vmatpush1.bf16.msra.mxu0 %v1171
    %1941 = vmatprep.subr.bf16.mxu0 %v1164
    %1942 = vmatpush1.bf16.msra.mxu0 %v1163
    %1943 = vmatprep.subr.bf16.mxu0 %v1156
    %1944 = vmatpush1.bf16.msra.mxu0 %v1155
    %1945 = vmatprep.subr.bf16.mxu0 %v1148
    %1946 = vmatpush1.bf16.msra.mxu0 %v1147
    %1947 = vmatprep.subr.bf16.mxu0 %v1140
    %1948 = vmatpush1.bf16.msra.mxu0 %v1139
    %1949 = vmatprep.subr.bf16.mxu0 %v1260
    %1950 = vmatpush2.bf16.msra.mxu0 %v1259
    %1951 = vmatprep.subr.bf16.mxu0 %v1252
    %1952 = vmatpush2.bf16.msra.mxu0 %v1251
    %1953 = vmatprep.subr.bf16.mxu0 %v1244
    %1954 = vmatpush2.bf16.msra.mxu0 %v1243
    %1955 = vmatprep.subr.bf16.mxu0 %v1236
    %1956 = vmatpush2.bf16.msra.mxu0 %v1235
    %1957 = vmatprep.subr.bf16.mxu0 %v1228
    %1958 = vmatpush2.bf16.msra.mxu0 %v1227
    %1959 = vmatprep.subr.bf16.mxu0 %v1220
    %1960 = vmatpush2.bf16.msra.mxu0 %v1219
    %1961 = vmatprep.subr.bf16.mxu0 %v1212
    %1962 = vmatpush2.bf16.msra.mxu0 %v1211
    %1963 = vmatprep.subr.bf16.mxu0 %v1204
    %1964 = vmatpush2.bf16.msra.mxu0 %v1203
    %1965 = vmatprep.mubr.bf16.mxu0 %v1850
    %1966 = vmatmul.mubr.bf16.gmra.mxu0 %v1849
    %v1967 = vpop.f32.mrf.mxu0
    %v1968 = vadd.f32 0.0, %v1967
    %v1969 = vpop.f32.mrf.mxu0
    %v1970 = vadd.f32 0.0, %v1969
    %v1971 = vpop.f32.mrf.mxu0
    %v1972 = vpop.f32.mrf.mxu0
    %1973 = vdwg.mxu0
    %1974 = vmatprep.subr.bf16.mxu0 %v1198
    %1975 = vmatpush1.bf16.msra.mxu0 %v1197
    %1976 = vmatprep.subr.bf16.mxu0 %v1190
    %1977 = vmatpush1.bf16.msra.mxu0 %v1189
    %1978 = vmatprep.subr.bf16.mxu0 %v1182
    %1979 = vmatpush1.bf16.msra.mxu0 %v1181
    %1980 = vmatprep.subr.bf16.mxu0 %v1174
    %1981 = vmatpush1.bf16.msra.mxu0 %v1173
    %1982 = vmatprep.subr.bf16.mxu0 %v1166
    %1983 = vmatpush1.bf16.msra.mxu0 %v1165
    %1984 = vmatprep.subr.bf16.mxu0 %v1158
    %1985 = vmatpush1.bf16.msra.mxu0 %v1157
    %1986 = vmatprep.subr.bf16.mxu0 %v1150
    %1987 = vmatpush1.bf16.msra.mxu0 %v1149
    %1988 = vmatprep.subr.bf16.mxu0 %v1142
    %1989 = vmatpush1.bf16.msra.mxu0 %v1141
    %1990 = vmatprep.subr.bf16.mxu0 %v1262
    %1991 = vmatpush2.bf16.msra.mxu0 %v1261
    %1992 = vmatprep.subr.bf16.mxu0 %v1254
    %1993 = vmatpush2.bf16.msra.mxu0 %v1253
    %1994 = vmatprep.subr.bf16.mxu0 %v1246
    %1995 = vmatpush2.bf16.msra.mxu0 %v1245
    %1996 = vmatprep.subr.bf16.mxu0 %v1238
    %1997 = vmatpush2.bf16.msra.mxu0 %v1237
    %1998 = vmatprep.subr.bf16.mxu0 %v1230
    %1999 = vmatpush2.bf16.msra.mxu0 %v1229
    %2000 = vmatprep.subr.bf16.mxu0 %v1222
    %2001 = vmatpush2.bf16.msra.mxu0 %v1221
    %2002 = vmatprep.subr.bf16.mxu0 %v1214
    %2003 = vmatpush2.bf16.msra.mxu0 %v1213
    %2004 = vmatprep.subr.bf16.mxu0 %v1206
    %2005 = vmatpush2.bf16.msra.mxu0 %v1205
    %2006 = vmatprep.mubr.bf16.mxu0 %v1850
    %2007 = vmatmul.mubr.bf16.gmra.mxu0 %v1849
    %v2008 = vpop.f32.mrf.mxu0
    %v2009 = vadd.f32 0.0, %v2008
    %v2010 = vpop.f32.mrf.mxu0
    %v2011 = vadd.f32 0.0, %v2010
    %v2012 = vpop.f32.mrf.mxu0
    %v2013 = vpop.f32.mrf.mxu0
    %2014 = vdwg.mxu0
    %v2015 = vadd.f32 %v1841, %v1886
    %v2016 = vadd.f32 %v1842, %v1888
    %v2017 = vadd.f32 %v1843, %v1927
    %v2018 = vadd.f32 %v1844, %v1929
    %v2019 = vadd.f32 %v1845, %v1968
    %v2020 = vadd.f32 %v1846, %v1970
    %v2021 = vadd.f32 %v1847, %v2009
    %v2022 = vadd.f32 %v1848, %v2011
    %v2023 = vxor.u32 %v2015, 2147483648
    %v2024 = vxor.u32 %v2016, 2147483648
    %v2025 = vxor.u32 %v2017, 2147483648
    %v2026 = vxor.u32 %v2018, 2147483648
    %v2027 = vxor.u32 %v2019, 2147483648
    %v2028 = vxor.u32 %v2020, 2147483648
    %v2029 = vmul.f32 %v2023, 1.442695
    %v2030 = vpow.pop %v2029
    %v2031 = vmul.f32 %v2024, 1.442695
    %v2032 = vpow.pop %v2031
    %v2033 = vmul.f32 %v2025, 1.442695
    %v2034 = vpow.pop %v2033
    %v2035 = vmul.f32 %v2026, 1.442695
    %v2036 = vpow.pop %v2035
    %v2037 = vmul.f32 %v2027, 1.442695
    %v2038 = vpow.pop %v2037
    %v2039 = vmul.f32 %v2028, 1.442695
    %v2040 = vpow.pop %v2039
    %v2041 = vadd.f32 %v2030, 1.0
    %v2042 = vadd.f32 %v2032, 1.0
    %v2043 = vadd.f32 %v2034, 1.0
    %v2044 = vadd.f32 %v2036, 1.0
    %v2045 = vadd.f32 %v2038, 1.0
    %v2046 = vadd.f32 %v2040, 1.0
    %v2047 = vrcp.pop %v2041
    %v2048 = vmul.f32 1.0, %v2047
    %v2049 = vrcp.pop %v2042
    %v2050 = vmul.f32 1.0, %v2049
    %v2051 = vrcp.pop %v2043
    %v2052 = vmul.f32 1.0, %v2051
    %v2053 = vrcp.pop %v2044
    %v2054 = vmul.f32 1.0, %v2053
    %v2055 = vrcp.pop %v2045
    %v2056 = vmul.f32 1.0, %v2055
    %v2057 = vrcp.pop %v2046
    %v2058 = vmul.f32 1.0, %v2057
    %v2059 = vtanh.pop %v2021
    %v2060 = vtanh.pop %v2022
    %v2061 = vmul.f32 %v2052, %v1835
    %v2062 = vmul.f32 %v2054, %v1836
    %v2063 = vmul.f32 %v2048, %v2059
    %v2064 = vmul.f32 %v2050, %v2060
    %v2065 = vadd.f32 %v2061, %v2063
    %v2066 = vadd.f32 %v2062, %v2064
    %v2067 = vtanh.pop %v2065
    %v2068 = vtanh.pop %v2066
    %v2069 = vmul.f32 %v2056, %v2067
    %v2070 = vmul.f32 %v2058, %v2068
    %v2071 = vld [vmem:[#allocation2 + $0xc0] sm:$0xff]
    %v2072 = vld [vmem:[#allocation2 + $0xc8] sm:$0xff]
    %v2073 = vld [vmem:[#allocation2 + $0xd0] sm:$0xff]
    %v2074 = vld [vmem:[#allocation2 + $0xd8] sm:$0xff]
    %v2075 = vld [vmem:[#allocation2 + $0xe0] sm:$0xff]
    %v2076 = vld [vmem:[#allocation2 + $0xe8] sm:$0xff]
    %v2077 = vld [vmem:[#allocation2 + $0xf0] sm:$0xff]
    %v2078 = vld [vmem:[#allocation2 + $0xf8] sm:$0xff]
    %v2079 = vpack.c.bf16 %v2069, %v2069
    %v2080 = vpack.c.bf16 %v2070, %v2070
    %2081 = vmatprep.subr.bf16.mxu0 %v1192
    %2082 = vmatpush1.bf16.msra.mxu0 %v1191
    %2083 = vmatprep.subr.bf16.mxu0 %v1184
    %2084 = vmatpush1.bf16.msra.mxu0 %v1183
    %2085 = vmatprep.subr.bf16.mxu0 %v1176
    %2086 = vmatpush1.bf16.msra.mxu0 %v1175
    %2087 = vmatprep.subr.bf16.mxu0 %v1168
    %2088 = vmatpush1.bf16.msra.mxu0 %v1167
    %2089 = vmatprep.subr.bf16.mxu0 %v1160
    %2090 = vmatpush1.bf16.msra.mxu0 %v1159
    %2091 = vmatprep.subr.bf16.mxu0 %v1152
    %2092 = vmatpush1.bf16.msra.mxu0 %v1151
    %2093 = vmatprep.subr.bf16.mxu0 %v1144
    %2094 = vmatpush1.bf16.msra.mxu0 %v1143
    %2095 = vmatprep.subr.bf16.mxu0 %v1136
    %2096 = vmatpush1.bf16.msra.mxu0 %v1135
    %2097 = vmatprep.subr.bf16.mxu0 %v1256
    %2098 = vmatpush2.bf16.msra.mxu0 %v1255
    %2099 = vmatprep.subr.bf16.mxu0 %v1248
    %2100 = vmatpush2.bf16.msra.mxu0 %v1247
    %2101 = vmatprep.subr.bf16.mxu0 %v1240
    %2102 = vmatpush2.bf16.msra.mxu0 %v1239
    %2103 = vmatprep.subr.bf16.mxu0 %v1232
    %2104 = vmatpush2.bf16.msra.mxu0 %v1231
    %2105 = vmatprep.subr.bf16.mxu0 %v1224
    %2106 = vmatpush2.bf16.msra.mxu0 %v1223
    %2107 = vmatprep.subr.bf16.mxu0 %v1216
    %2108 = vmatpush2.bf16.msra.mxu0 %v1215
    %2109 = vmatprep.subr.bf16.mxu0 %v1208
    %2110 = vmatpush2.bf16.msra.mxu0 %v1207
    %2111 = vmatprep.subr.bf16.mxu0 %v1200
    %2112 = vmatpush2.bf16.msra.mxu0 %v1199
    %2113 = vmatprep.mubr.bf16.mxu0 %v2080
    %2114 = vmatmul.mubr.bf16.gmra.mxu0 %v2079
    %v2115 = vpop.f32.mrf.mxu0
    %v2116 = vadd.f32 0.0, %v2115
    %v2117 = vpop.f32.mrf.mxu0
    %v2118 = vadd.f32 0.0, %v2117
    %v2119 = vpop.f32.mrf.mxu0
    %v2120 = vpop.f32.mrf.mxu0
    %2121 = vdwg.mxu0
    %2122 = vmatprep.subr.bf16.mxu0 %v1194
    %2123 = vmatpush1.bf16.msra.mxu0 %v1193
    %2124 = vmatprep.subr.bf16.mxu0 %v1186
    %2125 = vmatpush1.bf16.msra.mxu0 %v1185
    %2126 = vmatprep.subr.bf16.mxu0 %v1178
    %2127 = vmatpush1.bf16.msra.mxu0 %v1177
    %2128 = vmatprep.subr.bf16.mxu0 %v1170
    %2129 = vmatpush1.bf16.msra.mxu0 %v1169
    %2130 = vmatprep.subr.bf16.mxu0 %v1162
    %2131 = vmatpush1.bf16.msra.mxu0 %v1161
    %2132 = vmatprep.subr.bf16.mxu0 %v1154
    %2133 = vmatpush1.bf16.msra.mxu0 %v1153
    %2134 = vmatprep.subr.bf16.mxu0 %v1146
    %2135 = vmatpush1.bf16.msra.mxu0 %v1145
    %2136 = vmatprep.subr.bf16.mxu0 %v1138
    %2137 = vmatpush1.bf16.msra.mxu0 %v1137
    %2138 = vmatprep.subr.bf16.mxu0 %v1258
    %2139 = vmatpush2.bf16.msra.mxu0 %v1257
    %2140 = vmatprep.subr.bf16.mxu0 %v1250
    %2141 = vmatpush2.bf16.msra.mxu0 %v1249
    %2142 = vmatprep.subr.bf16.mxu0 %v1242
    %2143 = vmatpush2.bf16.msra.mxu0 %v1241
    %2144 = vmatprep.subr.bf16.mxu0 %v1234
    %2145 = vmatpush2.bf16.msra.mxu0 %v1233
    %2146 = vmatprep.subr.bf16.mxu0 %v1226
    %2147 = vmatpush2.bf16.msra.mxu0 %v1225
    %2148 = vmatprep.subr.bf16.mxu0 %v1218
    %2149 = vmatpush2.bf16.msra.mxu0 %v1217
    %2150 = vmatprep.subr.bf16.mxu0 %v1210
    %2151 = vmatpush2.bf16.msra.mxu0 %v1209
    %2152 = vmatprep.subr.bf16.mxu0 %v1202
    %2153 = vmatpush2.bf16.msra.mxu0 %v1201
    %2154 = vmatprep.mubr.bf16.mxu0 %v2080
    %2155 = vmatmul.mubr.bf16.gmra.mxu0 %v2079
    %v2156 = vpop.f32.mrf.mxu0
    %v2157 = vadd.f32 0.0, %v2156
    %v2158 = vpop.f32.mrf.mxu0
    %v2159 = vadd.f32 0.0, %v2158
    %v2160 = vpop.f32.mrf.mxu0
    %v2161 = vpop.f32.mrf.mxu0
    %2162 = vdwg.mxu0
    %2163 = vmatprep.subr.bf16.mxu0 %v1196
    %2164 = vmatpush1.bf16.msra.mxu0 %v1195
    %2165 = vmatprep.subr.bf16.mxu0 %v1188
    %2166 = vmatpush1.bf16.msra.mxu0 %v1187
    %2167 = vmatprep.subr.bf16.mxu0 %v1180
    %2168 = vmatpush1.bf16.msra.mxu0 %v1179
    %2169 = vmatprep.subr.bf16.mxu0 %v1172
    %2170 = vmatpush1.bf16.msra.mxu0 %v1171
    %2171 = vmatprep.subr.bf16.mxu0 %v1164
    %2172 = vmatpush1.bf16.msra.mxu0 %v1163
    %2173 = vmatprep.subr.bf16.mxu0 %v1156
    %2174 = vmatpush1.bf16.msra.mxu0 %v1155
    %2175 = vmatprep.subr.bf16.mxu0 %v1148
    %2176 = vmatpush1.bf16.msra.mxu0 %v1147
    %2177 = vmatprep.subr.bf16.mxu0 %v1140
    %2178 = vmatpush1.bf16.msra.mxu0 %v1139
    %2179 = vmatprep.subr.bf16.mxu0 %v1260
    %2180 = vmatpush2.bf16.msra.mxu0 %v1259
    %2181 = vmatprep.subr.bf16.mxu0 %v1252
    %2182 = vmatpush2.bf16.msra.mxu0 %v1251
    %2183 = vmatprep.subr.bf16.mxu0 %v1244
    %2184 = vmatpush2.bf16.msra.mxu0 %v1243
    %2185 = vmatprep.subr.bf16.mxu0 %v1236
    %2186 = vmatpush2.bf16.msra.mxu0 %v1235
    %2187 = vmatprep.subr.bf16.mxu0 %v1228
    %2188 = vmatpush2.bf16.msra.mxu0 %v1227
    %2189 = vmatprep.subr.bf16.mxu0 %v1220
    %2190 = vmatpush2.bf16.msra.mxu0 %v1219
    %2191 = vmatprep.subr.bf16.mxu0 %v1212
    %2192 = vmatpush2.bf16.msra.mxu0 %v1211
    %2193 = vmatprep.subr.bf16.mxu0 %v1204
    %2194 = vmatpush2.bf16.msra.mxu0 %v1203
    %2195 = vmatprep.mubr.bf16.mxu0 %v2080
    %2196 = vmatmul.mubr.bf16.gmra.mxu0 %v2079
    %v2197 = vpop.f32.mrf.mxu0
    %v2198 = vadd.f32 0.0, %v2197
    %v2199 = vpop.f32.mrf.mxu0
    %v2200 = vadd.f32 0.0, %v2199
    %v2201 = vpop.f32.mrf.mxu0
    %v2202 = vpop.f32.mrf.mxu0
    %2203 = vdwg.mxu0
    %2204 = vmatprep.subr.bf16.mxu0 %v1198
    %2205 = vmatpush1.bf16.msra.mxu0 %v1197
    %2206 = vmatprep.subr.bf16.mxu0 %v1190
    %2207 = vmatpush1.bf16.msra.mxu0 %v1189
    %2208 = vmatprep.subr.bf16.mxu0 %v1182
    %2209 = vmatpush1.bf16.msra.mxu0 %v1181
    %2210 = vmatprep.subr.bf16.mxu0 %v1174
    %2211 = vmatpush1.bf16.msra.mxu0 %v1173
    %2212 = vmatprep.subr.bf16.mxu0 %v1166
    %2213 = vmatpush1.bf16.msra.mxu0 %v1165
    %2214 = vmatprep.subr.bf16.mxu0 %v1158
    %2215 = vmatpush1.bf16.msra.mxu0 %v1157
    %2216 = vmatprep.subr.bf16.mxu0 %v1150
    %2217 = vmatpush1.bf16.msra.mxu0 %v1149
    %2218 = vmatprep.subr.bf16.mxu0 %v1142
    %2219 = vmatpush1.bf16.msra.mxu0 %v1141
    %2220 = vmatprep.subr.bf16.mxu0 %v1262
    %2221 = vmatpush2.bf16.msra.mxu0 %v1261
    %2222 = vmatprep.subr.bf16.mxu0 %v1254
    %2223 = vmatpush2.bf16.msra.mxu0 %v1253
    %2224 = vmatprep.subr.bf16.mxu0 %v1246
    %2225 = vmatpush2.bf16.msra.mxu0 %v1245
    %2226 = vmatprep.subr.bf16.mxu0 %v1238
    %2227 = vmatpush2.bf16.msra.mxu0 %v1237
    %2228 = vmatprep.subr.bf16.mxu0 %v1230
    %2229 = vmatpush2.bf16.msra.mxu0 %v1229
    %2230 = vmatprep.subr.bf16.mxu0 %v1222
    %2231 = vmatpush2.bf16.msra.mxu0 %v1221
    %2232 = vmatprep.subr.bf16.mxu0 %v1214
    %2233 = vmatpush2.bf16.msra.mxu0 %v1213
    %2234 = vmatprep.subr.bf16.mxu0 %v1206
    %2235 = vmatpush2.bf16.msra.mxu0 %v1205
    %2236 = vmatprep.mubr.bf16.mxu0 %v2080
    %2237 = vmatmul.mubr.bf16.gmra.mxu0 %v2079
    %v2238 = vpop.f32.mrf.mxu0
    %v2239 = vadd.f32 0.0, %v2238
    %v2240 = vpop.f32.mrf.mxu0
    %v2241 = vadd.f32 0.0, %v2240
    %v2242 = vpop.f32.mrf.mxu0
    %v2243 = vpop.f32.mrf.mxu0
    %2244 = vdwg.mxu0
    %v2245 = vadd.f32 %v2071, %v2116
    %v2246 = vadd.f32 %v2072, %v2118
    %v2247 = vadd.f32 %v2073, %v2157
    %v2248 = vadd.f32 %v2074, %v2159
    %v2249 = vadd.f32 %v2075, %v2198
    %v2250 = vadd.f32 %v2076, %v2200
    %v2251 = vadd.f32 %v2077, %v2239
    %v2252 = vadd.f32 %v2078, %v2241
    %v2253 = vxor.u32 %v2245, 2147483648
    %v2254 = vxor.u32 %v2246, 2147483648
    %v2255 = vxor.u32 %v2247, 2147483648
    %v2256 = vxor.u32 %v2248, 2147483648
    %v2257 = vxor.u32 %v2249, 2147483648
    %v2258 = vxor.u32 %v2250, 2147483648
    %v2259 = vmul.f32 %v2253, 1.442695
    %v2260 = vpow.pop %v2259
    %v2261 = vmul.f32 %v2254, 1.442695
    %v2262 = vpow.pop %v2261
    %v2263 = vmul.f32 %v2255, 1.442695
    %v2264 = vpow.pop %v2263
    %v2265 = vmul.f32 %v2256, 1.442695
    %v2266 = vpow.pop %v2265
    %v2267 = vmul.f32 %v2257, 1.442695
    %v2268 = vpow.pop %v2267
    %v2269 = vmul.f32 %v2258, 1.442695
    %v2270 = vpow.pop %v2269
    %v2271 = vadd.f32 %v2260, 1.0
    %v2272 = vadd.f32 %v2262, 1.0
    %v2273 = vadd.f32 %v2264, 1.0
    %v2274 = vadd.f32 %v2266, 1.0
    %v2275 = vadd.f32 %v2268, 1.0
    %v2276 = vadd.f32 %v2270, 1.0
    %v2277 = vrcp.pop %v2271
    %v2278 = vmul.f32 1.0, %v2277
    %v2279 = vrcp.pop %v2272
    %v2280 = vmul.f32 1.0, %v2279
    %v2281 = vrcp.pop %v2273
    %v2282 = vmul.f32 1.0, %v2281
    %v2283 = vrcp.pop %v2274
    %v2284 = vmul.f32 1.0, %v2283
    %v2285 = vrcp.pop %v2275
    %v2286 = vmul.f32 1.0, %v2285
    %v2287 = vrcp.pop %v2276
    %v2288 = vmul.f32 1.0, %v2287
    %v2289 = vtanh.pop %v2251
    %v2290 = vtanh.pop %v2252
    %v2291 = vmul.f32 %v2282, %v2065
    %v2292 = vmul.f32 %v2284, %v2066
    %v2293 = vmul.f32 %v2278, %v2289
    %v2294 = vmul.f32 %v2280, %v2290
    %v2295 = vadd.f32 %v2291, %v2293
    %v2296 = vadd.f32 %v2292, %v2294
    %v2297 = vtanh.pop %v2295
    %v2298 = vtanh.pop %v2296
    %v2299 = vmul.f32 %v2286, %v2297
    %v2300 = vmul.f32 %v2288, %v2298
    %v2301 = vld [vmem:[#allocation2 + $0x100] sm:$0xff]
    %v2302 = vld [vmem:[#allocation2 + $0x108] sm:$0xff]
    %v2303 = vld [vmem:[#allocation2 + $0x110] sm:$0xff]
    %v2304 = vld [vmem:[#allocation2 + $0x118] sm:$0xff]
    %v2305 = vld [vmem:[#allocation2 + $0x120] sm:$0xff]
    %v2306 = vld [vmem:[#allocation2 + $0x128] sm:$0xff]
    %v2307 = vld [vmem:[#allocation2 + $0x130] sm:$0xff]
    %v2308 = vld [vmem:[#allocation2 + $0x138] sm:$0xff]
    %v2309 = vpack.c.bf16 %v2299, %v2299
    %v2310 = vpack.c.bf16 %v2300, %v2300
    %2311 = vmatprep.subr.bf16.mxu0 %v1192
    %2312 = vmatpush1.bf16.msra.mxu0 %v1191
    %2313 = vmatprep.subr.bf16.mxu0 %v1184
    %2314 = vmatpush1.bf16.msra.mxu0 %v1183
    %2315 = vmatprep.subr.bf16.mxu0 %v1176
    %2316 = vmatpush1.bf16.msra.mxu0 %v1175
    %2317 = vmatprep.subr.bf16.mxu0 %v1168
    %2318 = vmatpush1.bf16.msra.mxu0 %v1167
    %2319 = vmatprep.subr.bf16.mxu0 %v1160
    %2320 = vmatpush1.bf16.msra.mxu0 %v1159
    %2321 = vmatprep.subr.bf16.mxu0 %v1152
    %2322 = vmatpush1.bf16.msra.mxu0 %v1151
    %2323 = vmatprep.subr.bf16.mxu0 %v1144
    %2324 = vmatpush1.bf16.msra.mxu0 %v1143
    %2325 = vmatprep.subr.bf16.mxu0 %v1136
    %2326 = vmatpush1.bf16.msra.mxu0 %v1135
    %2327 = vmatprep.subr.bf16.mxu0 %v1256
    %2328 = vmatpush2.bf16.msra.mxu0 %v1255
    %2329 = vmatprep.subr.bf16.mxu0 %v1248
    %2330 = vmatpush2.bf16.msra.mxu0 %v1247
    %2331 = vmatprep.subr.bf16.mxu0 %v1240
    %2332 = vmatpush2.bf16.msra.mxu0 %v1239
    %2333 = vmatprep.subr.bf16.mxu0 %v1232
    %2334 = vmatpush2.bf16.msra.mxu0 %v1231
    %2335 = vmatprep.subr.bf16.mxu0 %v1224
    %2336 = vmatpush2.bf16.msra.mxu0 %v1223
    %2337 = vmatprep.subr.bf16.mxu0 %v1216
    %2338 = vmatpush2.bf16.msra.mxu0 %v1215
    %2339 = vmatprep.subr.bf16.mxu0 %v1208
    %2340 = vmatpush2.bf16.msra.mxu0 %v1207
    %2341 = vmatprep.subr.bf16.mxu0 %v1200
    %2342 = vmatpush2.bf16.msra.mxu0 %v1199
    %2343 = vmatprep.mubr.bf16.mxu0 %v2310
    %2344 = vmatmul.mubr.bf16.gmra.mxu0 %v2309
    %v2345 = vpop.f32.mrf.mxu0
    %v2346 = vadd.f32 0.0, %v2345
    %v2347 = vpop.f32.mrf.mxu0
    %v2348 = vadd.f32 0.0, %v2347
    %v2349 = vpop.f32.mrf.mxu0
    %v2350 = vpop.f32.mrf.mxu0
    %2351 = vdwg.mxu0
    %2352 = vmatprep.subr.bf16.mxu0 %v1194
    %2353 = vmatpush1.bf16.msra.mxu0 %v1193
    %2354 = vmatprep.subr.bf16.mxu0 %v1186
    %2355 = vmatpush1.bf16.msra.mxu0 %v1185
    %2356 = vmatprep.subr.bf16.mxu0 %v1178
    %2357 = vmatpush1.bf16.msra.mxu0 %v1177
    %2358 = vmatprep.subr.bf16.mxu0 %v1170
    %2359 = vmatpush1.bf16.msra.mxu0 %v1169
    %2360 = vmatprep.subr.bf16.mxu0 %v1162
    %2361 = vmatpush1.bf16.msra.mxu0 %v1161
    %2362 = vmatprep.subr.bf16.mxu0 %v1154
    %2363 = vmatpush1.bf16.msra.mxu0 %v1153
    %2364 = vmatprep.subr.bf16.mxu0 %v1146
    %2365 = vmatpush1.bf16.msra.mxu0 %v1145
    %2366 = vmatprep.subr.bf16.mxu0 %v1138
    %2367 = vmatpush1.bf16.msra.mxu0 %v1137
    %2368 = vmatprep.subr.bf16.mxu0 %v1258
    %2369 = vmatpush2.bf16.msra.mxu0 %v1257
    %2370 = vmatprep.subr.bf16.mxu0 %v1250
    %2371 = vmatpush2.bf16.msra.mxu0 %v1249
    %2372 = vmatprep.subr.bf16.mxu0 %v1242
    %2373 = vmatpush2.bf16.msra.mxu0 %v1241
    %2374 = vmatprep.subr.bf16.mxu0 %v1234
    %2375 = vmatpush2.bf16.msra.mxu0 %v1233
    %2376 = vmatprep.subr.bf16.mxu0 %v1226
    %2377 = vmatpush2.bf16.msra.mxu0 %v1225
    %2378 = vmatprep.subr.bf16.mxu0 %v1218
    %2379 = vmatpush2.bf16.msra.mxu0 %v1217
    %2380 = vmatprep.subr.bf16.mxu0 %v1210
    %2381 = vmatpush2.bf16.msra.mxu0 %v1209
    %2382 = vmatprep.subr.bf16.mxu0 %v1202
    %2383 = vmatpush2.bf16.msra.mxu0 %v1201
    %2384 = vmatprep.mubr.bf16.mxu0 %v2310
    %2385 = vmatmul.mubr.bf16.gmra.mxu0 %v2309
    %v2386 = vpop.f32.mrf.mxu0
    %v2387 = vadd.f32 0.0, %v2386
    %v2388 = vpop.f32.mrf.mxu0
    %v2389 = vadd.f32 0.0, %v2388
    %v2390 = vpop.f32.mrf.mxu0
    %v2391 = vpop.f32.mrf.mxu0
    %2392 = vdwg.mxu0
    %2393 = vmatprep.subr.bf16.mxu0 %v1196
    %2394 = vmatpush1.bf16.msra.mxu0 %v1195
    %2395 = vmatprep.subr.bf16.mxu0 %v1188
    %2396 = vmatpush1.bf16.msra.mxu0 %v1187
    %2397 = vmatprep.subr.bf16.mxu0 %v1180
    %2398 = vmatpush1.bf16.msra.mxu0 %v1179
    %2399 = vmatprep.subr.bf16.mxu0 %v1172
    %2400 = vmatpush1.bf16.msra.mxu0 %v1171
    %2401 = vmatprep.subr.bf16.mxu0 %v1164
    %2402 = vmatpush1.bf16.msra.mxu0 %v1163
    %2403 = vmatprep.subr.bf16.mxu0 %v1156
    %2404 = vmatpush1.bf16.msra.mxu0 %v1155
    %2405 = vmatprep.subr.bf16.mxu0 %v1148
    %2406 = vmatpush1.bf16.msra.mxu0 %v1147
    %2407 = vmatprep.subr.bf16.mxu0 %v1140
    %2408 = vmatpush1.bf16.msra.mxu0 %v1139
    %2409 = vmatprep.subr.bf16.mxu0 %v1260
    %2410 = vmatpush2.bf16.msra.mxu0 %v1259
    %2411 = vmatprep.subr.bf16.mxu0 %v1252
    %2412 = vmatpush2.bf16.msra.mxu0 %v1251
    %2413 = vmatprep.subr.bf16.mxu0 %v1244
    %2414 = vmatpush2.bf16.msra.mxu0 %v1243
    %2415 = vmatprep.subr.bf16.mxu0 %v1236
    %2416 = vmatpush2.bf16.msra.mxu0 %v1235
    %2417 = vmatprep.subr.bf16.mxu0 %v1228
    %2418 = vmatpush2.bf16.msra.mxu0 %v1227
    %2419 = vmatprep.subr.bf16.mxu0 %v1220
    %2420 = vmatpush2.bf16.msra.mxu0 %v1219
    %2421 = vmatprep.subr.bf16.mxu0 %v1212
    %2422 = vmatpush2.bf16.msra.mxu0 %v1211
    %2423 = vmatprep.subr.bf16.mxu0 %v1204
    %2424 = vmatpush2.bf16.msra.mxu0 %v1203
    %2425 = vmatprep.mubr.bf16.mxu0 %v2310
    %2426 = vmatmul.mubr.bf16.gmra.mxu0 %v2309
    %v2427 = vpop.f32.mrf.mxu0
    %v2428 = vadd.f32 0.0, %v2427
    %v2429 = vpop.f32.mrf.mxu0
    %v2430 = vadd.f32 0.0, %v2429
    %v2431 = vpop.f32.mrf.mxu0
    %v2432 = vpop.f32.mrf.mxu0
    %2433 = vdwg.mxu0
    %2434 = vmatprep.subr.bf16.mxu0 %v1198
    %2435 = vmatpush1.bf16.msra.mxu0 %v1197
    %2436 = vmatprep.subr.bf16.mxu0 %v1190
    %2437 = vmatpush1.bf16.msra.mxu0 %v1189
    %2438 = vmatprep.subr.bf16.mxu0 %v1182
    %2439 = vmatpush1.bf16.msra.mxu0 %v1181
    %2440 = vmatprep.subr.bf16.mxu0 %v1174
    %2441 = vmatpush1.bf16.msra.mxu0 %v1173
    %2442 = vmatprep.subr.bf16.mxu0 %v1166
    %2443 = vmatpush1.bf16.msra.mxu0 %v1165
    %2444 = vmatprep.subr.bf16.mxu0 %v1158
    %2445 = vmatpush1.bf16.msra.mxu0 %v1157
    %2446 = vmatprep.subr.bf16.mxu0 %v1150
    %2447 = vmatpush1.bf16.msra.mxu0 %v1149
    %2448 = vmatprep.subr.bf16.mxu0 %v1142
    %2449 = vmatpush1.bf16.msra.mxu0 %v1141
    %2450 = vmatprep.subr.bf16.mxu0 %v1262
    %2451 = vmatpush2.bf16.msra.mxu0 %v1261
    %2452 = vmatprep.subr.bf16.mxu0 %v1254
    %2453 = vmatpush2.bf16.msra.mxu0 %v1253
    %2454 = vmatprep.subr.bf16.mxu0 %v1246
    %2455 = vmatpush2.bf16.msra.mxu0 %v1245
    %2456 = vmatprep.subr.bf16.mxu0 %v1238
    %2457 = vmatpush2.bf16.msra.mxu0 %v1237
    %2458 = vmatprep.subr.bf16.mxu0 %v1230
    %2459 = vmatpush2.bf16.msra.mxu0 %v1229
    %2460 = vmatprep.subr.bf16.mxu0 %v1222
    %2461 = vmatpush2.bf16.msra.mxu0 %v1221
    %2462 = vmatprep.subr.bf16.mxu0 %v1214
    %2463 = vmatpush2.bf16.msra.mxu0 %v1213
    %2464 = vmatprep.subr.bf16.mxu0 %v1206
    %2465 = vmatpush2.bf16.msra.mxu0 %v1205
    %2466 = vmatprep.mubr.bf16.mxu0 %v2310
    %2467 = vmatmul.mubr.bf16.gmra.mxu0 %v2309
    %v2468 = vpop.f32.mrf.mxu0
    %v2469 = vadd.f32 0.0, %v2468
    %v2470 = vpop.f32.mrf.mxu0
    %v2471 = vadd.f32 0.0, %v2470
    %v2472 = vpop.f32.mrf.mxu0
    %v2473 = vpop.f32.mrf.mxu0
    %2474 = vdwg.mxu0
    %v2475 = vadd.f32 %v2301, %v2346
    %v2476 = vadd.f32 %v2302, %v2348
    %v2477 = vadd.f32 %v2303, %v2387
    %v2478 = vadd.f32 %v2304, %v2389
    %v2479 = vadd.f32 %v2305, %v2428
    %v2480 = vadd.f32 %v2306, %v2430
    %v2481 = vadd.f32 %v2307, %v2469
    %v2482 = vadd.f32 %v2308, %v2471
    %v2483 = vxor.u32 %v2475, 2147483648
    %v2484 = vxor.u32 %v2476, 2147483648
    %v2485 = vxor.u32 %v2477, 2147483648
    %v2486 = vxor.u32 %v2478, 2147483648
    %v2487 = vxor.u32 %v2479, 2147483648
    %v2488 = vxor.u32 %v2480, 2147483648
    %v2489 = vmul.f32 %v2483, 1.442695
    %v2490 = vpow.pop %v2489
    %v2491 = vmul.f32 %v2484, 1.442695
    %v2492 = vpow.pop %v2491
    %v2493 = vmul.f32 %v2485, 1.442695
    %v2494 = vpow.pop %v2493
    %v2495 = vmul.f32 %v2486, 1.442695
    %v2496 = vpow.pop %v2495
    %v2497 = vmul.f32 %v2487, 1.442695
    %v2498 = vpow.pop %v2497
    %v2499 = vmul.f32 %v2488, 1.442695
    %v2500 = vpow.pop %v2499
    %v2501 = vadd.f32 %v2490, 1.0
    %v2502 = vadd.f32 %v2492, 1.0
    %v2503 = vadd.f32 %v2494, 1.0
    %v2504 = vadd.f32 %v2496, 1.0
    %v2505 = vadd.f32 %v2498, 1.0
    %v2506 = vadd.f32 %v2500, 1.0
    %v2507 = vrcp.pop %v2501
    %v2508 = vmul.f32 1.0, %v2507
    %v2509 = vrcp.pop %v2502
    %v2510 = vmul.f32 1.0, %v2509
    %v2511 = vrcp.pop %v2503
    %v2512 = vmul.f32 1.0, %v2511
    %v2513 = vrcp.pop %v2504
    %v2514 = vmul.f32 1.0, %v2513
    %v2515 = vrcp.pop %v2505
    %v2516 = vmul.f32 1.0, %v2515
    %v2517 = vrcp.pop %v2506
    %v2518 = vmul.f32 1.0, %v2517
    %v2519 = vtanh.pop %v2481
    %v2520 = vtanh.pop %v2482
    %v2521 = vmul.f32 %v2512, %v2295
    %v2522 = vmul.f32 %v2514, %v2296
    %v2523 = vmul.f32 %v2508, %v2519
    %v2524 = vmul.f32 %v2510, %v2520
    %v2525 = vadd.f32 %v2521, %v2523
    %v2526 = vadd.f32 %v2522, %v2524
    %v2527 = vtanh.pop %v2525
    %v2528 = vtanh.pop %v2526
    %v2529 = vmul.f32 %v2516, %v2527
    %v2530 = vmul.f32 %v2518, %v2528
    %v2531 = vld [vmem:[#allocation2 + $0x140] sm:$0xff]
    %v2532 = vld [vmem:[#allocation2 + $0x148] sm:$0xff]
    %v2533 = vld [vmem:[#allocation2 + $0x150] sm:$0xff]
    %v2534 = vld [vmem:[#allocation2 + $0x158] sm:$0xff]
    %v2535 = vld [vmem:[#allocation2 + $0x160] sm:$0xff]
    %v2536 = vld [vmem:[#allocation2 + $0x168] sm:$0xff]
    %v2537 = vld [vmem:[#allocation2 + $0x170] sm:$0xff]
    %v2538 = vld [vmem:[#allocation2 + $0x178] sm:$0xff]
    %v2539 = vpack.c.bf16 %v2529, %v2529
    %v2540 = vpack.c.bf16 %v2530, %v2530
    %2541 = vmatprep.subr.bf16.mxu0 %v1192
    %2542 = vmatpush1.bf16.msra.mxu0 %v1191
    %2543 = vmatprep.subr.bf16.mxu0 %v1184
    %2544 = vmatpush1.bf16.msra.mxu0 %v1183
    %2545 = vmatprep.subr.bf16.mxu0 %v1176
    %2546 = vmatpush1.bf16.msra.mxu0 %v1175
    %2547 = vmatprep.subr.bf16.mxu0 %v1168
    %2548 = vmatpush1.bf16.msra.mxu0 %v1167
    %2549 = vmatprep.subr.bf16.mxu0 %v1160
    %2550 = vmatpush1.bf16.msra.mxu0 %v1159
    %2551 = vmatprep.subr.bf16.mxu0 %v1152
    %2552 = vmatpush1.bf16.msra.mxu0 %v1151
    %2553 = vmatprep.subr.bf16.mxu0 %v1144
    %2554 = vmatpush1.bf16.msra.mxu0 %v1143
    %2555 = vmatprep.subr.bf16.mxu0 %v1136
    %2556 = vmatpush1.bf16.msra.mxu0 %v1135
    %2557 = vmatprep.subr.bf16.mxu0 %v1256
    %2558 = vmatpush2.bf16.msra.mxu0 %v1255
    %2559 = vmatprep.subr.bf16.mxu0 %v1248
    %2560 = vmatpush2.bf16.msra.mxu0 %v1247
    %2561 = vmatprep.subr.bf16.mxu0 %v1240
    %2562 = vmatpush2.bf16.msra.mxu0 %v1239
    %2563 = vmatprep.subr.bf16.mxu0 %v1232
    %2564 = vmatpush2.bf16.msra.mxu0 %v1231
    %2565 = vmatprep.subr.bf16.mxu0 %v1224
    %2566 = vmatpush2.bf16.msra.mxu0 %v1223
    %2567 = vmatprep.subr.bf16.mxu0 %v1216
    %2568 = vmatpush2.bf16.msra.mxu0 %v1215
    %2569 = vmatprep.subr.bf16.mxu0 %v1208
    %2570 = vmatpush2.bf16.msra.mxu0 %v1207
    %2571 = vmatprep.subr.bf16.mxu0 %v1200
    %2572 = vmatpush2.bf16.msra.mxu0 %v1199
    %2573 = vmatprep.mubr.bf16.mxu0 %v2540
    %2574 = vmatmul.mubr.bf16.gmra.mxu0 %v2539
    %v2575 = vpop.f32.mrf.mxu0
    %v2576 = vadd.f32 0.0, %v2575
    %v2577 = vpop.f32.mrf.mxu0
    %v2578 = vadd.f32 0.0, %v2577
    %v2579 = vpop.f32.mrf.mxu0
    %v2580 = vpop.f32.mrf.mxu0
    %2581 = vdwg.mxu0
    %2582 = vmatprep.subr.bf16.mxu0 %v1194
    %2583 = vmatpush1.bf16.msra.mxu0 %v1193
    %2584 = vmatprep.subr.bf16.mxu0 %v1186
    %2585 = vmatpush1.bf16.msra.mxu0 %v1185
    %2586 = vmatprep.subr.bf16.mxu0 %v1178
    %2587 = vmatpush1.bf16.msra.mxu0 %v1177
    %2588 = vmatprep.subr.bf16.mxu0 %v1170
    %2589 = vmatpush1.bf16.msra.mxu0 %v1169
    %2590 = vmatprep.subr.bf16.mxu0 %v1162
    %2591 = vmatpush1.bf16.msra.mxu0 %v1161
    %2592 = vmatprep.subr.bf16.mxu0 %v1154
    %2593 = vmatpush1.bf16.msra.mxu0 %v1153
    %2594 = vmatprep.subr.bf16.mxu0 %v1146
    %2595 = vmatpush1.bf16.msra.mxu0 %v1145
    %2596 = vmatprep.subr.bf16.mxu0 %v1138
    %2597 = vmatpush1.bf16.msra.mxu0 %v1137
    %2598 = vmatprep.subr.bf16.mxu0 %v1258
    %2599 = vmatpush2.bf16.msra.mxu0 %v1257
    %2600 = vmatprep.subr.bf16.mxu0 %v1250
    %2601 = vmatpush2.bf16.msra.mxu0 %v1249
    %2602 = vmatprep.subr.bf16.mxu0 %v1242
    %2603 = vmatpush2.bf16.msra.mxu0 %v1241
    %2604 = vmatprep.subr.bf16.mxu0 %v1234
    %2605 = vmatpush2.bf16.msra.mxu0 %v1233
    %2606 = vmatprep.subr.bf16.mxu0 %v1226
    %2607 = vmatpush2.bf16.msra.mxu0 %v1225
    %2608 = vmatprep.subr.bf16.mxu0 %v1218
    %2609 = vmatpush2.bf16.msra.mxu0 %v1217
    %2610 = vmatprep.subr.bf16.mxu0 %v1210
    %2611 = vmatpush2.bf16.msra.mxu0 %v1209
    %2612 = vmatprep.subr.bf16.mxu0 %v1202
    %2613 = vmatpush2.bf16.msra.mxu0 %v1201
    %2614 = vmatprep.mubr.bf16.mxu0 %v2540
    %2615 = vmatmul.mubr.bf16.gmra.mxu0 %v2539
    %v2616 = vpop.f32.mrf.mxu0
    %v2617 = vadd.f32 0.0, %v2616
    %v2618 = vpop.f32.mrf.mxu0
    %v2619 = vadd.f32 0.0, %v2618
    %v2620 = vpop.f32.mrf.mxu0
    %v2621 = vpop.f32.mrf.mxu0
    %2622 = vdwg.mxu0
    %2623 = vmatprep.subr.bf16.mxu0 %v1196
    %2624 = vmatpush1.bf16.msra.mxu0 %v1195
    %2625 = vmatprep.subr.bf16.mxu0 %v1188
    %2626 = vmatpush1.bf16.msra.mxu0 %v1187
    %2627 = vmatprep.subr.bf16.mxu0 %v1180
    %2628 = vmatpush1.bf16.msra.mxu0 %v1179
    %2629 = vmatprep.subr.bf16.mxu0 %v1172
    %2630 = vmatpush1.bf16.msra.mxu0 %v1171
    %2631 = vmatprep.subr.bf16.mxu0 %v1164
    %2632 = vmatpush1.bf16.msra.mxu0 %v1163
    %2633 = vmatprep.subr.bf16.mxu0 %v1156
    %2634 = vmatpush1.bf16.msra.mxu0 %v1155
    %2635 = vmatprep.subr.bf16.mxu0 %v1148
    %2636 = vmatpush1.bf16.msra.mxu0 %v1147
    %2637 = vmatprep.subr.bf16.mxu0 %v1140
    %2638 = vmatpush1.bf16.msra.mxu0 %v1139
    %2639 = vmatprep.subr.bf16.mxu0 %v1260
    %2640 = vmatpush2.bf16.msra.mxu0 %v1259
    %2641 = vmatprep.subr.bf16.mxu0 %v1252
    %2642 = vmatpush2.bf16.msra.mxu0 %v1251
    %2643 = vmatprep.subr.bf16.mxu0 %v1244
    %2644 = vmatpush2.bf16.msra.mxu0 %v1243
    %2645 = vmatprep.subr.bf16.mxu0 %v1236
    %2646 = vmatpush2.bf16.msra.mxu0 %v1235
    %2647 = vmatprep.subr.bf16.mxu0 %v1228
    %2648 = vmatpush2.bf16.msra.mxu0 %v1227
    %2649 = vmatprep.subr.bf16.mxu0 %v1220
    %2650 = vmatpush2.bf16.msra.mxu0 %v1219
    %2651 = vmatprep.subr.bf16.mxu0 %v1212
    %2652 = vmatpush2.bf16.msra.mxu0 %v1211
    %2653 = vmatprep.subr.bf16.mxu0 %v1204
    %2654 = vmatpush2.bf16.msra.mxu0 %v1203
    %2655 = vmatprep.mubr.bf16.mxu0 %v2540
    %2656 = vmatmul.mubr.bf16.gmra.mxu0 %v2539
    %v2657 = vpop.f32.mrf.mxu0
    %v2658 = vadd.f32 0.0, %v2657
    %v2659 = vpop.f32.mrf.mxu0
    %v2660 = vadd.f32 0.0, %v2659
    %v2661 = vpop.f32.mrf.mxu0
    %v2662 = vpop.f32.mrf.mxu0
    %2663 = vdwg.mxu0
    %2664 = vmatprep.subr.bf16.mxu0 %v1198
    %2665 = vmatpush1.bf16.msra.mxu0 %v1197
    %2666 = vmatprep.subr.bf16.mxu0 %v1190
    %2667 = vmatpush1.bf16.msra.mxu0 %v1189
    %2668 = vmatprep.subr.bf16.mxu0 %v1182
    %2669 = vmatpush1.bf16.msra.mxu0 %v1181
    %2670 = vmatprep.subr.bf16.mxu0 %v1174
    %2671 = vmatpush1.bf16.msra.mxu0 %v1173
    %2672 = vmatprep.subr.bf16.mxu0 %v1166
    %2673 = vmatpush1.bf16.msra.mxu0 %v1165
    %2674 = vmatprep.subr.bf16.mxu0 %v1158
    %2675 = vmatpush1.bf16.msra.mxu0 %v1157
    %2676 = vmatprep.subr.bf16.mxu0 %v1150
    %2677 = vmatpush1.bf16.msra.mxu0 %v1149
    %2678 = vmatprep.subr.bf16.mxu0 %v1142
    %2679 = vmatpush1.bf16.msra.mxu0 %v1141
    %2680 = vmatprep.subr.bf16.mxu0 %v1262
    %2681 = vmatpush2.bf16.msra.mxu0 %v1261
    %2682 = vmatprep.subr.bf16.mxu0 %v1254
    %2683 = vmatpush2.bf16.msra.mxu0 %v1253
    %2684 = vmatprep.subr.bf16.mxu0 %v1246
    %2685 = vmatpush2.bf16.msra.mxu0 %v1245
    %2686 = vmatprep.subr.bf16.mxu0 %v1238
    %2687 = vmatpush2.bf16.msra.mxu0 %v1237
    %2688 = vmatprep.subr.bf16.mxu0 %v1230
    %2689 = vmatpush2.bf16.msra.mxu0 %v1229
    %2690 = vmatprep.subr.bf16.mxu0 %v1222
    %2691 = vmatpush2.bf16.msra.mxu0 %v1221
    %2692 = vmatprep.subr.bf16.mxu0 %v1214
    %2693 = vmatpush2.bf16.msra.mxu0 %v1213
    %2694 = vmatprep.subr.bf16.mxu0 %v1206
    %2695 = vmatpush2.bf16.msra.mxu0 %v1205
    %2696 = vmatprep.mubr.bf16.mxu0 %v2540
    %2697 = vmatmul.mubr.bf16.gmra.mxu0 %v2539
    %v2698 = vpop.f32.mrf.mxu0
    %v2699 = vadd.f32 0.0, %v2698
    %v2700 = vpop.f32.mrf.mxu0
    %v2701 = vadd.f32 0.0, %v2700
    %v2702 = vpop.f32.mrf.mxu0
    %v2703 = vpop.f32.mrf.mxu0
    %2704 = vdwg.mxu0
    %v2705 = vadd.f32 %v2531, %v2576
    %v2706 = vadd.f32 %v2532, %v2578
    %v2707 = vadd.f32 %v2533, %v2617
    %v2708 = vadd.f32 %v2534, %v2619
    %v2709 = vadd.f32 %v2535, %v2658
    %v2710 = vadd.f32 %v2536, %v2660
    %v2711 = vadd.f32 %v2537, %v2699
    %v2712 = vadd.f32 %v2538, %v2701
    %v2713 = vxor.u32 %v2705, 2147483648
    %v2714 = vxor.u32 %v2706, 2147483648
    %v2715 = vxor.u32 %v2707, 2147483648
    %v2716 = vxor.u32 %v2708, 2147483648
    %v2717 = vxor.u32 %v2709, 2147483648
    %v2718 = vxor.u32 %v2710, 2147483648
    %v2719 = vmul.f32 %v2713, 1.442695
    %v2720 = vpow.pop %v2719
    %v2721 = vmul.f32 %v2714, 1.442695
    %v2722 = vpow.pop %v2721
    %v2723 = vmul.f32 %v2715, 1.442695
    %v2724 = vpow.pop %v2723
    %v2725 = vmul.f32 %v2716, 1.442695
    %v2726 = vpow.pop %v2725
    %v2727 = vmul.f32 %v2717, 1.442695
    %v2728 = vpow.pop %v2727
    %v2729 = vmul.f32 %v2718, 1.442695
    %v2730 = vpow.pop %v2729
    %v2731 = vadd.f32 %v2720, 1.0
    %v2732 = vadd.f32 %v2722, 1.0
    %v2733 = vadd.f32 %v2724, 1.0
    %v2734 = vadd.f32 %v2726, 1.0
    %v2735 = vadd.f32 %v2728, 1.0
    %v2736 = vadd.f32 %v2730, 1.0
    %v2737 = vrcp.pop %v2731
    %v2738 = vmul.f32 1.0, %v2737
    %v2739 = vrcp.pop %v2732
    %v2740 = vmul.f32 1.0, %v2739
    %v2741 = vrcp.pop %v2733
    %v2742 = vmul.f32 1.0, %v2741
    %v2743 = vrcp.pop %v2734
    %v2744 = vmul.f32 1.0, %v2743
    %v2745 = vrcp.pop %v2735
    %v2746 = vmul.f32 1.0, %v2745
    %v2747 = vrcp.pop %v2736
    %v2748 = vmul.f32 1.0, %v2747
    %v2749 = vtanh.pop %v2711
    %v2750 = vtanh.pop %v2712
    %v2751 = vmul.f32 %v2742, %v2525
    %v2752 = vmul.f32 %v2744, %v2526
    %v2753 = vmul.f32 %v2738, %v2749
    %v2754 = vmul.f32 %v2740, %v2750
    %v2755 = vadd.f32 %v2751, %v2753
    %v2756 = vadd.f32 %v2752, %v2754
    %v2757 = vtanh.pop %v2755
    %v2758 = vtanh.pop %v2756
    %v2759 = vmul.f32 %v2746, %v2757
    %v2760 = vmul.f32 %v2748, %v2758
    %v2761 = vld [vmem:[#allocation2 + $0x180] sm:$0xff]
    %v2762 = vld [vmem:[#allocation2 + $0x188] sm:$0xff]
    %v2763 = vld [vmem:[#allocation2 + $0x190] sm:$0xff]
    %v2764 = vld [vmem:[#allocation2 + $0x198] sm:$0xff]
    %v2765 = vld [vmem:[#allocation2 + $0x1a0] sm:$0xff]
    %v2766 = vld [vmem:[#allocation2 + $0x1a8] sm:$0xff]
    %v2767 = vld [vmem:[#allocation2 + $0x1b0] sm:$0xff]
    %v2768 = vld [vmem:[#allocation2 + $0x1b8] sm:$0xff]
    %v2769 = vpack.c.bf16 %v2759, %v2759
    %v2770 = vpack.c.bf16 %v2760, %v2760
    %2771 = vmatprep.subr.bf16.mxu0 %v1192
    %2772 = vmatpush1.bf16.msra.mxu0 %v1191
    %2773 = vmatprep.subr.bf16.mxu0 %v1184
    %2774 = vmatpush1.bf16.msra.mxu0 %v1183
    %2775 = vmatprep.subr.bf16.mxu0 %v1176
    %2776 = vmatpush1.bf16.msra.mxu0 %v1175
    %2777 = vmatprep.subr.bf16.mxu0 %v1168
    %2778 = vmatpush1.bf16.msra.mxu0 %v1167
    %2779 = vmatprep.subr.bf16.mxu0 %v1160
    %2780 = vmatpush1.bf16.msra.mxu0 %v1159
    %2781 = vmatprep.subr.bf16.mxu0 %v1152
    %2782 = vmatpush1.bf16.msra.mxu0 %v1151
    %2783 = vmatprep.subr.bf16.mxu0 %v1144
    %2784 = vmatpush1.bf16.msra.mxu0 %v1143
    %2785 = vmatprep.subr.bf16.mxu0 %v1136
    %2786 = vmatpush1.bf16.msra.mxu0 %v1135
    %2787 = vmatprep.subr.bf16.mxu0 %v1256
    %2788 = vmatpush2.bf16.msra.mxu0 %v1255
    %2789 = vmatprep.subr.bf16.mxu0 %v1248
    %2790 = vmatpush2.bf16.msra.mxu0 %v1247
    %2791 = vmatprep.subr.bf16.mxu0 %v1240
    %2792 = vmatpush2.bf16.msra.mxu0 %v1239
    %2793 = vmatprep.subr.bf16.mxu0 %v1232
    %2794 = vmatpush2.bf16.msra.mxu0 %v1231
    %2795 = vmatprep.subr.bf16.mxu0 %v1224
    %2796 = vmatpush2.bf16.msra.mxu0 %v1223
    %2797 = vmatprep.subr.bf16.mxu0 %v1216
    %2798 = vmatpush2.bf16.msra.mxu0 %v1215
    %2799 = vmatprep.subr.bf16.mxu0 %v1208
    %2800 = vmatpush2.bf16.msra.mxu0 %v1207
    %2801 = vmatprep.subr.bf16.mxu0 %v1200
    %2802 = vmatpush2.bf16.msra.mxu0 %v1199
    %2803 = vmatprep.mubr.bf16.mxu0 %v2770
    %2804 = vmatmul.mubr.bf16.gmra.mxu0 %v2769
    %v2805 = vpop.f32.mrf.mxu0
    %v2806 = vadd.f32 0.0, %v2805
    %v2807 = vpop.f32.mrf.mxu0
    %v2808 = vadd.f32 0.0, %v2807
    %v2809 = vpop.f32.mrf.mxu0
    %v2810 = vpop.f32.mrf.mxu0
    %2811 = vdwg.mxu0
    %2812 = vmatprep.subr.bf16.mxu0 %v1194
    %2813 = vmatpush1.bf16.msra.mxu0 %v1193
    %2814 = vmatprep.subr.bf16.mxu0 %v1186
    %2815 = vmatpush1.bf16.msra.mxu0 %v1185
    %2816 = vmatprep.subr.bf16.mxu0 %v1178
    %2817 = vmatpush1.bf16.msra.mxu0 %v1177
    %2818 = vmatprep.subr.bf16.mxu0 %v1170
    %2819 = vmatpush1.bf16.msra.mxu0 %v1169
    %2820 = vmatprep.subr.bf16.mxu0 %v1162
    %2821 = vmatpush1.bf16.msra.mxu0 %v1161
    %2822 = vmatprep.subr.bf16.mxu0 %v1154
    %2823 = vmatpush1.bf16.msra.mxu0 %v1153
    %2824 = vmatprep.subr.bf16.mxu0 %v1146
    %2825 = vmatpush1.bf16.msra.mxu0 %v1145
    %2826 = vmatprep.subr.bf16.mxu0 %v1138
    %2827 = vmatpush1.bf16.msra.mxu0 %v1137
    %2828 = vmatprep.subr.bf16.mxu0 %v1258
    %2829 = vmatpush2.bf16.msra.mxu0 %v1257
    %2830 = vmatprep.subr.bf16.mxu0 %v1250
    %2831 = vmatpush2.bf16.msra.mxu0 %v1249
    %2832 = vmatprep.subr.bf16.mxu0 %v1242
    %2833 = vmatpush2.bf16.msra.mxu0 %v1241
    %2834 = vmatprep.subr.bf16.mxu0 %v1234
    %2835 = vmatpush2.bf16.msra.mxu0 %v1233
    %2836 = vmatprep.subr.bf16.mxu0 %v1226
    %2837 = vmatpush2.bf16.msra.mxu0 %v1225
    %2838 = vmatprep.subr.bf16.mxu0 %v1218
    %2839 = vmatpush2.bf16.msra.mxu0 %v1217
    %2840 = vmatprep.subr.bf16.mxu0 %v1210
    %2841 = vmatpush2.bf16.msra.mxu0 %v1209
    %2842 = vmatprep.subr.bf16.mxu0 %v1202
    %2843 = vmatpush2.bf16.msra.mxu0 %v1201
    %2844 = vmatprep.mubr.bf16.mxu0 %v2770
    %2845 = vmatmul.mubr.bf16.gmra.mxu0 %v2769
    %v2846 = vpop.f32.mrf.mxu0
    %v2847 = vadd.f32 0.0, %v2846
    %v2848 = vpop.f32.mrf.mxu0
    %v2849 = vadd.f32 0.0, %v2848
    %v2850 = vpop.f32.mrf.mxu0
    %v2851 = vpop.f32.mrf.mxu0
    %2852 = vdwg.mxu0
    %2853 = vmatprep.subr.bf16.mxu0 %v1196
    %2854 = vmatpush1.bf16.msra.mxu0 %v1195
    %2855 = vmatprep.subr.bf16.mxu0 %v1188
    %2856 = vmatpush1.bf16.msra.mxu0 %v1187
    %2857 = vmatprep.subr.bf16.mxu0 %v1180
    %2858 = vmatpush1.bf16.msra.mxu0 %v1179
    %2859 = vmatprep.subr.bf16.mxu0 %v1172
    %2860 = vmatpush1.bf16.msra.mxu0 %v1171
    %2861 = vmatprep.subr.bf16.mxu0 %v1164
    %2862 = vmatpush1.bf16.msra.mxu0 %v1163
    %2863 = vmatprep.subr.bf16.mxu0 %v1156
    %2864 = vmatpush1.bf16.msra.mxu0 %v1155
    %2865 = vmatprep.subr.bf16.mxu0 %v1148
    %2866 = vmatpush1.bf16.msra.mxu0 %v1147
    %2867 = vmatprep.subr.bf16.mxu0 %v1140
    %2868 = vmatpush1.bf16.msra.mxu0 %v1139
    %2869 = vmatprep.subr.bf16.mxu0 %v1260
    %2870 = vmatpush2.bf16.msra.mxu0 %v1259
    %2871 = vmatprep.subr.bf16.mxu0 %v1252
    %2872 = vmatpush2.bf16.msra.mxu0 %v1251
    %2873 = vmatprep.subr.bf16.mxu0 %v1244
    %2874 = vmatpush2.bf16.msra.mxu0 %v1243
    %2875 = vmatprep.subr.bf16.mxu0 %v1236
    %2876 = vmatpush2.bf16.msra.mxu0 %v1235
    %2877 = vmatprep.subr.bf16.mxu0 %v1228
    %2878 = vmatpush2.bf16.msra.mxu0 %v1227
    %2879 = vmatprep.subr.bf16.mxu0 %v1220
    %2880 = vmatpush2.bf16.msra.mxu0 %v1219
    %2881 = vmatprep.subr.bf16.mxu0 %v1212
    %2882 = vmatpush2.bf16.msra.mxu0 %v1211
    %2883 = vmatprep.subr.bf16.mxu0 %v1204
    %2884 = vmatpush2.bf16.msra.mxu0 %v1203
    %2885 = vmatprep.mubr.bf16.mxu0 %v2770
    %2886 = vmatmul.mubr.bf16.gmra.mxu0 %v2769
    %v2887 = vpop.f32.mrf.mxu0
    %v2888 = vadd.f32 0.0, %v2887
    %v2889 = vpop.f32.mrf.mxu0
    %v2890 = vadd.f32 0.0, %v2889
    %v2891 = vpop.f32.mrf.mxu0
    %v2892 = vpop.f32.mrf.mxu0
    %2893 = vdwg.mxu0
    %2894 = vmatprep.subr.bf16.mxu0 %v1198
    %2895 = vmatpush1.bf16.msra.mxu0 %v1197
    %2896 = vmatprep.subr.bf16.mxu0 %v1190
    %2897 = vmatpush1.bf16.msra.mxu0 %v1189
    %2898 = vmatprep.subr.bf16.mxu0 %v1182
    %2899 = vmatpush1.bf16.msra.mxu0 %v1181
    %2900 = vmatprep.subr.bf16.mxu0 %v1174
    %2901 = vmatpush1.bf16.msra.mxu0 %v1173
    %2902 = vmatprep.subr.bf16.mxu0 %v1166
    %2903 = vmatpush1.bf16.msra.mxu0 %v1165
    %2904 = vmatprep.subr.bf16.mxu0 %v1158
    %2905 = vmatpush1.bf16.msra.mxu0 %v1157
    %2906 = vmatprep.subr.bf16.mxu0 %v1150
    %2907 = vmatpush1.bf16.msra.mxu0 %v1149
    %2908 = vmatprep.subr.bf16.mxu0 %v1142
    %2909 = vmatpush1.bf16.msra.mxu0 %v1141
    %2910 = vmatprep.subr.bf16.mxu0 %v1262
    %2911 = vmatpush2.bf16.msra.mxu0 %v1261
    %2912 = vmatprep.subr.bf16.mxu0 %v1254
    %2913 = vmatpush2.bf16.msra.mxu0 %v1253
    %2914 = vmatprep.subr.bf16.mxu0 %v1246
    %2915 = vmatpush2.bf16.msra.mxu0 %v1245
    %2916 = vmatprep.subr.bf16.mxu0 %v1238
    %2917 = vmatpush2.bf16.msra.mxu0 %v1237
    %2918 = vmatprep.subr.bf16.mxu0 %v1230
    %2919 = vmatpush2.bf16.msra.mxu0 %v1229
    %2920 = vmatprep.subr.bf16.mxu0 %v1222
    %2921 = vmatpush2.bf16.msra.mxu0 %v1221
    %2922 = vmatprep.subr.bf16.mxu0 %v1214
    %2923 = vmatpush2.bf16.msra.mxu0 %v1213
    %2924 = vmatprep.subr.bf16.mxu0 %v1206
    %2925 = vmatpush2.bf16.msra.mxu0 %v1205
    %2926 = vmatprep.mubr.bf16.mxu0 %v2770
    %2927 = vmatmul.mubr.bf16.gmra.mxu0 %v2769
    %v2928 = vpop.f32.mrf.mxu0
    %v2929 = vadd.f32 0.0, %v2928
    %v2930 = vpop.f32.mrf.mxu0
    %v2931 = vadd.f32 0.0, %v2930
    %v2932 = vpop.f32.mrf.mxu0
    %v2933 = vpop.f32.mrf.mxu0
    %2934 = vdwg.mxu0
    %v2935 = vadd.f32 %v2761, %v2806
    %v2936 = vadd.f32 %v2762, %v2808
    %v2937 = vadd.f32 %v2763, %v2847
    %v2938 = vadd.f32 %v2764, %v2849
    %v2939 = vadd.f32 %v2765, %v2888
    %v2940 = vadd.f32 %v2766, %v2890
    %v2941 = vadd.f32 %v2767, %v2929
    %v2942 = vadd.f32 %v2768, %v2931
    %v2943 = vxor.u32 %v2935, 2147483648
    %v2944 = vxor.u32 %v2936, 2147483648
    %v2945 = vxor.u32 %v2937, 2147483648
    %v2946 = vxor.u32 %v2938, 2147483648
    %v2947 = vxor.u32 %v2939, 2147483648
    %v2948 = vxor.u32 %v2940, 2147483648
    %v2949 = vmul.f32 %v2943, 1.442695
    %v2950 = vpow.pop %v2949
    %v2951 = vmul.f32 %v2944, 1.442695
    %v2952 = vpow.pop %v2951
    %v2953 = vmul.f32 %v2945, 1.442695
    %v2954 = vpow.pop %v2953
    %v2955 = vmul.f32 %v2946, 1.442695
    %v2956 = vpow.pop %v2955
    %v2957 = vmul.f32 %v2947, 1.442695
    %v2958 = vpow.pop %v2957
    %v2959 = vmul.f32 %v2948, 1.442695
    %v2960 = vpow.pop %v2959
    %v2961 = vadd.f32 %v2950, 1.0
    %v2962 = vadd.f32 %v2952, 1.0
    %v2963 = vadd.f32 %v2954, 1.0
    %v2964 = vadd.f32 %v2956, 1.0
    %v2965 = vadd.f32 %v2958, 1.0
    %v2966 = vadd.f32 %v2960, 1.0
    %v2967 = vrcp.pop %v2961
    %v2968 = vmul.f32 1.0, %v2967
    %v2969 = vrcp.pop %v2962
    %v2970 = vmul.f32 1.0, %v2969
    %v2971 = vrcp.pop %v2963
    %v2972 = vmul.f32 1.0, %v2971
    %v2973 = vrcp.pop %v2964
    %v2974 = vmul.f32 1.0, %v2973
    %v2975 = vrcp.pop %v2965
    %v2976 = vmul.f32 1.0, %v2975
    %v2977 = vrcp.pop %v2966
    %v2978 = vmul.f32 1.0, %v2977
    %v2979 = vtanh.pop %v2941
    %v2980 = vtanh.pop %v2942
    %v2981 = vmul.f32 %v2972, %v2755
    %v2982 = vmul.f32 %v2974, %v2756
    %v2983 = vmul.f32 %v2968, %v2979
    %v2984 = vmul.f32 %v2970, %v2980
    %v2985 = vadd.f32 %v2981, %v2983
    %v2986 = vadd.f32 %v2982, %v2984
    %v2987 = vtanh.pop %v2985
    %v2988 = vtanh.pop %v2986
    %v2989 = vmul.f32 %v2976, %v2987
    %v2990 = vmul.f32 %v2978, %v2988
    %v2991 = vld [vmem:[#allocation2 + $0x1c0] sm:$0xff]
    %v2992 = vld [vmem:[#allocation2 + $0x1c8] sm:$0xff]
    %v2993 = vld [vmem:[#allocation2 + $0x1d0] sm:$0xff]
    %v2994 = vld [vmem:[#allocation2 + $0x1d8] sm:$0xff]
    %v2995 = vld [vmem:[#allocation2 + $0x1e0] sm:$0xff]
    %v2996 = vld [vmem:[#allocation2 + $0x1e8] sm:$0xff]
    %v2997 = vld [vmem:[#allocation2 + $0x1f0] sm:$0xff]
    %v2998 = vld [vmem:[#allocation2 + $0x1f8] sm:$0xff]
    %v2999 = vpack.c.bf16 %v2989, %v2989
    %v3000 = vpack.c.bf16 %v2990, %v2990
    %3001 = vmatprep.subr.bf16.mxu0 %v1192
    %3002 = vmatpush1.bf16.msra.mxu0 %v1191
    %3003 = vmatprep.subr.bf16.mxu0 %v1184
    %3004 = vmatpush1.bf16.msra.mxu0 %v1183
    %3005 = vmatprep.subr.bf16.mxu0 %v1176
    %3006 = vmatpush1.bf16.msra.mxu0 %v1175
    %3007 = vmatprep.subr.bf16.mxu0 %v1168
    %3008 = vmatpush1.bf16.msra.mxu0 %v1167
    %3009 = vmatprep.subr.bf16.mxu0 %v1160
    %3010 = vmatpush1.bf16.msra.mxu0 %v1159
    %3011 = vmatprep.subr.bf16.mxu0 %v1152
    %3012 = vmatpush1.bf16.msra.mxu0 %v1151
    %3013 = vmatprep.subr.bf16.mxu0 %v1144
    %3014 = vmatpush1.bf16.msra.mxu0 %v1143
    %3015 = vmatprep.subr.bf16.mxu0 %v1136
    %3016 = vmatpush1.bf16.msra.mxu0 %v1135
    %3017 = vmatprep.subr.bf16.mxu0 %v1256
    %3018 = vmatpush2.bf16.msra.mxu0 %v1255
    %3019 = vmatprep.subr.bf16.mxu0 %v1248
    %3020 = vmatpush2.bf16.msra.mxu0 %v1247
    %3021 = vmatprep.subr.bf16.mxu0 %v1240
    %3022 = vmatpush2.bf16.msra.mxu0 %v1239
    %3023 = vmatprep.subr.bf16.mxu0 %v1232
    %3024 = vmatpush2.bf16.msra.mxu0 %v1231
    %3025 = vmatprep.subr.bf16.mxu0 %v1224
    %3026 = vmatpush2.bf16.msra.mxu0 %v1223
    %3027 = vmatprep.subr.bf16.mxu0 %v1216
    %3028 = vmatpush2.bf16.msra.mxu0 %v1215
    %3029 = vmatprep.subr.bf16.mxu0 %v1208
    %3030 = vmatpush2.bf16.msra.mxu0 %v1207
    %3031 = vmatprep.subr.bf16.mxu0 %v1200
    %3032 = vmatpush2.bf16.msra.mxu0 %v1199
    %3033 = vmatprep.mubr.bf16.mxu0 %v3000
    %3034 = vmatmul.mubr.bf16.gmra.mxu0 %v2999
    %v3035 = vpop.f32.mrf.mxu0
    %v3036 = vadd.f32 0.0, %v3035
    %v3037 = vpop.f32.mrf.mxu0
    %v3038 = vadd.f32 0.0, %v3037
    %v3039 = vpop.f32.mrf.mxu0
    %v3040 = vpop.f32.mrf.mxu0
    %3041 = vdwg.mxu0
    %3042 = vmatprep.subr.bf16.mxu0 %v1194
    %3043 = vmatpush1.bf16.msra.mxu0 %v1193
    %3044 = vmatprep.subr.bf16.mxu0 %v1186
    %3045 = vmatpush1.bf16.msra.mxu0 %v1185
    %3046 = vmatprep.subr.bf16.mxu0 %v1178
    %3047 = vmatpush1.bf16.msra.mxu0 %v1177
    %3048 = vmatprep.subr.bf16.mxu0 %v1170
    %3049 = vmatpush1.bf16.msra.mxu0 %v1169
    %3050 = vmatprep.subr.bf16.mxu0 %v1162
    %3051 = vmatpush1.bf16.msra.mxu0 %v1161
    %3052 = vmatprep.subr.bf16.mxu0 %v1154
    %3053 = vmatpush1.bf16.msra.mxu0 %v1153
    %3054 = vmatprep.subr.bf16.mxu0 %v1146
    %3055 = vmatpush1.bf16.msra.mxu0 %v1145
    %3056 = vmatprep.subr.bf16.mxu0 %v1138
    %3057 = vmatpush1.bf16.msra.mxu0 %v1137
    %3058 = vmatprep.subr.bf16.mxu0 %v1258
    %3059 = vmatpush2.bf16.msra.mxu0 %v1257
    %3060 = vmatprep.subr.bf16.mxu0 %v1250
    %3061 = vmatpush2.bf16.msra.mxu0 %v1249
    %3062 = vmatprep.subr.bf16.mxu0 %v1242
    %3063 = vmatpush2.bf16.msra.mxu0 %v1241
    %3064 = vmatprep.subr.bf16.mxu0 %v1234
    %3065 = vmatpush2.bf16.msra.mxu0 %v1233
    %3066 = vmatprep.subr.bf16.mxu0 %v1226
    %3067 = vmatpush2.bf16.msra.mxu0 %v1225
    %3068 = vmatprep.subr.bf16.mxu0 %v1218
    %3069 = vmatpush2.bf16.msra.mxu0 %v1217
    %3070 = vmatprep.subr.bf16.mxu0 %v1210
    %3071 = vmatpush2.bf16.msra.mxu0 %v1209
    %3072 = vmatprep.subr.bf16.mxu0 %v1202
    %3073 = vmatpush2.bf16.msra.mxu0 %v1201
    %3074 = vmatprep.mubr.bf16.mxu0 %v3000
    %3075 = vmatmul.mubr.bf16.gmra.mxu0 %v2999
    %v3076 = vpop.f32.mrf.mxu0
    %v3077 = vadd.f32 0.0, %v3076
    %v3078 = vpop.f32.mrf.mxu0
    %v3079 = vadd.f32 0.0, %v3078
    %v3080 = vpop.f32.mrf.mxu0
    %v3081 = vpop.f32.mrf.mxu0
    %3082 = vdwg.mxu0
    %3083 = vmatprep.subr.bf16.mxu0 %v1196
    %3084 = vmatpush1.bf16.msra.mxu0 %v1195
    %3085 = vmatprep.subr.bf16.mxu0 %v1188
    %3086 = vmatpush1.bf16.msra.mxu0 %v1187
    %3087 = vmatprep.subr.bf16.mxu0 %v1180
    %3088 = vmatpush1.bf16.msra.mxu0 %v1179
    %3089 = vmatprep.subr.bf16.mxu0 %v1172
    %3090 = vmatpush1.bf16.msra.mxu0 %v1171
    %3091 = vmatprep.subr.bf16.mxu0 %v1164
    %3092 = vmatpush1.bf16.msra.mxu0 %v1163
    %3093 = vmatprep.subr.bf16.mxu0 %v1156
    %3094 = vmatpush1.bf16.msra.mxu0 %v1155
    %3095 = vmatprep.subr.bf16.mxu0 %v1148
    %3096 = vmatpush1.bf16.msra.mxu0 %v1147
    %3097 = vmatprep.subr.bf16.mxu0 %v1140
    %3098 = vmatpush1.bf16.msra.mxu0 %v1139
    %3099 = vmatprep.subr.bf16.mxu0 %v1260
    %3100 = vmatpush2.bf16.msra.mxu0 %v1259
    %3101 = vmatprep.subr.bf16.mxu0 %v1252
    %3102 = vmatpush2.bf16.msra.mxu0 %v1251
    %3103 = vmatprep.subr.bf16.mxu0 %v1244
    %3104 = vmatpush2.bf16.msra.mxu0 %v1243
    %3105 = vmatprep.subr.bf16.mxu0 %v1236
    %3106 = vmatpush2.bf16.msra.mxu0 %v1235
    %3107 = vmatprep.subr.bf16.mxu0 %v1228
    %3108 = vmatpush2.bf16.msra.mxu0 %v1227
    %3109 = vmatprep.subr.bf16.mxu0 %v1220
    %3110 = vmatpush2.bf16.msra.mxu0 %v1219
    %3111 = vmatprep.subr.bf16.mxu0 %v1212
    %3112 = vmatpush2.bf16.msra.mxu0 %v1211
    %3113 = vmatprep.subr.bf16.mxu0 %v1204
    %3114 = vmatpush2.bf16.msra.mxu0 %v1203
    %3115 = vmatprep.mubr.bf16.mxu0 %v3000
    %3116 = vmatmul.mubr.bf16.gmra.mxu0 %v2999
    %v3117 = vpop.f32.mrf.mxu0
    %v3118 = vadd.f32 0.0, %v3117
    %v3119 = vpop.f32.mrf.mxu0
    %v3120 = vadd.f32 0.0, %v3119
    %v3121 = vpop.f32.mrf.mxu0
    %v3122 = vpop.f32.mrf.mxu0
    %3123 = vdwg.mxu0
    %3124 = vmatprep.subr.bf16.mxu0 %v1198
    %3125 = vmatpush1.bf16.msra.mxu0 %v1197
    %3126 = vmatprep.subr.bf16.mxu0 %v1190
    %3127 = vmatpush1.bf16.msra.mxu0 %v1189
    %3128 = vmatprep.subr.bf16.mxu0 %v1182
    %3129 = vmatpush1.bf16.msra.mxu0 %v1181
    %3130 = vmatprep.subr.bf16.mxu0 %v1174
    %3131 = vmatpush1.bf16.msra.mxu0 %v1173
    %3132 = vmatprep.subr.bf16.mxu0 %v1166
    %3133 = vmatpush1.bf16.msra.mxu0 %v1165
    %3134 = vmatprep.subr.bf16.mxu0 %v1158
    %3135 = vmatpush1.bf16.msra.mxu0 %v1157
    %3136 = vmatprep.subr.bf16.mxu0 %v1150
    %3137 = vmatpush1.bf16.msra.mxu0 %v1149
    %3138 = vmatprep.subr.bf16.mxu0 %v1142
    %3139 = vmatpush1.bf16.msra.mxu0 %v1141
    %3140 = vmatprep.subr.bf16.mxu0 %v1262
    %3141 = vmatpush2.bf16.msra.mxu0 %v1261
    %3142 = vmatprep.subr.bf16.mxu0 %v1254
    %3143 = vmatpush2.bf16.msra.mxu0 %v1253
    %3144 = vmatprep.subr.bf16.mxu0 %v1246
    %3145 = vmatpush2.bf16.msra.mxu0 %v1245
    %3146 = vmatprep.subr.bf16.mxu0 %v1238
    %3147 = vmatpush2.bf16.msra.mxu0 %v1237
    %3148 = vmatprep.subr.bf16.mxu0 %v1230
    %3149 = vmatpush2.bf16.msra.mxu0 %v1229
    %3150 = vmatprep.subr.bf16.mxu0 %v1222
    %3151 = vmatpush2.bf16.msra.mxu0 %v1221
    %3152 = vmatprep.subr.bf16.mxu0 %v1214
    %3153 = vmatpush2.bf16.msra.mxu0 %v1213
    %3154 = vmatprep.subr.bf16.mxu0 %v1206
    %3155 = vmatpush2.bf16.msra.mxu0 %v1205
    %3156 = vmatprep.mubr.bf16.mxu0 %v3000
    %3157 = vmatmul.mubr.bf16.gmra.mxu0 %v2999
    %v3158 = vpop.f32.mrf.mxu0
    %v3159 = vadd.f32 0.0, %v3158
    %v3160 = vpop.f32.mrf.mxu0
    %v3161 = vadd.f32 0.0, %v3160
    %v3162 = vpop.f32.mrf.mxu0
    %v3163 = vpop.f32.mrf.mxu0
    %3164 = vdwg.mxu0
    %v3165 = vadd.f32 %v2991, %v3036
    %v3166 = vadd.f32 %v2992, %v3038
    %v3167 = vadd.f32 %v2993, %v3077
    %v3168 = vadd.f32 %v2994, %v3079
    %v3169 = vadd.f32 %v2995, %v3118
    %v3170 = vadd.f32 %v2996, %v3120
    %v3171 = vadd.f32 %v2997, %v3159
    %v3172 = vadd.f32 %v2998, %v3161
    %v3173 = vxor.u32 %v3165, 2147483648
    %v3174 = vxor.u32 %v3166, 2147483648
    %v3175 = vxor.u32 %v3167, 2147483648
    %v3176 = vxor.u32 %v3168, 2147483648
    %v3177 = vxor.u32 %v3169, 2147483648
    %v3178 = vxor.u32 %v3170, 2147483648
    %v3179 = vmul.f32 %v3173, 1.442695
    %v3180 = vpow.pop %v3179
    %v3181 = vmul.f32 %v3174, 1.442695
    %v3182 = vpow.pop %v3181
    %v3183 = vmul.f32 %v3175, 1.442695
    %v3184 = vpow.pop %v3183
    %v3185 = vmul.f32 %v3176, 1.442695
    %v3186 = vpow.pop %v3185
    %v3187 = vmul.f32 %v3177, 1.442695
    %v3188 = vpow.pop %v3187
    %v3189 = vmul.f32 %v3178, 1.442695
    %v3190 = vpow.pop %v3189
    %v3191 = vadd.f32 %v3180, 1.0
    %v3192 = vadd.f32 %v3182, 1.0
    %v3193 = vadd.f32 %v3184, 1.0
    %v3194 = vadd.f32 %v3186, 1.0
    %v3195 = vadd.f32 %v3188, 1.0
    %v3196 = vadd.f32 %v3190, 1.0
    %v3197 = vrcp.pop %v3191
    %v3198 = vmul.f32 1.0, %v3197
    %v3199 = vrcp.pop %v3192
    %v3200 = vmul.f32 1.0, %v3199
    %v3201 = vrcp.pop %v3193
    %v3202 = vmul.f32 1.0, %v3201
    %v3203 = vrcp.pop %v3194
    %v3204 = vmul.f32 1.0, %v3203
    %v3205 = vrcp.pop %v3195
    %v3206 = vmul.f32 1.0, %v3205
    %v3207 = vrcp.pop %v3196
    %v3208 = vmul.f32 1.0, %v3207
    %v3209 = vtanh.pop %v3171
    %v3210 = vtanh.pop %v3172
    %v3211 = vmul.f32 %v3202, %v2985
    %v3212 = vmul.f32 %v3204, %v2986
    %v3213 = vmul.f32 %v3198, %v3209
    %v3214 = vmul.f32 %v3200, %v3210
    %v3215 = vadd.f32 %v3211, %v3213
    %v3216 = vadd.f32 %v3212, %v3214
    %v3217 = vtanh.pop %v3215
    %v3218 = vtanh.pop %v3216
    %v3219 = vmul.f32 %v3206, %v3217
    %v3220 = vmul.f32 %v3208, %v3218
    %s3221 = smul.u32 %s611, 1
    %s3222 = sshll.u32 %s3221, 4
    %3223 = dma.done %s40, %s3222
    %s3224 = smul.u32 4, 16
    %s3225 = smul.u32 %s3224, 1
    %s3226 = sshll.u32 %s3225, 4
    %3227 = dma.done %s52, %s3226
    %s3228 = sshll.u32 %s3225, 4
    %3229 = dma.done %s64, %s3228
    %v3230 = vpack.c.bf16 %v3219, %v3219
    %v3231 = vpack.c.bf16 %v3220, %v3220
    %v3232 = vld [vmem:[#allocation4] sm:$0xf]
    %v3233 = vld [vmem:[#allocation4 + $0x4] sm:$0xf]
    %v3234 = vld [vmem:[#allocation4 + $0x8] sm:$0xf]
    %v3235 = vld [vmem:[#allocation4 + $0xc] sm:$0xf]
    %v3236 = vld [vmem:[#allocation4 + $0x10] sm:$0xf]
    %v3237 = vld [vmem:[#allocation4 + $0x14] sm:$0xf]
    %v3238 = vld [vmem:[#allocation4 + $0x18] sm:$0xf]
    %v3239 = vld [vmem:[#allocation4 + $0x1c] sm:$0xf]
    %v3240 = vld [vmem:[#allocation4 + $0x20] sm:$0xf]
    %v3241 = vld [vmem:[#allocation4 + $0x24] sm:$0xf]
    %v3242 = vld [vmem:[#allocation4 + $0x28] sm:$0xf]
    %v3243 = vld [vmem:[#allocation4 + $0x2c] sm:$0xf]
    %v3244 = vld [vmem:[#allocation4 + $0x30] sm:$0xf]
    %v3245 = vld [vmem:[#allocation4 + $0x34] sm:$0xf]
    %v3246 = vld [vmem:[#allocation4 + $0x38] sm:$0xf]
    %v3247 = vld [vmem:[#allocation4 + $0x3c] sm:$0xf]
    %v3248 = vld [vmem:[#allocation4 + $0x40] sm:$0xf]
    %v3249 = vld [vmem:[#allocation4 + $0x44] sm:$0xf]
    %v3250 = vld [vmem:[#allocation4 + $0x48] sm:$0xf]
    %v3251 = vld [vmem:[#allocation4 + $0x4c] sm:$0xf]
    %v3252 = vld [vmem:[#allocation4 + $0x50] sm:$0xf]
    %v3253 = vld [vmem:[#allocation4 + $0x54] sm:$0xf]
    %v3254 = vld [vmem:[#allocation4 + $0x58] sm:$0xf]
    %v3255 = vld [vmem:[#allocation4 + $0x5c] sm:$0xf]
    %v3256 = vld [vmem:[#allocation4 + $0x60] sm:$0xf]
    %v3257 = vld [vmem:[#allocation4 + $0x64] sm:$0xf]
    %v3258 = vld [vmem:[#allocation4 + $0x68] sm:$0xf]
    %v3259 = vld [vmem:[#allocation4 + $0x6c] sm:$0xf]
    %v3260 = vld [vmem:[#allocation4 + $0x70] sm:$0xf]
    %v3261 = vld [vmem:[#allocation4 + $0x74] sm:$0xf]
    %v3262 = vld [vmem:[#allocation4 + $0x78] sm:$0xf]
    %v3263 = vld [vmem:[#allocation4 + $0x7c] sm:$0xf]
    %v3264 = vld [vmem:[%s3] sm:$0x1]
    %v3266 = vlaneseq
    %v3267 = vshrl.u32 %v3266, 7
    %v3268 = vsub.s32 0, %v3267
    %v3269 = vrot.slane %v3264, %v3268
    %v3303 = vunpack.c.l.b16 %v3232
    %v3304 = vunpack.c.l.b16 %v3233
    %v3305 = vunpack.c.l.b16 %v3234
    %v3306 = vunpack.c.l.b16 %v3235
    %v3307 = vunpack.c.l.b16 %v3236
    %v3308 = vunpack.c.l.b16 %v3237
    %v3309 = vunpack.c.l.b16 %v3238
    %v3310 = vunpack.c.l.b16 %v3239
    %v3311 = vunpack.c.l.b16 %v3240
    %v3312 = vunpack.c.l.b16 %v3241
    %v3313 = vunpack.c.l.b16 %v3242
    %v3314 = vunpack.c.l.b16 %v3243
    %v3315 = vunpack.c.l.b16 %v3244
    %v3316 = vunpack.c.l.b16 %v3245
    %v3317 = vunpack.c.l.b16 %v3246
    %v3318 = vunpack.c.l.b16 %v3247
    %v3319 = vunpack.c.l.b16 %v3248
    %v3320 = vunpack.c.l.b16 %v3249
    %v3321 = vunpack.c.l.b16 %v3250
    %v3322 = vunpack.c.l.b16 %v3251
    %v3323 = vunpack.c.l.b16 %v3252
    %v3324 = vunpack.c.l.b16 %v3253
    %v3325 = vunpack.c.l.b16 %v3254
    %v3326 = vunpack.c.l.b16 %v3255
    %v3327 = vunpack.c.l.b16 %v3256
    %v3328 = vunpack.c.l.b16 %v3257
    %v3329 = vunpack.c.l.b16 %v3258
    %v3330 = vunpack.c.l.b16 %v3259
    %v3331 = vunpack.c.l.b16 %v3260
    %v3332 = vunpack.c.l.b16 %v3261
    %v3333 = vunpack.c.l.b16 %v3262
    %v3334 = vunpack.c.l.b16 %v3263
    %v3335 = vpack.c.b16 %v3304, %v3303
    %v3336 = vpack.c.b16 %v3306, %v3305
    %v3337 = vpack.c.b16 %v3308, %v3307
    %v3338 = vpack.c.b16 %v3310, %v3309
    %v3339 = vpack.c.b16 %v3312, %v3311
    %v3340 = vpack.c.b16 %v3314, %v3313
    %v3341 = vpack.c.b16 %v3316, %v3315
    %v3342 = vpack.c.b16 %v3318, %v3317
    %v3343 = vpack.c.b16 %v3320, %v3319
    %v3344 = vpack.c.b16 %v3322, %v3321
    %v3345 = vpack.c.b16 %v3324, %v3323
    %v3346 = vpack.c.b16 %v3326, %v3325
    %v3347 = vpack.c.b16 %v3328, %v3327
    %v3348 = vpack.c.b16 %v3330, %v3329
    %v3349 = vpack.c.b16 %v3332, %v3331
    %v3350 = vpack.c.b16 %v3334, %v3333
    %3367 = vmatprep.subr.bf16.mxu0 0
    %3368 = vmatpush1.bf16.msra.mxu0 %v3342
    %3369 = vmatprep.subr.bf16.mxu0 0
    %3370 = vmatpush1.bf16.msra.mxu0 %v3341
    %3371 = vmatprep.subr.bf16.mxu0 0
    %3372 = vmatpush1.bf16.msra.mxu0 %v3340
    %3373 = vmatprep.subr.bf16.mxu0 0
    %3374 = vmatpush1.bf16.msra.mxu0 %v3339
    %3375 = vmatprep.subr.bf16.mxu0 0
    %3376 = vmatpush1.bf16.msra.mxu0 %v3338
    %3377 = vmatprep.subr.bf16.mxu0 0
    %3378 = vmatpush1.bf16.msra.mxu0 %v3337
    %3379 = vmatprep.subr.bf16.mxu0 0
    %3380 = vmatpush1.bf16.msra.mxu0 %v3336
    %3381 = vmatprep.subr.bf16.mxu0 0
    %3382 = vmatpush1.bf16.msra.mxu0 %v3335
    %3383 = vmatprep.subr.bf16.mxu0 0
    %3384 = vmatpush2.bf16.msra.mxu0 %v3350
    %3385 = vmatprep.subr.bf16.mxu0 0
    %3386 = vmatpush2.bf16.msra.mxu0 %v3349
    %3387 = vmatprep.subr.bf16.mxu0 0
    %3388 = vmatpush2.bf16.msra.mxu0 %v3348
    %3389 = vmatprep.subr.bf16.mxu0 0
    %3390 = vmatpush2.bf16.msra.mxu0 %v3347
    %3391 = vmatprep.subr.bf16.mxu0 0
    %3392 = vmatpush2.bf16.msra.mxu0 %v3346
    %3393 = vmatprep.subr.bf16.mxu0 0
    %3394 = vmatpush2.bf16.msra.mxu0 %v3345
    %3395 = vmatprep.subr.bf16.mxu0 0
    %3396 = vmatpush2.bf16.msra.mxu0 %v3344
    %3397 = vmatprep.subr.bf16.mxu0 0
    %3398 = vmatpush2.bf16.msra.mxu0 %v3343
    %3399 = vmatprep.mubr.bf16.mxu0 %v3231
    %3400 = vmatmul.mubr.bf16.gmra.mxu0 %v3230
    %v3401 = vpop.f32.mrf.mxu0
    %v3402 = vadd.f32 %v3269, %v3401
    %v3403 = vpop.f32.mrf.mxu0
    %v3404 = vpop.f32.mrf.mxu0
    %v3405 = vpop.f32.mrf.mxu0
    %3406 = vdwg.mxu0
    %v3407 = vmax.f32 %v3402, 0.0
    %v3408 = vpack.c.bf16 %v3407, %v3407
    %v3409 = vld [vmem:[#allocation5] sm:$0xf]
    %v3410 = vld [vmem:[#allocation5 + $0x4] sm:$0xf]
    %v3411 = vld [vmem:[#allocation5 + $0x8] sm:$0xf]
    %v3412 = vld [vmem:[#allocation5 + $0xc] sm:$0xf]
    %v3413 = vld [vmem:[#allocation5 + $0x10] sm:$0xf]
    %v3414 = vld [vmem:[#allocation5 + $0x14] sm:$0xf]
    %v3415 = vld [vmem:[#allocation5 + $0x18] sm:$0xf]
    %v3416 = vld [vmem:[#allocation5 + $0x1c] sm:$0xf]
    %v3417 = vld [vmem:[#allocation5 + $0x20] sm:$0xf]
    %v3418 = vld [vmem:[#allocation5 + $0x24] sm:$0xf]
    %v3419 = vld [vmem:[#allocation5 + $0x28] sm:$0xf]
    %v3420 = vld [vmem:[#allocation5 + $0x2c] sm:$0xf]
    %v3421 = vld [vmem:[#allocation5 + $0x30] sm:$0xf]
    %v3422 = vld [vmem:[#allocation5 + $0x34] sm:$0xf]
    %v3423 = vld [vmem:[#allocation5 + $0x38] sm:$0xf]
    %v3424 = vld [vmem:[#allocation5 + $0x3c] sm:$0xf]
    %v3425 = vld [vmem:[%s4] sm:$0x1]
    %v3427 = vlaneseq
    %v3428 = vshrl.u32 %v3427, 7
    %v3429 = vsub.s32 0, %v3428
    %v3430 = vrot.slane %v3425, %v3429
    %v3448 = vunpack.c.l.b16 %v3409
    %v3449 = vunpack.c.l.b16 %v3410
    %v3450 = vunpack.c.l.b16 %v3411
    %v3451 = vunpack.c.l.b16 %v3412
    %v3452 = vunpack.c.l.b16 %v3413
    %v3453 = vunpack.c.l.b16 %v3414
    %v3454 = vunpack.c.l.b16 %v3415
    %v3455 = vunpack.c.l.b16 %v3416
    %v3456 = vunpack.c.l.b16 %v3417
    %v3457 = vunpack.c.l.b16 %v3418
    %v3458 = vunpack.c.l.b16 %v3419
    %v3459 = vunpack.c.l.b16 %v3420
    %v3460 = vunpack.c.l.b16 %v3421
    %v3461 = vunpack.c.l.b16 %v3422
    %v3462 = vunpack.c.l.b16 %v3423
    %v3463 = vunpack.c.l.b16 %v3424
    %v3464 = vpack.c.b16 %v3449, %v3448
    %v3465 = vpack.c.b16 %v3451, %v3450
    %v3466 = vpack.c.b16 %v3453, %v3452
    %v3467 = vpack.c.b16 %v3455, %v3454
    %v3468 = vpack.c.b16 %v3457, %v3456
    %v3469 = vpack.c.b16 %v3459, %v3458
    %v3470 = vpack.c.b16 %v3461, %v3460
    %v3471 = vpack.c.b16 %v3463, %v3462
    %3480 = vmatprep.subr.bf16.mxu0 0
    %3481 = vmatpush1.bf16.msra.mxu0 %v3471
    %3482 = vmatprep.subr.bf16.mxu0 0
    %3483 = vmatpush1.bf16.msra.mxu0 %v3470
    %3484 = vmatprep.subr.bf16.mxu0 0
    %3485 = vmatpush1.bf16.msra.mxu0 %v3469
    %3486 = vmatprep.subr.bf16.mxu0 0
    %3487 = vmatpush1.bf16.msra.mxu0 %v3468
    %3488 = vmatprep.subr.bf16.mxu0 0
    %3489 = vmatpush1.bf16.msra.mxu0 %v3467
    %3490 = vmatprep.subr.bf16.mxu0 0
    %3491 = vmatpush1.bf16.msra.mxu0 %v3466
    %3492 = vmatprep.subr.bf16.mxu0 0
    %3493 = vmatpush1.bf16.msra.mxu0 %v3465
    %3494 = vmatprep.subr.bf16.mxu0 0
    %3495 = vmatpush1.bf16.msra.mxu0 %v3464
    %3496 = vmatprep.subr.bf16.mxu0 0
    %3497 = vmatpush2.bf16.msra.mxu0 0
    %3498 = vmatprep.subr.bf16.mxu0 0
    %3499 = vmatpush2.bf16.msra.mxu0 0
    %3500 = vmatprep.subr.bf16.mxu0 0
    %3501 = vmatpush2.bf16.msra.mxu0 0
    %3502 = vmatprep.subr.bf16.mxu0 0
    %3503 = vmatpush2.bf16.msra.mxu0 0
    %3504 = vmatprep.subr.bf16.mxu0 0
    %3505 = vmatpush2.bf16.msra.mxu0 0
    %3506 = vmatprep.subr.bf16.mxu0 0
    %3507 = vmatpush2.bf16.msra.mxu0 0
    %3508 = vmatprep.subr.bf16.mxu0 0
    %3509 = vmatpush2.bf16.msra.mxu0 0
    %3510 = vmatprep.subr.bf16.mxu0 0
    %3511 = vmatpush2.bf16.msra.mxu0 0
    %3512 = vmatprep.mubr.bf16.mxu0 0
    %3513 = vmatmul.mubr.bf16.gmra.mxu0 %v3408
    %v3514 = vpop.f32.mrf.mxu0
    %v3515 = vadd.f32 %v3430, %v3514
    %v3516 = vpop.f32.mrf.mxu0
    %v3517 = vpop.f32.mrf.mxu0
    %v3518 = vpop.f32.mrf.mxu0
    %3519 = vdwg.mxu0
    %v3520 = vmax.f32 %v3515, 0.0
    %v3521 = vpack.c.bf16 %v3520, %v3520
    %v3522 = vld [vmem:[#allocation6] sm:$0xf]
    %v3523 = vld [vmem:[#allocation6 + $0x4] sm:$0xf]
    %v3524 = vld [vmem:[#allocation6 + $0x8] sm:$0xf]
    %v3525 = vld [vmem:[#allocation6 + $0xc] sm:$0xf]
    %v3526 = vld [vmem:[#allocation6 + $0x10] sm:$0xf]
    %v3527 = vld [vmem:[#allocation6 + $0x14] sm:$0xf]
    %v3528 = vld [vmem:[#allocation6 + $0x18] sm:$0xf]
    %v3529 = vld [vmem:[#allocation6 + $0x1c] sm:$0xf]
    %v3530 = vld [vmem:[#allocation6 + $0x20] sm:$0xf]
    %v3531 = vld [vmem:[#allocation6 + $0x24] sm:$0xf]
    %v3532 = vld [vmem:[#allocation6 + $0x28] sm:$0xf]
    %v3533 = vld [vmem:[#allocation6 + $0x2c] sm:$0xf]
    %v3534 = vld [vmem:[#allocation6 + $0x30] sm:$0xf]
    %v3535 = vld [vmem:[#allocation6 + $0x34] sm:$0xf]
    %v3536 = vld [vmem:[#allocation6 + $0x38] sm:$0xf]
    %v3537 = vld [vmem:[#allocation6 + $0x3c] sm:$0xf]
    %v3538 = vld [vmem:[%s5] sm:$0x1]
    %v3540 = vlaneseq
    %v3541 = vshrl.u32 %v3540, 7
    %v3542 = vsub.s32 0, %v3541
    %v3543 = vrot.slane %v3538, %v3542
    %v3561 = vunpack.c.l.b16 %v3522
    %v3562 = vunpack.c.l.b16 %v3523
    %v3563 = vunpack.c.l.b16 %v3524
    %v3564 = vunpack.c.l.b16 %v3525
    %v3565 = vunpack.c.l.b16 %v3526
    %v3566 = vunpack.c.l.b16 %v3527
    %v3567 = vunpack.c.l.b16 %v3528
    %v3568 = vunpack.c.l.b16 %v3529
    %v3569 = vunpack.c.l.b16 %v3530
    %v3570 = vunpack.c.l.b16 %v3531
    %v3571 = vunpack.c.l.b16 %v3532
    %v3572 = vunpack.c.l.b16 %v3533
    %v3573 = vunpack.c.l.b16 %v3534
    %v3574 = vunpack.c.l.b16 %v3535
    %v3575 = vunpack.c.l.b16 %v3536
    %v3576 = vunpack.c.l.b16 %v3537
    %v3577 = vpack.c.b16 %v3562, %v3561
    %v3578 = vpack.c.b16 %v3564, %v3563
    %v3579 = vpack.c.b16 %v3566, %v3565
    %v3580 = vpack.c.b16 %v3568, %v3567
    %v3581 = vpack.c.b16 %v3570, %v3569
    %v3582 = vpack.c.b16 %v3572, %v3571
    %v3583 = vpack.c.b16 %v3574, %v3573
    %v3584 = vpack.c.b16 %v3576, %v3575
    %3593 = vmatprep.subr.bf16.mxu0 0
    %3594 = vmatpush1.bf16.msra.mxu0 %v3584
    %3595 = vmatprep.subr.bf16.mxu0 0
    %3596 = vmatpush1.bf16.msra.mxu0 %v3583
    %3597 = vmatprep.subr.bf16.mxu0 0
    %3598 = vmatpush1.bf16.msra.mxu0 %v3582
    %3599 = vmatprep.subr.bf16.mxu0 0
    %3600 = vmatpush1.bf16.msra.mxu0 %v3581
    %3601 = vmatprep.subr.bf16.mxu0 0
    %3602 = vmatpush1.bf16.msra.mxu0 %v3580
    %3603 = vmatprep.subr.bf16.mxu0 0
    %3604 = vmatpush1.bf16.msra.mxu0 %v3579
    %3605 = vmatprep.subr.bf16.mxu0 0
    %3606 = vmatpush1.bf16.msra.mxu0 %v3578
    %3607 = vmatprep.subr.bf16.mxu0 0
    %3608 = vmatpush1.bf16.msra.mxu0 %v3577
    %3609 = vmatprep.subr.bf16.mxu0 0
    %3610 = vmatpush2.bf16.msra.mxu0 0
    %3611 = vmatprep.subr.bf16.mxu0 0
    %3612 = vmatpush2.bf16.msra.mxu0 0
    %3613 = vmatprep.subr.bf16.mxu0 0
    %3614 = vmatpush2.bf16.msra.mxu0 0
    %3615 = vmatprep.subr.bf16.mxu0 0
    %3616 = vmatpush2.bf16.msra.mxu0 0
    %3617 = vmatprep.subr.bf16.mxu0 0
    %3618 = vmatpush2.bf16.msra.mxu0 0
    %3619 = vmatprep.subr.bf16.mxu0 0
    %3620 = vmatpush2.bf16.msra.mxu0 0
    %3621 = vmatprep.subr.bf16.mxu0 0
    %3622 = vmatpush2.bf16.msra.mxu0 0
    %3623 = vmatprep.subr.bf16.mxu0 0
    %3624 = vmatpush2.bf16.msra.mxu0 0
    %3625 = vmatprep.mubr.bf16.mxu0 0
    %3626 = vmatmul.mubr.bf16.gmra.mxu0 %v3521
    %v3627 = vpop.f32.mrf.mxu0
    %v3628 = vadd.f32 %v3543, %v3627
    %v3629 = vpop.f32.mrf.mxu0
    %v3630 = vpop.f32.mrf.mxu0
    %v3631 = vpop.f32.mrf.mxu0
    %3632 = vdwg.mxu0
    %3633 = vst [vmem:[#allocation8] sm:$0xff] %v3628
    // Predicated region
    $region42: #{lstm_model_forward.1} parent=1 // pred_check
      _
    $region43: #{lstm_model_forward.1} parent=1 // pred_check_branch
      %3635 = sbr.rel (0) target = $region45
    $region44: #{lstm_model_forward.1} parent=1 // pred_region
      %s3637 = ssub.s32 128, 128
      %3638 = vsyncadd [#allocation9], %s3637
      %s3640 = sshll.u32 [#allocation8], 4
      %s3641 = int_to_ptr.vmem [resolvable:$true] %s3640
      %3643 = dma.vmem_to_hbm [thread:$0]  %s3641, 128, %s10, [#allocation9]
    $region45: #{lstm_model_forward.1} parent=1 // pred_fallthru
      _
    // Predicated region
    $region46: #{lstm_model_forward.1} parent=1 // pred_check
      _
    $region47: #{lstm_model_forward.1} parent=1 // pred_check_branch
      %3645 = sbr.rel (0) target = $region49
    $region48: #{lstm_model_forward.1} parent=1 // pred_region
      %3646 = dma.done [#allocation9], 128
    $region49: #{lstm_model_forward.1} parent=1 // pred_fallthru
      _
    %3647 = vsyncpa [#allocation9], 1
  %3648 = vsyncmov [#allocation7]
  %s3649 = vpop.sfrf %3648
  %p3650 = scmp.eq.s32.totalorder %s3649, 0
  %p3651 = pneg %p3650
  %3653 = shalt.err (%p3651)
  %s3654 = scalar_lea.sflag [#allocation7], 1
  %3655 = vsyncmov %s3654
  %s3656 = vpop.sfrf %3655
  %p3657 = scmp.eq.s32.totalorder %s3656, 0
  %p3658 = pneg %p3657
  %3660 = shalt.err (%p3658)
  %s3661 = scalar_lea.sflag [#allocation7], 2
  %3662 = vsyncmov %s3661
  %s3663 = vpop.sfrf %3662
  %p3664 = scmp.eq.s32.totalorder %s3663, 0
  %p3665 = pneg %p3664
  %3667 = shalt.err (%p3665)
  %s3668 = scalar_lea.sflag [#allocation7], 3
  %3669 = vsyncmov %s3668
  %s3670 = vpop.sfrf %3669
  %p3671 = scmp.eq.s32.totalorder %s3670, 0
  %p3672 = pneg %p3671
  %3674 = shalt.err (%p3672)

</llo_original>
